<compile_context>
chip_gen: v6e
topology: v6e:2x2x1
jax: 0.10.0
libtpu: 0.0.40
codegen_flags: <defaults>
</compile_context>

<pallas_src>
import functools

import numpy as np

import jax
import jax.numpy as jnp
from jax import lax
from jax.experimental import pallas as pl
from jax.experimental.pallas import tpu as pltpu

# ---------------------------------------------------------------------------
# Model hyper-parameters (mirror the PyTorch module's __init__)
# ---------------------------------------------------------------------------
NUM_NETWORKS = 2          # MultiRankingNetwork(number_of_networks=2, ...)
NUM_LAYERS = 2            # BipartiteNetwork(num_layers=2, ...)
IN_CHANNELS = 4
HIDDEN_CHANNELS = 16      # _GIN_layer(hidden_channels=16)
HIDDEN_LAYERS = 10        # _GIN_layer(hidden_layers=10)
NUM_MLP_LAYERS = HIDDEN_LAYERS + 2   # Linear(in,16) + 10x Linear(16,16) + Linear(16,out)
GIN_EPS = 0.0             # torch_geometric GINConv default eps

NUM_ELEMENTS = 8
NUM_SUBSETS = 8
N_NODES = NUM_ELEMENTS + NUM_SUBSETS
HMAX = max(IN_CHANNELS, HIDDEN_CHANNELS, 1)       # common padded channel width (16)
NUM_BRANCHES = 2 * NUM_NETWORKS                   # (universe, subset) x networks = 4
PACK = NUM_BRANCHES * HMAX                        # packed lane width (64)
HALF = NUM_NETWORKS * HMAX                        # lane width of one direction (32)


# ---------------------------------------------------------------------------
# Fused Pallas kernel: entire MultiRankingNetwork forward
# ---------------------------------------------------------------------------
def multi_ranking_kernel(xq_ref, gu_ref, gs_ref, w_ref, b_ref, o_ref):
    f32 = jnp.float32

    def sigmoid(x):
        # One EUP tanh + cheap VPU ops (exact rewrite of logistic).
        return 0.5 * jnp.tanh(0.5 * x) + 0.5

    # Single tiny constant: which lane half is the "universe direction" half.
    lane = lax.broadcasted_iota(jnp.int32, (NUM_ELEMENTS, PACK), 1)
    lane_is_uni = lane < HALF                                   # [8, 64] bool

    g_uni = gu_ref[...]   # [8, 16] = ((1+eps) I + M_sub_to_uni)[:num_elements, :]
    g_sub = gs_ref[...]   # [8, 16] = ((1+eps) I + M_uni_to_sub)[num_elements:, :]

    # Packed node features [16, 64] = [x_net0 | x_net1 | x_net0 | x_net1]
    # (lane blocks: uni_net0 | uni_net1 | sub_net0 | sub_net1; duplicated content).
    xq = xq_ref[...]

    for i in range(NUM_LAYERS):                                 # statically unrolled
        # GIN "(1+eps)*x + sum-aggregation": two independent [8,16]x[16,64] dots,
        # kept adjacent (MRF-pop overlap on v5e), routed per lane half by a select.
        h_uni = jnp.dot(g_uni, xq, preferred_element_type=f32)  # rows = universe dsts
        h_sub = jnp.dot(g_sub, xq, preferred_element_type=f32)  # rows = subset dsts
        h = jnp.where(lane_is_uni, h_uni, h_sub)                # [8, 64]

        # GIN MLP: 12 Linear layers, sigmoid between all but the last.  Block-diagonal
        # weights -> one 8x64x64 matmul serves all 4 branches per layer.
        for l in range(NUM_MLP_LAYERS):
            wl = i * NUM_MLP_LAYERS + l
            h = jnp.dot(h, w_ref[wl], preferred_element_type=f32) + b_ref[wl]
            if l < NUM_MLP_LAYERS - 1:
                h = sigmoid(h)
            # (Dropout after each sigmoid is identity in eval mode.)

        if i < NUM_LAYERS - 1:
            # features = sigmoid(cat(uni_feats, sub_feats)) per network, re-packed
            # into the duplicated [16, 64] layout with an XLU roll + selects + a
            # sublane concat (no MXU work).  Pad channels carry sigmoid(0)=0.5 but
            # are annihilated by the zero weight rows of the next MLP's first Linear.
            hs = sigmoid(h)                                     # [8, 64]
            rolled = pltpu.roll(hs, shift=HALF, axis=1)         # swap lane halves
            dup_uni = jnp.where(lane_is_uni, hs, rolled)        # [uni0|uni1|uni0|uni1]
            dup_sub = jnp.where(lane_is_uni, rolled, hs)        # [sub0|sub1|sub0|sub1]
            xq = jnp.concatenate([dup_uni, dup_sub], axis=0)    # [16, 64]
        else:
            # Lane-dense output: write the whole sigmoid'd [8, 64]; the wrapper picks
            # channel 0 of each network's subset branch (lanes 32 and 48).
            o_ref[...] = sigmoid(h)


def multi_ranking_pallas(xq, g_uni, g_sub, w_stack, b_stack):
    vmem = pltpu.MemorySpace.VMEM
    n_dots = NUM_LAYERS * (2 + NUM_MLP_LAYERS)
    flops = 2 * NUM_LAYERS * (2 * NUM_ELEMENTS * N_NODES * PACK
                              + NUM_MLP_LAYERS * NUM_ELEMENTS * PACK * PACK)
    transcendentals = NUM_LAYERS * NUM_MLP_LAYERS * NUM_ELEMENTS * PACK
    bytes_accessed = 4 * (xq.size + g_uni.size + g_sub.size + w_stack.size
                          + b_stack.size + NUM_ELEMENTS * PACK)
    del n_dots
    return pl.pallas_call(
        multi_ranking_kernel,
        out_shape=jax.ShapeDtypeStruct((NUM_ELEMENTS, PACK), jnp.float32),
        in_specs=[pl.BlockSpec(memory_space=vmem)] * 5,         # whole arrays in VMEM
        out_specs=pl.BlockSpec(memory_space=vmem),
        cost_estimate=pl.CostEstimate(flops=flops,
                                      transcendentals=transcendentals,
                                      bytes_accessed=bytes_accessed),
    )(xq, g_uni, g_sub, w_stack, b_stack)


def multi_ranking_forward(w_stack, b_stack, features, m_uni_to_sub, m_sub_to_uni):
    """Single fused forward; tiny one-time prep (pad/tile + row-sliced (1+eps)I+M)."""
    x_pad = jnp.zeros((N_NODES, HMAX), jnp.float32).at[:, :IN_CHANNELS].set(
        features.astype(jnp.float32))
    xq = jnp.tile(x_pad, (1, NUM_BRANCHES))                      # [16, 64] packed layout
    eye = jnp.eye(N_NODES, dtype=jnp.float32)
    g_uni = ((1.0 + GIN_EPS) * eye + m_sub_to_uni)[:NUM_ELEMENTS, :]   # [8, 16]
    g_sub = ((1.0 + GIN_EPS) * eye + m_uni_to_sub)[NUM_ELEMENTS:, :]   # [8, 16]
    out = multi_ranking_pallas(xq, g_uni, g_sub, w_stack, b_stack)     # [8, 64]
    # scores[:, n] = channel 0 of network n's subset branch = lane HALF + n*HMAX
    return out[:, HALF::HMAX][:, :NUM_NETWORKS]


# ---------------------------------------------------------------------------
# Parameter construction (deterministic, PyTorch-Linear-style uniform init)
# ---------------------------------------------------------------------------
def init_gin_mlp(key, c_in, c_out):
    dims = ([(c_in, HIDDEN_CHANNELS)]
            + [(HIDDEN_CHANNELS, HIDDEN_CHANNELS)] * HIDDEN_LAYERS
            + [(HIDDEN_CHANNELS, c_out)])
    ws, bs = [], []
    for di, do in dims:
        key, kw, kb = jax.random.split(key, 3)
        bound = 1.0 / (di ** 0.5)
        ws.append(jax.random.uniform(kw, (di, do), jnp.float32, -bound, bound))
        bs.append(jax.random.uniform(kb, (do,), jnp.float32, -bound, bound))
    return ws, bs


def init_multi_ranking_params(key):
    params = []
    for _ in range(NUM_NETWORKS):
        net = []
        for i in range(NUM_LAYERS):
            c_out = 1 if i == NUM_LAYERS - 1 else IN_CHANNELS
            key, k_sub, k_uni = jax.random.split(key, 3)
            net.append({"subset": init_gin_mlp(k_sub, IN_CHANNELS, c_out),
                        "universe": init_gin_mlp(k_uni, IN_CHANNELS, c_out)})
        params.append(net)
    return params


def pack_params(params):
    """Stack all 8 GIN MLPs into block-diagonal [24, 64, 64] weights and
    pre-broadcast [24, 8, 64] biases.

    Lane-block order per bipartite layer: [uni_net0 | uni_net1 | sub_net0 | sub_net1].
    NOTE: correctness relies on the padded regions staying exactly zero.
    """
    w_stack = np.zeros((NUM_LAYERS * NUM_MLP_LAYERS, PACK, PACK), np.float32)
    b_stack = np.zeros((NUM_LAYERS * NUM_MLP_LAYERS, NUM_ELEMENTS, PACK), np.float32)
    for i in range(NUM_LAYERS):
        for b in range(NUM_BRANCHES):
            direction, n = divmod(b, NUM_NETWORKS)     # 0 = universe, 1 = subset
            ws, bs = params[n][i]["universe" if direction == 0 else "subset"]
            off = b * HMAX
            for l in range(NUM_MLP_LAYERS):
                w = np.asarray(ws[l])
                bias = np.asarray(bs[l])
                di, do = w.shape
                w_stack[i * NUM_MLP_LAYERS + l, off:off + di, off:off + do] = w
                b_stack[i * NUM_MLP_LAYERS + l, :, off:off + do] = bias  # pre-broadcast
    return jnp.asarray(w_stack), jnp.asarray(b_stack)


# ---------------------------------------------------------------------------
# Pure-JAX reference (independent, unpacked math for a sanity check)
# ---------------------------------------------------------------------------
def _gin_conv_ref(x, m, ws, bs):
    h = (1.0 + GIN_EPS) * x + m @ x
    for l, (w, b) in enumerate(zip(ws, bs)):
        h = h @ w + b
        if l < len(ws) - 1:
            h = jax.nn.sigmoid(h)
    return h


def multi_ranking_forward_ref(params, features, m_uni_to_sub, m_sub_to_uni, ne, ns):
    cols = []
    for n in range(NUM_NETWORKS):
        f = features
        for i in range(NUM_LAYERS):
            ws, bs = params[n][i]["subset"]
            wu, bu = params[n][i]["universe"]
            sub = _gin_conv_ref(f, m_uni_to_sub, ws, bs)[ne:, :]
            uni = _gin_conv_ref(f, m_sub_to_uni, wu, bu)[:ne, :]
            f = jax.nn.sigmoid(jnp.concatenate([uni, sub], axis=0))
        cols.append(f[ne:, :].reshape(ns))
    return jnp.stack(cols, axis=1)


# ---------------------------------------------------------------------------
# Graph construction helpers
# ---------------------------------------------------------------------------
def edges_to_dense(edge_index, n):
    """edge_index: [2, E] int32, row0 = src, row1 = dst.  M[dst, src] += 1."""
    m = jnp.zeros((n, n), jnp.float32)
    return m.at[edge_index[1], edge_index[0]].add(1.0)


def build_bipartite_edges(num_elements, num_subsets):
    # element e belongs to subset s iff (e + 2*s) % 3 == 0  (deterministic pattern)
    src_uts, dst_uts = [], []   # uni_to_sub
    src_stu, dst_stu = [], []   # sub_to_uni
    for e in range(num_elements):
        for s in range(num_subsets):
            if (e + 2 * s) % 3 == 0:
                subset_node = num_elements + s
                src_uts.append(subset_node); dst_uts.append(e)
                src_stu.append(e); dst_stu.append(subset_node)
    uni_to_sub = jnp.array([src_uts, dst_uts], dtype=jnp.int32)
    sub_to_uni = jnp.array([src_stu, dst_stu], dtype=jnp.int32)
    return uni_to_sub, sub_to_uni


# ---------------------------------------------------------------------------
if __name__ == "__main__":
    key = jax.random.PRNGKey(0)
    key, k_feat, k_param = jax.random.split(key, 3)

    features = jax.random.normal(k_feat, (N_NODES, IN_CHANNELS), jnp.float32)
    uni_to_sub, sub_to_uni = build_bipartite_edges(NUM_ELEMENTS, NUM_SUBSETS)
    m_uts = edges_to_dense(uni_to_sub, N_NODES)
    m_stu = edges_to_dense(sub_to_uni, N_NODES)

    params = init_multi_ranking_params(k_param)
    w_stack, b_stack = pack_params(params)

    fwd = jax.jit(functools.partial(multi_ranking_forward, w_stack, b_stack))
    scores = fwd(features, m_uts, m_stu)
    jax.block_until_ready(scores)

    ref = multi_ranking_forward_ref(params, features, m_uts, m_stu,
                                    NUM_ELEMENTS, NUM_SUBSETS)
    assert scores.shape == (NUM_SUBSETS, NUM_NETWORKS), scores.shape
    # tolerance covers MXU accumulation-order / precision-mode differences only;
    # any packing or layer-sequencing bug would blow far past this.
    assert jnp.allclose(scores, ref, atol=2e-3, rtol=2e-3), (scores, ref)

    print("KERNEL_OK")
</pallas_src>

<mosaic_0001>
module attributes {stable_mosaic.version = 11 : i64} {
  func.func @multi_ranking_kernel(%arg0: memref<16x64xf32, #tpu.memory_space<vmem>>, %arg1: memref<8x16xf32, #tpu.memory_space<vmem>>, %arg2: memref<8x16xf32, #tpu.memory_space<vmem>>, %arg3: memref<24x64x64xf32, #tpu.memory_space<vmem>>, %arg4: memref<24x8x64xf32, #tpu.memory_space<vmem>>, %arg5: memref<8x64xf32, #tpu.memory_space<vmem>>) attributes {dimension_semantics = [], scalar_prefetch = 0 : i64, scratch_operands = 0 : i64, tpu.core_type = #tpu.core_type<tc>} {
    %0 = tpu.iota {dimensions = array<i32: 1>} : vector<8x64xi32>
    %c32_i32 = arith.constant 32 : i32
    %1 = vector.broadcast %c32_i32 : i32 to vector<8x64xi32>
    %2 = arith.cmpi slt, %0, %1 : vector<8x64xi32>
    %c0 = arith.constant 0 : index
    %c0_0 = arith.constant 0 : index
    %3 = vector.load %arg1[%c0, %c0_0] : memref<8x16xf32, #tpu.memory_space<vmem>>, vector<8x16xf32>
    %c0_1 = arith.constant 0 : index
    %c0_2 = arith.constant 0 : index
    %4 = vector.load %arg2[%c0_1, %c0_2] : memref<8x16xf32, #tpu.memory_space<vmem>>, vector<8x16xf32>
    %c0_3 = arith.constant 0 : index
    %c0_4 = arith.constant 0 : index
    %5 = vector.load %arg0[%c0_3, %c0_4] : memref<16x64xf32, #tpu.memory_space<vmem>>, vector<16x64xf32>
    %cst = arith.constant dense<0.000000e+00> : vector<8x64xf32>
    %6 = tpu.matmul %3, %5, %cst {dimension_numbers = #tpu.dot_dimension_numbers<[1], [0], [0], [1], [0, 0, 1, 1], [], []>} : vector<8x16xf32>, vector<16x64xf32>, vector<8x64xf32> -> vector<8x64xf32>
    %cst_5 = arith.constant dense<0.000000e+00> : vector<8x64xf32>
    %7 = tpu.matmul %4, %5, %cst_5 {dimension_numbers = #tpu.dot_dimension_numbers<[1], [0], [0], [1], [0, 0, 1, 1], [], []>} : vector<8x16xf32>, vector<16x64xf32>, vector<8x64xf32> -> vector<8x64xf32>
    %8 = arith.select %2, %6, %7 : vector<8x64xi1>, vector<8x64xf32>
    %c0_6 = arith.constant 0 : index
    %c0_7 = arith.constant 0 : index
    %c0_8 = arith.constant 0 : index
    %9 = vector.load %arg3[%c0_6, %c0_7, %c0_8] : memref<24x64x64xf32, #tpu.memory_space<vmem>>, vector<1x64x64xf32>
    %10 = vector.shape_cast %9 : vector<1x64x64xf32> to vector<64x64xf32>
    %cst_9 = arith.constant dense<0.000000e+00> : vector<8x64xf32>
    %11 = tpu.matmul %8, %10, %cst_9 {dimension_numbers = #tpu.dot_dimension_numbers<[1], [0], [0], [1], [0, 0, 1, 1], [], []>} : vector<8x64xf32>, vector<64x64xf32>, vector<8x64xf32> -> vector<8x64xf32>
    %c0_10 = arith.constant 0 : index
    %c0_11 = arith.constant 0 : index
    %c0_12 = arith.constant 0 : index
    %12 = vector.load %arg4[%c0_10, %c0_11, %c0_12] : memref<24x8x64xf32, #tpu.memory_space<vmem>>, vector<1x8x64xf32>
    %13 = vector.shape_cast %12 : vector<1x8x64xf32> to vector<8x64xf32>
    %14 = arith.addf %11, %13 : vector<8x64xf32>
    %cst_13 = arith.constant 5.000000e-01 : f32
    %15 = vector.broadcast %cst_13 : f32 to vector<8x64xf32>
    %16 = arith.mulf %15, %14 : vector<8x64xf32>
    %17 = math.tanh %16 : vector<8x64xf32>
    %cst_14 = arith.constant 5.000000e-01 : f32
    %18 = vector.broadcast %cst_14 : f32 to vector<8x64xf32>
    %19 = arith.mulf %18, %17 : vector<8x64xf32>
    %cst_15 = arith.constant 5.000000e-01 : f32
    %20 = vector.broadcast %cst_15 : f32 to vector<8x64xf32>
    %21 = arith.addf %19, %20 : vector<8x64xf32>
    %c1 = arith.constant 1 : index
    %c0_16 = arith.constant 0 : index
    %c0_17 = arith.constant 0 : index
    %22 = vector.load %arg3[%c1, %c0_16, %c0_17] : memref<24x64x64xf32, #tpu.memory_space<vmem>>, vector<1x64x64xf32>
    %23 = vector.shape_cast %22 : vector<1x64x64xf32> to vector<64x64xf32>
    %cst_18 = arith.constant dense<0.000000e+00> : vector<8x64xf32>
    %24 = tpu.matmul %21, %23, %cst_18 {dimension_numbers = #tpu.dot_dimension_numbers<[1], [0], [0], [1], [0, 0, 1, 1], [], []>} : vector<8x64xf32>, vector<64x64xf32>, vector<8x64xf32> -> vector<8x64xf32>
    %c1_19 = arith.constant 1 : index
    %c0_20 = arith.constant 0 : index
    %c0_21 = arith.constant 0 : index
    %25 = vector.load %arg4[%c1_19, %c0_20, %c0_21] : memref<24x8x64xf32, #tpu.memory_space<vmem>>, vector<1x8x64xf32>
    %26 = vector.shape_cast %25 : vector<1x8x64xf32> to vector<8x64xf32>
    %27 = arith.addf %24, %26 : vector<8x64xf32>
    %cst_22 = arith.constant 5.000000e-01 : f32
    %28 = vector.broadcast %cst_22 : f32 to vector<8x64xf32>
    %29 = arith.mulf %28, %27 : vector<8x64xf32>
    %30 = math.tanh %29 : vector<8x64xf32>
    %cst_23 = arith.constant 5.000000e-01 : f32
    %31 = vector.broadcast %cst_23 : f32 to vector<8x64xf32>
    %32 = arith.mulf %31, %30 : vector<8x64xf32>
    %cst_24 = arith.constant 5.000000e-01 : f32
    %33 = vector.broadcast %cst_24 : f32 to vector<8x64xf32>
    %34 = arith.addf %32, %33 : vector<8x64xf32>
    %c2 = arith.constant 2 : index
    %c0_25 = arith.constant 0 : index
    %c0_26 = arith.constant 0 : index
    %35 = vector.load %arg3[%c2, %c0_25, %c0_26] : memref<24x64x64xf32, #tpu.memory_space<vmem>>, vector<1x64x64xf32>
    %36 = vector.shape_cast %35 : vector<1x64x64xf32> to vector<64x64xf32>
    %cst_27 = arith.constant dense<0.000000e+00> : vector<8x64xf32>
    %37 = tpu.matmul %34, %36, %cst_27 {dimension_numbers = #tpu.dot_dimension_numbers<[1], [0], [0], [1], [0, 0, 1, 1], [], []>} : vector<8x64xf32>, vector<64x64xf32>, vector<8x64xf32> -> vector<8x64xf32>
    %c2_28 = arith.constant 2 : index
    %c0_29 = arith.constant 0 : index
    %c0_30 = arith.constant 0 : index
    %38 = vector.load %arg4[%c2_28, %c0_29, %c0_30] : memref<24x8x64xf32, #tpu.memory_space<vmem>>, vector<1x8x64xf32>
    %39 = vector.shape_cast %38 : vector<1x8x64xf32> to vector<8x64xf32>
    %40 = arith.addf %37, %39 : vector<8x64xf32>
    %cst_31 = arith.constant 5.000000e-01 : f32
    %41 = vector.broadcast %cst_31 : f32 to vector<8x64xf32>
    %42 = arith.mulf %41, %40 : vector<8x64xf32>
    %43 = math.tanh %42 : vector<8x64xf32>
    %cst_32 = arith.constant 5.000000e-01 : f32
    %44 = vector.broadcast %cst_32 : f32 to vector<8x64xf32>
    %45 = arith.mulf %44, %43 : vector<8x64xf32>
    %cst_33 = arith.constant 5.000000e-01 : f32
    %46 = vector.broadcast %cst_33 : f32 to vector<8x64xf32>
    %47 = arith.addf %45, %46 : vector<8x64xf32>
    %c3 = arith.constant 3 : index
    %c0_34 = arith.constant 0 : index
    %c0_35 = arith.constant 0 : index
    %48 = vector.load %arg3[%c3, %c0_34, %c0_35] : memref<24x64x64xf32, #tpu.memory_space<vmem>>, vector<1x64x64xf32>
    %49 = vector.shape_cast %48 : vector<1x64x64xf32> to vector<64x64xf32>
    %cst_36 = arith.constant dense<0.000000e+00> : vector<8x64xf32>
    %50 = tpu.matmul %47, %49, %cst_36 {dimension_numbers = #tpu.dot_dimension_numbers<[1], [0], [0], [1], [0, 0, 1, 1], [], []>} : vector<8x64xf32>, vector<64x64xf32>, vector<8x64xf32> -> vector<8x64xf32>
    %c3_37 = arith.constant 3 : index
    %c0_38 = arith.constant 0 : index
    %c0_39 = arith.constant 0 : index
    %51 = vector.load %arg4[%c3_37, %c0_38, %c0_39] : memref<24x8x64xf32, #tpu.memory_space<vmem>>, vector<1x8x64xf32>
    %52 = vector.shape_cast %51 : vector<1x8x64xf32> to vector<8x64xf32>
    %53 = arith.addf %50, %52 : vector<8x64xf32>
    %cst_40 = arith.constant 5.000000e-01 : f32
    %54 = vector.broadcast %cst_40 : f32 to vector<8x64xf32>
    %55 = arith.mulf %54, %53 : vector<8x64xf32>
    %56 = math.tanh %55 : vector<8x64xf32>
    %cst_41 = arith.constant 5.000000e-01 : f32
    %57 = vector.broadcast %cst_41 : f32 to vector<8x64xf32>
    %58 = arith.mulf %57, %56 : vector<8x64xf32>
    %cst_42 = arith.constant 5.000000e-01 : f32
    %59 = vector.broadcast %cst_42 : f32 to vector<8x64xf32>
    %60 = arith.addf %58, %59 : vector<8x64xf32>
    %c4 = arith.constant 4 : index
    %c0_43 = arith.constant 0 : index
    %c0_44 = arith.constant 0 : index
    %61 = vector.load %arg3[%c4, %c0_43, %c0_44] : memref<24x64x64xf32, #tpu.memory_space<vmem>>, vector<1x64x64xf32>
    %62 = vector.shape_cast %61 : vector<1x64x64xf32> to vector<64x64xf32>
    %cst_45 = arith.constant dense<0.000000e+00> : vector<8x64xf32>
    %63 = tpu.matmul %60, %62, %cst_45 {dimension_numbers = #tpu.dot_dimension_numbers<[1], [0], [0], [1], [0, 0, 1, 1], [], []>} : vector<8x64xf32>, vector<64x64xf32>, vector<8x64xf32> -> vector<8x64xf32>
    %c4_46 = arith.constant 4 : index
    %c0_47 = arith.constant 0 : index
    %c0_48 = arith.constant 0 : index
    %64 = vector.load %arg4[%c4_46, %c0_47, %c0_48] : memref<24x8x64xf32, #tpu.memory_space<vmem>>, vector<1x8x64xf32>
    %65 = vector.shape_cast %64 : vector<1x8x64xf32> to vector<8x64xf32>
    %66 = arith.addf %63, %65 : vector<8x64xf32>
    %cst_49 = arith.constant 5.000000e-01 : f32
    %67 = vector.broadcast %cst_49 : f32 to vector<8x64xf32>
    %68 = arith.mulf %67, %66 : vector<8x64xf32>
    %69 = math.tanh %68 : vector<8x64xf32>
    %cst_50 = arith.constant 5.000000e-01 : f32
    %70 = vector.broadcast %cst_50 : f32 to vector<8x64xf32>
    %71 = arith.mulf %70, %69 : vector<8x64xf32>
    %cst_51 = arith.constant 5.000000e-01 : f32
    %72 = vector.broadcast %cst_51 : f32 to vector<8x64xf32>
    %73 = arith.addf %71, %72 : vector<8x64xf32>
    %c5 = arith.constant 5 : index
    %c0_52 = arith.constant 0 : index
    %c0_53 = arith.constant 0 : index
    %74 = vector.load %arg3[%c5, %c0_52, %c0_53] : memref<24x64x64xf32, #tpu.memory_space<vmem>>, vector<1x64x64xf32>
    %75 = vector.shape_cast %74 : vector<1x64x64xf32> to vector<64x64xf32>
    %cst_54 = arith.constant dense<0.000000e+00> : vector<8x64xf32>
    %76 = tpu.matmul %73, %75, %cst_54 {dimension_numbers = #tpu.dot_dimension_numbers<[1], [0], [0], [1], [0, 0, 1, 1], [], []>} : vector<8x64xf32>, vector<64x64xf32>, vector<8x64xf32> -> vector<8x64xf32>
    %c5_55 = arith.constant 5 : index
    %c0_56 = arith.constant 0 : index
    %c0_57 = arith.constant 0 : index
    %77 = vector.load %arg4[%c5_55, %c0_56, %c0_57] : memref<24x8x64xf32, #tpu.memory_space<vmem>>, vector<1x8x64xf32>
    %78 = vector.shape_cast %77 : vector<1x8x64xf32> to vector<8x64xf32>
    %79 = arith.addf %76, %78 : vector<8x64xf32>
    %cst_58 = arith.constant 5.000000e-01 : f32
    %80 = vector.broadcast %cst_58 : f32 to vector<8x64xf32>
    %81 = arith.mulf %80, %79 : vector<8x64xf32>
    %82 = math.tanh %81 : vector<8x64xf32>
    %cst_59 = arith.constant 5.000000e-01 : f32
    %83 = vector.broadcast %cst_59 : f32 to vector<8x64xf32>
    %84 = arith.mulf %83, %82 : vector<8x64xf32>
    %cst_60 = arith.constant 5.000000e-01 : f32
    %85 = vector.broadcast %cst_60 : f32 to vector<8x64xf32>
    %86 = arith.addf %84, %85 : vector<8x64xf32>
    %c6 = arith.constant 6 : index
    %c0_61 = arith.constant 0 : index
    %c0_62 = arith.constant 0 : index
    %87 = vector.load %arg3[%c6, %c0_61, %c0_62] : memref<24x64x64xf32, #tpu.memory_space<vmem>>, vector<1x64x64xf32>
    %88 = vector.shape_cast %87 : vector<1x64x64xf32> to vector<64x64xf32>
    %cst_63 = arith.constant dense<0.000000e+00> : vector<8x64xf32>
    %89 = tpu.matmul %86, %88, %cst_63 {dimension_numbers = #tpu.dot_dimension_numbers<[1], [0], [0], [1], [0, 0, 1, 1], [], []>} : vector<8x64xf32>, vector<64x64xf32>, vector<8x64xf32> -> vector<8x64xf32>
    %c6_64 = arith.constant 6 : index
    %c0_65 = arith.constant 0 : index
    %c0_66 = arith.constant 0 : index
    %90 = vector.load %arg4[%c6_64, %c0_65, %c0_66] : memref<24x8x64xf32, #tpu.memory_space<vmem>>, vector<1x8x64xf32>
    %91 = vector.shape_cast %90 : vector<1x8x64xf32> to vector<8x64xf32>
    %92 = arith.addf %89, %91 : vector<8x64xf32>
    %cst_67 = arith.constant 5.000000e-01 : f32
    %93 = vector.broadcast %cst_67 : f32 to vector<8x64xf32>
    %94 = arith.mulf %93, %92 : vector<8x64xf32>
    %95 = math.tanh %94 : vector<8x64xf32>
    %cst_68 = arith.constant 5.000000e-01 : f32
    %96 = vector.broadcast %cst_68 : f32 to vector<8x64xf32>
    %97 = arith.mulf %96, %95 : vector<8x64xf32>
    %cst_69 = arith.constant 5.000000e-01 : f32
    %98 = vector.broadcast %cst_69 : f32 to vector<8x64xf32>
    %99 = arith.addf %97, %98 : vector<8x64xf32>
    %c7 = arith.constant 7 : index
    %c0_70 = arith.constant 0 : index
    %c0_71 = arith.constant 0 : index
    %100 = vector.load %arg3[%c7, %c0_70, %c0_71] : memref<24x64x64xf32, #tpu.memory_space<vmem>>, vector<1x64x64xf32>
    %101 = vector.shape_cast %100 : vector<1x64x64xf32> to vector<64x64xf32>
    %cst_72 = arith.constant dense<0.000000e+00> : vector<8x64xf32>
    %102 = tpu.matmul %99, %101, %cst_72 {dimension_numbers = #tpu.dot_dimension_numbers<[1], [0], [0], [1], [0, 0, 1, 1], [], []>} : vector<8x64xf32>, vector<64x64xf32>, vector<8x64xf32> -> vector<8x64xf32>
    %c7_73 = arith.constant 7 : index
    %c0_74 = arith.constant 0 : index
    %c0_75 = arith.constant 0 : index
    %103 = vector.load %arg4[%c7_73, %c0_74, %c0_75] : memref<24x8x64xf32, #tpu.memory_space<vmem>>, vector<1x8x64xf32>
    %104 = vector.shape_cast %103 : vector<1x8x64xf32> to vector<8x64xf32>
    %105 = arith.addf %102, %104 : vector<8x64xf32>
    %cst_76 = arith.constant 5.000000e-01 : f32
    %106 = vector.broadcast %cst_76 : f32 to vector<8x64xf32>
    %107 = arith.mulf %106, %105 : vector<8x64xf32>
    %108 = math.tanh %107 : vector<8x64xf32>
    %cst_77 = arith.constant 5.000000e-01 : f32
    %109 = vector.broadcast %cst_77 : f32 to vector<8x64xf32>
    %110 = arith.mulf %109, %108 : vector<8x64xf32>
    %cst_78 = arith.constant 5.000000e-01 : f32
    %111 = vector.broadcast %cst_78 : f32 to vector<8x64xf32>
    %112 = arith.addf %110, %111 : vector<8x64xf32>
    %c8 = arith.constant 8 : index
    %c0_79 = arith.constant 0 : index
    %c0_80 = arith.constant 0 : index
    %113 = vector.load %arg3[%c8, %c0_79, %c0_80] : memref<24x64x64xf32, #tpu.memory_space<vmem>>, vector<1x64x64xf32>
    %114 = vector.shape_cast %113 : vector<1x64x64xf32> to vector<64x64xf32>
    %cst_81 = arith.constant dense<0.000000e+00> : vector<8x64xf32>
    %115 = tpu.matmul %112, %114, %cst_81 {dimension_numbers = #tpu.dot_dimension_numbers<[1], [0], [0], [1], [0, 0, 1, 1], [], []>} : vector<8x64xf32>, vector<64x64xf32>, vector<8x64xf32> -> vector<8x64xf32>
    %c8_82 = arith.constant 8 : index
    %c0_83 = arith.constant 0 : index
    %c0_84 = arith.constant 0 : index
    %116 = vector.load %arg4[%c8_82, %c0_83, %c0_84] : memref<24x8x64xf32, #tpu.memory_space<vmem>>, vector<1x8x64xf32>
    %117 = vector.shape_cast %116 : vector<1x8x64xf32> to vector<8x64xf32>
    %118 = arith.addf %115, %117 : vector<8x64xf32>
    %cst_85 = arith.constant 5.000000e-01 : f32
    %119 = vector.broadcast %cst_85 : f32 to vector<8x64xf32>
    %120 = arith.mulf %119, %118 : vector<8x64xf32>
    %121 = math.tanh %120 : vector<8x64xf32>
    %cst_86 = arith.constant 5.000000e-01 : f32
    %122 = vector.broadcast %cst_86 : f32 to vector<8x64xf32>
    %123 = arith.mulf %122, %121 : vector<8x64xf32>
    %cst_87 = arith.constant 5.000000e-01 : f32
    %124 = vector.broadcast %cst_87 : f32 to vector<8x64xf32>
    %125 = arith.addf %123, %124 : vector<8x64xf32>
    %c9 = arith.constant 9 : index
    %c0_88 = arith.constant 0 : index
    %c0_89 = arith.constant 0 : index
    %126 = vector.load %arg3[%c9, %c0_88, %c0_89] : memref<24x64x64xf32, #tpu.memory_space<vmem>>, vector<1x64x64xf32>
    %127 = vector.shape_cast %126 : vector<1x64x64xf32> to vector<64x64xf32>
    %cst_90 = arith.constant dense<0.000000e+00> : vector<8x64xf32>
    %128 = tpu.matmul %125, %127, %cst_90 {dimension_numbers = #tpu.dot_dimension_numbers<[1], [0], [0], [1], [0, 0, 1, 1], [], []>} : vector<8x64xf32>, vector<64x64xf32>, vector<8x64xf32> -> vector<8x64xf32>
    %c9_91 = arith.constant 9 : index
    %c0_92 = arith.constant 0 : index
    %c0_93 = arith.constant 0 : index
    %129 = vector.load %arg4[%c9_91, %c0_92, %c0_93] : memref<24x8x64xf32, #tpu.memory_space<vmem>>, vector<1x8x64xf32>
    %130 = vector.shape_cast %129 : vector<1x8x64xf32> to vector<8x64xf32>
    %131 = arith.addf %128, %130 : vector<8x64xf32>
    %cst_94 = arith.constant 5.000000e-01 : f32
    %132 = vector.broadcast %cst_94 : f32 to vector<8x64xf32>
    %133 = arith.mulf %132, %131 : vector<8x64xf32>
    %134 = math.tanh %133 : vector<8x64xf32>
    %cst_95 = arith.constant 5.000000e-01 : f32
    %135 = vector.broadcast %cst_95 : f32 to vector<8x64xf32>
    %136 = arith.mulf %135, %134 : vector<8x64xf32>
    %cst_96 = arith.constant 5.000000e-01 : f32
    %137 = vector.broadcast %cst_96 : f32 to vector<8x64xf32>
    %138 = arith.addf %136, %137 : vector<8x64xf32>
    %c10 = arith.constant 10 : index
    %c0_97 = arith.constant 0 : index
    %c0_98 = arith.constant 0 : index
    %139 = vector.load %arg3[%c10, %c0_97, %c0_98] : memref<24x64x64xf32, #tpu.memory_space<vmem>>, vector<1x64x64xf32>
    %140 = vector.shape_cast %139 : vector<1x64x64xf32> to vector<64x64xf32>
    %cst_99 = arith.constant dense<0.000000e+00> : vector<8x64xf32>
    %141 = tpu.matmul %138, %140, %cst_99 {dimension_numbers = #tpu.dot_dimension_numbers<[1], [0], [0], [1], [0, 0, 1, 1], [], []>} : vector<8x64xf32>, vector<64x64xf32>, vector<8x64xf32> -> vector<8x64xf32>
    %c10_100 = arith.constant 10 : index
    %c0_101 = arith.constant 0 : index
    %c0_102 = arith.constant 0 : index
    %142 = vector.load %arg4[%c10_100, %c0_101, %c0_102] : memref<24x8x64xf32, #tpu.memory_space<vmem>>, vector<1x8x64xf32>
    %143 = vector.shape_cast %142 : vector<1x8x64xf32> to vector<8x64xf32>
    %144 = arith.addf %141, %143 : vector<8x64xf32>
    %cst_103 = arith.constant 5.000000e-01 : f32
    %145 = vector.broadcast %cst_103 : f32 to vector<8x64xf32>
    %146 = arith.mulf %145, %144 : vector<8x64xf32>
    %147 = math.tanh %146 : vector<8x64xf32>
    %cst_104 = arith.constant 5.000000e-01 : f32
    %148 = vector.broadcast %cst_104 : f32 to vector<8x64xf32>
    %149 = arith.mulf %148, %147 : vector<8x64xf32>
    %cst_105 = arith.constant 5.000000e-01 : f32
    %150 = vector.broadcast %cst_105 : f32 to vector<8x64xf32>
    %151 = arith.addf %149, %150 : vector<8x64xf32>
    %c11 = arith.constant 11 : index
    %c0_106 = arith.constant 0 : index
    %c0_107 = arith.constant 0 : index
    %152 = vector.load %arg3[%c11, %c0_106, %c0_107] : memref<24x64x64xf32, #tpu.memory_space<vmem>>, vector<1x64x64xf32>
    %153 = vector.shape_cast %152 : vector<1x64x64xf32> to vector<64x64xf32>
    %cst_108 = arith.constant dense<0.000000e+00> : vector<8x64xf32>
    %154 = tpu.matmul %151, %153, %cst_108 {dimension_numbers = #tpu.dot_dimension_numbers<[1], [0], [0], [1], [0, 0, 1, 1], [], []>} : vector<8x64xf32>, vector<64x64xf32>, vector<8x64xf32> -> vector<8x64xf32>
    %c11_109 = arith.constant 11 : index
    %c0_110 = arith.constant 0 : index
    %c0_111 = arith.constant 0 : index
    %155 = vector.load %arg4[%c11_109, %c0_110, %c0_111] : memref<24x8x64xf32, #tpu.memory_space<vmem>>, vector<1x8x64xf32>
    %156 = vector.shape_cast %155 : vector<1x8x64xf32> to vector<8x64xf32>
    %157 = arith.addf %154, %156 : vector<8x64xf32>
    %cst_112 = arith.constant 5.000000e-01 : f32
    %158 = vector.broadcast %cst_112 : f32 to vector<8x64xf32>
    %159 = arith.mulf %158, %157 : vector<8x64xf32>
    %160 = math.tanh %159 : vector<8x64xf32>
    %cst_113 = arith.constant 5.000000e-01 : f32
    %161 = vector.broadcast %cst_113 : f32 to vector<8x64xf32>
    %162 = arith.mulf %161, %160 : vector<8x64xf32>
    %cst_114 = arith.constant 5.000000e-01 : f32
    %163 = vector.broadcast %cst_114 : f32 to vector<8x64xf32>
    %164 = arith.addf %162, %163 : vector<8x64xf32>
    %c32_i32_115 = arith.constant 32 : i32
    %165 = tpu.dynamic_rotate %164 by %c32_i32_115 dim 1 : vector<8x64xf32>, i32 -> vector<8x64xf32>
    %166 = arith.select %2, %164, %165 : vector<8x64xi1>, vector<8x64xf32>
    %167 = arith.select %2, %165, %164 : vector<8x64xi1>, vector<8x64xf32>
    %168 = tpu.concatenate %166, %167 in 0 : vector<8x64xf32>, vector<8x64xf32> -> vector<16x64xf32>
    %cst_116 = arith.constant dense<0.000000e+00> : vector<8x64xf32>
    %169 = tpu.matmul %3, %168, %cst_116 {dimension_numbers = #tpu.dot_dimension_numbers<[1], [0], [0], [1], [0, 0, 1, 1], [], []>} : vector<8x16xf32>, vector<16x64xf32>, vector<8x64xf32> -> vector<8x64xf32>
    %cst_117 = arith.constant dense<0.000000e+00> : vector<8x64xf32>
    %170 = tpu.matmul %4, %168, %cst_117 {dimension_numbers = #tpu.dot_dimension_numbers<[1], [0], [0], [1], [0, 0, 1, 1], [], []>} : vector<8x16xf32>, vector<16x64xf32>, vector<8x64xf32> -> vector<8x64xf32>
    %171 = arith.select %2, %169, %170 : vector<8x64xi1>, vector<8x64xf32>
    %c12 = arith.constant 12 : index
    %c0_118 = arith.constant 0 : index
    %c0_119 = arith.constant 0 : index
    %172 = vector.load %arg3[%c12, %c0_118, %c0_119] : memref<24x64x64xf32, #tpu.memory_space<vmem>>, vector<1x64x64xf32>
    %173 = vector.shape_cast %172 : vector<1x64x64xf32> to vector<64x64xf32>
    %cst_120 = arith.constant dense<0.000000e+00> : vector<8x64xf32>
    %174 = tpu.matmul %171, %173, %cst_120 {dimension_numbers = #tpu.dot_dimension_numbers<[1], [0], [0], [1], [0, 0, 1, 1], [], []>} : vector<8x64xf32>, vector<64x64xf32>, vector<8x64xf32> -> vector<8x64xf32>
    %c12_121 = arith.constant 12 : index
    %c0_122 = arith.constant 0 : index
    %c0_123 = arith.constant 0 : index
    %175 = vector.load %arg4[%c12_121, %c0_122, %c0_123] : memref<24x8x64xf32, #tpu.memory_space<vmem>>, vector<1x8x64xf32>
    %176 = vector.shape_cast %175 : vector<1x8x64xf32> to vector<8x64xf32>
    %177 = arith.addf %174, %176 : vector<8x64xf32>
    %cst_124 = arith.constant 5.000000e-01 : f32
    %178 = vector.broadcast %cst_124 : f32 to vector<8x64xf32>
    %179 = arith.mulf %178, %177 : vector<8x64xf32>
    %180 = math.tanh %179 : vector<8x64xf32>
    %cst_125 = arith.constant 5.000000e-01 : f32
    %181 = vector.broadcast %cst_125 : f32 to vector<8x64xf32>
    %182 = arith.mulf %181, %180 : vector<8x64xf32>
    %cst_126 = arith.constant 5.000000e-01 : f32
    %183 = vector.broadcast %cst_126 : f32 to vector<8x64xf32>
    %184 = arith.addf %182, %183 : vector<8x64xf32>
    %c13 = arith.constant 13 : index
    %c0_127 = arith.constant 0 : index
    %c0_128 = arith.constant 0 : index
    %185 = vector.load %arg3[%c13, %c0_127, %c0_128] : memref<24x64x64xf32, #tpu.memory_space<vmem>>, vector<1x64x64xf32>
    %186 = vector.shape_cast %185 : vector<1x64x64xf32> to vector<64x64xf32>
    %cst_129 = arith.constant dense<0.000000e+00> : vector<8x64xf32>
    %187 = tpu.matmul %184, %186, %cst_129 {dimension_numbers = #tpu.dot_dimension_numbers<[1], [0], [0], [1], [0, 0, 1, 1], [], []>} : vector<8x64xf32>, vector<64x64xf32>, vector<8x64xf32> -> vector<8x64xf32>
    %c13_130 = arith.constant 13 : index
    %c0_131 = arith.constant 0 : index
    %c0_132 = arith.constant 0 : index
    %188 = vector.load %arg4[%c13_130, %c0_131, %c0_132] : memref<24x8x64xf32, #tpu.memory_space<vmem>>, vector<1x8x64xf32>
    %189 = vector.shape_cast %188 : vector<1x8x64xf32> to vector<8x64xf32>
    %190 = arith.addf %187, %189 : vector<8x64xf32>
    %cst_133 = arith.constant 5.000000e-01 : f32
    %191 = vector.broadcast %cst_133 : f32 to vector<8x64xf32>
    %192 = arith.mulf %191, %190 : vector<8x64xf32>
    %193 = math.tanh %192 : vector<8x64xf32>
    %cst_134 = arith.constant 5.000000e-01 : f32
    %194 = vector.broadcast %cst_134 : f32 to vector<8x64xf32>
    %195 = arith.mulf %194, %193 : vector<8x64xf32>
    %cst_135 = arith.constant 5.000000e-01 : f32
    %196 = vector.broadcast %cst_135 : f32 to vector<8x64xf32>
    %197 = arith.addf %195, %196 : vector<8x64xf32>
    %c14 = arith.constant 14 : index
    %c0_136 = arith.constant 0 : index
    %c0_137 = arith.constant 0 : index
    %198 = vector.load %arg3[%c14, %c0_136, %c0_137] : memref<24x64x64xf32, #tpu.memory_space<vmem>>, vector<1x64x64xf32>
    %199 = vector.shape_cast %198 : vector<1x64x64xf32> to vector<64x64xf32>
    %cst_138 = arith.constant dense<0.000000e+00> : vector<8x64xf32>
    %200 = tpu.matmul %197, %199, %cst_138 {dimension_numbers = #tpu.dot_dimension_numbers<[1], [0], [0], [1], [0, 0, 1, 1], [], []>} : vector<8x64xf32>, vector<64x64xf32>, vector<8x64xf32> -> vector<8x64xf32>
    %c14_139 = arith.constant 14 : index
    %c0_140 = arith.constant 0 : index
    %c0_141 = arith.constant 0 : index
    %201 = vector.load %arg4[%c14_139, %c0_140, %c0_141] : memref<24x8x64xf32, #tpu.memory_space<vmem>>, vector<1x8x64xf32>
    %202 = vector.shape_cast %201 : vector<1x8x64xf32> to vector<8x64xf32>
    %203 = arith.addf %200, %202 : vector<8x64xf32>
    %cst_142 = arith.constant 5.000000e-01 : f32
    %204 = vector.broadcast %cst_142 : f32 to vector<8x64xf32>
    %205 = arith.mulf %204, %203 : vector<8x64xf32>
    %206 = math.tanh %205 : vector<8x64xf32>
    %cst_143 = arith.constant 5.000000e-01 : f32
    %207 = vector.broadcast %cst_143 : f32 to vector<8x64xf32>
    %208 = arith.mulf %207, %206 : vector<8x64xf32>
    %cst_144 = arith.constant 5.000000e-01 : f32
    %209 = vector.broadcast %cst_144 : f32 to vector<8x64xf32>
    %210 = arith.addf %208, %209 : vector<8x64xf32>
    %c15 = arith.constant 15 : index
    %c0_145 = arith.constant 0 : index
    %c0_146 = arith.constant 0 : index
    %211 = vector.load %arg3[%c15, %c0_145, %c0_146] : memref<24x64x64xf32, #tpu.memory_space<vmem>>, vector<1x64x64xf32>
    %212 = vector.shape_cast %211 : vector<1x64x64xf32> to vector<64x64xf32>
    %cst_147 = arith.constant dense<0.000000e+00> : vector<8x64xf32>
    %213 = tpu.matmul %210, %212, %cst_147 {dimension_numbers = #tpu.dot_dimension_numbers<[1], [0], [0], [1], [0, 0, 1, 1], [], []>} : vector<8x64xf32>, vector<64x64xf32>, vector<8x64xf32> -> vector<8x64xf32>
    %c15_148 = arith.constant 15 : index
    %c0_149 = arith.constant 0 : index
    %c0_150 = arith.constant 0 : index
    %214 = vector.load %arg4[%c15_148, %c0_149, %c0_150] : memref<24x8x64xf32, #tpu.memory_space<vmem>>, vector<1x8x64xf32>
    %215 = vector.shape_cast %214 : vector<1x8x64xf32> to vector<8x64xf32>
    %216 = arith.addf %213, %215 : vector<8x64xf32>
    %cst_151 = arith.constant 5.000000e-01 : f32
    %217 = vector.broadcast %cst_151 : f32 to vector<8x64xf32>
    %218 = arith.mulf %217, %216 : vector<8x64xf32>
    %219 = math.tanh %218 : vector<8x64xf32>
    %cst_152 = arith.constant 5.000000e-01 : f32
    %220 = vector.broadcast %cst_152 : f32 to vector<8x64xf32>
    %221 = arith.mulf %220, %219 : vector<8x64xf32>
    %cst_153 = arith.constant 5.000000e-01 : f32
    %222 = vector.broadcast %cst_153 : f32 to vector<8x64xf32>
    %223 = arith.addf %221, %222 : vector<8x64xf32>
    %c16 = arith.constant 16 : index
    %c0_154 = arith.constant 0 : index
    %c0_155 = arith.constant 0 : index
    %224 = vector.load %arg3[%c16, %c0_154, %c0_155] : memref<24x64x64xf32, #tpu.memory_space<vmem>>, vector<1x64x64xf32>
    %225 = vector.shape_cast %224 : vector<1x64x64xf32> to vector<64x64xf32>
    %cst_156 = arith.constant dense<0.000000e+00> : vector<8x64xf32>
    %226 = tpu.matmul %223, %225, %cst_156 {dimension_numbers = #tpu.dot_dimension_numbers<[1], [0], [0], [1], [0, 0, 1, 1], [], []>} : vector<8x64xf32>, vector<64x64xf32>, vector<8x64xf32> -> vector<8x64xf32>
    %c16_157 = arith.constant 16 : index
    %c0_158 = arith.constant 0 : index
    %c0_159 = arith.constant 0 : index
    %227 = vector.load %arg4[%c16_157, %c0_158, %c0_159] : memref<24x8x64xf32, #tpu.memory_space<vmem>>, vector<1x8x64xf32>
    %228 = vector.shape_cast %227 : vector<1x8x64xf32> to vector<8x64xf32>
    %229 = arith.addf %226, %228 : vector<8x64xf32>
    %cst_160 = arith.constant 5.000000e-01 : f32
    %230 = vector.broadcast %cst_160 : f32 to vector<8x64xf32>
    %231 = arith.mulf %230, %229 : vector<8x64xf32>
    %232 = math.tanh %231 : vector<8x64xf32>
    %cst_161 = arith.constant 5.000000e-01 : f32
    %233 = vector.broadcast %cst_161 : f32 to vector<8x64xf32>
    %234 = arith.mulf %233, %232 : vector<8x64xf32>
    %cst_162 = arith.constant 5.000000e-01 : f32
    %235 = vector.broadcast %cst_162 : f32 to vector<8x64xf32>
    %236 = arith.addf %234, %235 : vector<8x64xf32>
    %c17 = arith.constant 17 : index
    %c0_163 = arith.constant 0 : index
    %c0_164 = arith.constant 0 : index
    %237 = vector.load %arg3[%c17, %c0_163, %c0_164] : memref<24x64x64xf32, #tpu.memory_space<vmem>>, vector<1x64x64xf32>
    %238 = vector.shape_cast %237 : vector<1x64x64xf32> to vector<64x64xf32>
    %cst_165 = arith.constant dense<0.000000e+00> : vector<8x64xf32>
    %239 = tpu.matmul %236, %238, %cst_165 {dimension_numbers = #tpu.dot_dimension_numbers<[1], [0], [0], [1], [0, 0, 1, 1], [], []>} : vector<8x64xf32>, vector<64x64xf32>, vector<8x64xf32> -> vector<8x64xf32>
    %c17_166 = arith.constant 17 : index
    %c0_167 = arith.constant 0 : index
    %c0_168 = arith.constant 0 : index
    %240 = vector.load %arg4[%c17_166, %c0_167, %c0_168] : memref<24x8x64xf32, #tpu.memory_space<vmem>>, vector<1x8x64xf32>
    %241 = vector.shape_cast %240 : vector<1x8x64xf32> to vector<8x64xf32>
    %242 = arith.addf %239, %241 : vector<8x64xf32>
    %cst_169 = arith.constant 5.000000e-01 : f32
    %243 = vector.broadcast %cst_169 : f32 to vector<8x64xf32>
    %244 = arith.mulf %243, %242 : vector<8x64xf32>
    %245 = math.tanh %244 : vector<8x64xf32>
    %cst_170 = arith.constant 5.000000e-01 : f32
    %246 = vector.broadcast %cst_170 : f32 to vector<8x64xf32>
    %247 = arith.mulf %246, %245 : vector<8x64xf32>
    %cst_171 = arith.constant 5.000000e-01 : f32
    %248 = vector.broadcast %cst_171 : f32 to vector<8x64xf32>
    %249 = arith.addf %247, %248 : vector<8x64xf32>
    %c18 = arith.constant 18 : index
    %c0_172 = arith.constant 0 : index
    %c0_173 = arith.constant 0 : index
    %250 = vector.load %arg3[%c18, %c0_172, %c0_173] : memref<24x64x64xf32, #tpu.memory_space<vmem>>, vector<1x64x64xf32>
    %251 = vector.shape_cast %250 : vector<1x64x64xf32> to vector<64x64xf32>
    %cst_174 = arith.constant dense<0.000000e+00> : vector<8x64xf32>
    %252 = tpu.matmul %249, %251, %cst_174 {dimension_numbers = #tpu.dot_dimension_numbers<[1], [0], [0], [1], [0, 0, 1, 1], [], []>} : vector<8x64xf32>, vector<64x64xf32>, vector<8x64xf32> -> vector<8x64xf32>
    %c18_175 = arith.constant 18 : index
    %c0_176 = arith.constant 0 : index
    %c0_177 = arith.constant 0 : index
    %253 = vector.load %arg4[%c18_175, %c0_176, %c0_177] : memref<24x8x64xf32, #tpu.memory_space<vmem>>, vector<1x8x64xf32>
    %254 = vector.shape_cast %253 : vector<1x8x64xf32> to vector<8x64xf32>
    %255 = arith.addf %252, %254 : vector<8x64xf32>
    %cst_178 = arith.constant 5.000000e-01 : f32
    %256 = vector.broadcast %cst_178 : f32 to vector<8x64xf32>
    %257 = arith.mulf %256, %255 : vector<8x64xf32>
    %258 = math.tanh %257 : vector<8x64xf32>
    %cst_179 = arith.constant 5.000000e-01 : f32
    %259 = vector.broadcast %cst_179 : f32 to vector<8x64xf32>
    %260 = arith.mulf %259, %258 : vector<8x64xf32>
    %cst_180 = arith.constant 5.000000e-01 : f32
    %261 = vector.broadcast %cst_180 : f32 to vector<8x64xf32>
    %262 = arith.addf %260, %261 : vector<8x64xf32>
    %c19 = arith.constant 19 : index
    %c0_181 = arith.constant 0 : index
    %c0_182 = arith.constant 0 : index
    %263 = vector.load %arg3[%c19, %c0_181, %c0_182] : memref<24x64x64xf32, #tpu.memory_space<vmem>>, vector<1x64x64xf32>
    %264 = vector.shape_cast %263 : vector<1x64x64xf32> to vector<64x64xf32>
    %cst_183 = arith.constant dense<0.000000e+00> : vector<8x64xf32>
    %265 = tpu.matmul %262, %264, %cst_183 {dimension_numbers = #tpu.dot_dimension_numbers<[1], [0], [0], [1], [0, 0, 1, 1], [], []>} : vector<8x64xf32>, vector<64x64xf32>, vector<8x64xf32> -> vector<8x64xf32>
    %c19_184 = arith.constant 19 : index
    %c0_185 = arith.constant 0 : index
    %c0_186 = arith.constant 0 : index
    %266 = vector.load %arg4[%c19_184, %c0_185, %c0_186] : memref<24x8x64xf32, #tpu.memory_space<vmem>>, vector<1x8x64xf32>
    %267 = vector.shape_cast %266 : vector<1x8x64xf32> to vector<8x64xf32>
    %268 = arith.addf %265, %267 : vector<8x64xf32>
    %cst_187 = arith.constant 5.000000e-01 : f32
    %269 = vector.broadcast %cst_187 : f32 to vector<8x64xf32>
    %270 = arith.mulf %269, %268 : vector<8x64xf32>
    %271 = math.tanh %270 : vector<8x64xf32>
    %cst_188 = arith.constant 5.000000e-01 : f32
    %272 = vector.broadcast %cst_188 : f32 to vector<8x64xf32>
    %273 = arith.mulf %272, %271 : vector<8x64xf32>
    %cst_189 = arith.constant 5.000000e-01 : f32
    %274 = vector.broadcast %cst_189 : f32 to vector<8x64xf32>
    %275 = arith.addf %273, %274 : vector<8x64xf32>
    %c20 = arith.constant 20 : index
    %c0_190 = arith.constant 0 : index
    %c0_191 = arith.constant 0 : index
    %276 = vector.load %arg3[%c20, %c0_190, %c0_191] : memref<24x64x64xf32, #tpu.memory_space<vmem>>, vector<1x64x64xf32>
    %277 = vector.shape_cast %276 : vector<1x64x64xf32> to vector<64x64xf32>
    %cst_192 = arith.constant dense<0.000000e+00> : vector<8x64xf32>
    %278 = tpu.matmul %275, %277, %cst_192 {dimension_numbers = #tpu.dot_dimension_numbers<[1], [0], [0], [1], [0, 0, 1, 1], [], []>} : vector<8x64xf32>, vector<64x64xf32>, vector<8x64xf32> -> vector<8x64xf32>
    %c20_193 = arith.constant 20 : index
    %c0_194 = arith.constant 0 : index
    %c0_195 = arith.constant 0 : index
    %279 = vector.load %arg4[%c20_193, %c0_194, %c0_195] : memref<24x8x64xf32, #tpu.memory_space<vmem>>, vector<1x8x64xf32>
    %280 = vector.shape_cast %279 : vector<1x8x64xf32> to vector<8x64xf32>
    %281 = arith.addf %278, %280 : vector<8x64xf32>
    %cst_196 = arith.constant 5.000000e-01 : f32
    %282 = vector.broadcast %cst_196 : f32 to vector<8x64xf32>
    %283 = arith.mulf %282, %281 : vector<8x64xf32>
    %284 = math.tanh %283 : vector<8x64xf32>
    %cst_197 = arith.constant 5.000000e-01 : f32
    %285 = vector.broadcast %cst_197 : f32 to vector<8x64xf32>
    %286 = arith.mulf %285, %284 : vector<8x64xf32>
    %cst_198 = arith.constant 5.000000e-01 : f32
    %287 = vector.broadcast %cst_198 : f32 to vector<8x64xf32>
    %288 = arith.addf %286, %287 : vector<8x64xf32>
    %c21 = arith.constant 21 : index
    %c0_199 = arith.constant 0 : index
    %c0_200 = arith.constant 0 : index
    %289 = vector.load %arg3[%c21, %c0_199, %c0_200] : memref<24x64x64xf32, #tpu.memory_space<vmem>>, vector<1x64x64xf32>
    %290 = vector.shape_cast %289 : vector<1x64x64xf32> to vector<64x64xf32>
    %cst_201 = arith.constant dense<0.000000e+00> : vector<8x64xf32>
    %291 = tpu.matmul %288, %290, %cst_201 {dimension_numbers = #tpu.dot_dimension_numbers<[1], [0], [0], [1], [0, 0, 1, 1], [], []>} : vector<8x64xf32>, vector<64x64xf32>, vector<8x64xf32> -> vector<8x64xf32>
    %c21_202 = arith.constant 21 : index
    %c0_203 = arith.constant 0 : index
    %c0_204 = arith.constant 0 : index
    %292 = vector.load %arg4[%c21_202, %c0_203, %c0_204] : memref<24x8x64xf32, #tpu.memory_space<vmem>>, vector<1x8x64xf32>
    %293 = vector.shape_cast %292 : vector<1x8x64xf32> to vector<8x64xf32>
    %294 = arith.addf %291, %293 : vector<8x64xf32>
    %cst_205 = arith.constant 5.000000e-01 : f32
    %295 = vector.broadcast %cst_205 : f32 to vector<8x64xf32>
    %296 = arith.mulf %295, %294 : vector<8x64xf32>
    %297 = math.tanh %296 : vector<8x64xf32>
    %cst_206 = arith.constant 5.000000e-01 : f32
    %298 = vector.broadcast %cst_206 : f32 to vector<8x64xf32>
    %299 = arith.mulf %298, %297 : vector<8x64xf32>
    %cst_207 = arith.constant 5.000000e-01 : f32
    %300 = vector.broadcast %cst_207 : f32 to vector<8x64xf32>
    %301 = arith.addf %299, %300 : vector<8x64xf32>
    %c22 = arith.constant 22 : index
    %c0_208 = arith.constant 0 : index
    %c0_209 = arith.constant 0 : index
    %302 = vector.load %arg3[%c22, %c0_208, %c0_209] : memref<24x64x64xf32, #tpu.memory_space<vmem>>, vector<1x64x64xf32>
    %303 = vector.shape_cast %302 : vector<1x64x64xf32> to vector<64x64xf32>
    %cst_210 = arith.constant dense<0.000000e+00> : vector<8x64xf32>
    %304 = tpu.matmul %301, %303, %cst_210 {dimension_numbers = #tpu.dot_dimension_numbers<[1], [0], [0], [1], [0, 0, 1, 1], [], []>} : vector<8x64xf32>, vector<64x64xf32>, vector<8x64xf32> -> vector<8x64xf32>
    %c22_211 = arith.constant 22 : index
    %c0_212 = arith.constant 0 : index
    %c0_213 = arith.constant 0 : index
    %305 = vector.load %arg4[%c22_211, %c0_212, %c0_213] : memref<24x8x64xf32, #tpu.memory_space<vmem>>, vector<1x8x64xf32>
    %306 = vector.shape_cast %305 : vector<1x8x64xf32> to vector<8x64xf32>
    %307 = arith.addf %304, %306 : vector<8x64xf32>
    %cst_214 = arith.constant 5.000000e-01 : f32
    %308 = vector.broadcast %cst_214 : f32 to vector<8x64xf32>
    %309 = arith.mulf %308, %307 : vector<8x64xf32>
    %310 = math.tanh %309 : vector<8x64xf32>
    %cst_215 = arith.constant 5.000000e-01 : f32
    %311 = vector.broadcast %cst_215 : f32 to vector<8x64xf32>
    %312 = arith.mulf %311, %310 : vector<8x64xf32>
    %cst_216 = arith.constant 5.000000e-01 : f32
    %313 = vector.broadcast %cst_216 : f32 to vector<8x64xf32>
    %314 = arith.addf %312, %313 : vector<8x64xf32>
    %c23 = arith.constant 23 : index
    %c0_217 = arith.constant 0 : index
    %c0_218 = arith.constant 0 : index
    %315 = vector.load %arg3[%c23, %c0_217, %c0_218] : memref<24x64x64xf32, #tpu.memory_space<vmem>>, vector<1x64x64xf32>
    %316 = vector.shape_cast %315 : vector<1x64x64xf32> to vector<64x64xf32>
    %cst_219 = arith.constant dense<0.000000e+00> : vector<8x64xf32>
    %317 = tpu.matmul %314, %316, %cst_219 {dimension_numbers = #tpu.dot_dimension_numbers<[1], [0], [0], [1], [0, 0, 1, 1], [], []>} : vector<8x64xf32>, vector<64x64xf32>, vector<8x64xf32> -> vector<8x64xf32>
    %c23_220 = arith.constant 23 : index
    %c0_221 = arith.constant 0 : index
    %c0_222 = arith.constant 0 : index
    %318 = vector.load %arg4[%c23_220, %c0_221, %c0_222] : memref<24x8x64xf32, #tpu.memory_space<vmem>>, vector<1x8x64xf32>
    %319 = vector.shape_cast %318 : vector<1x8x64xf32> to vector<8x64xf32>
    %320 = arith.addf %317, %319 : vector<8x64xf32>
    %cst_223 = arith.constant 5.000000e-01 : f32
    %321 = vector.broadcast %cst_223 : f32 to vector<8x64xf32>
    %322 = arith.mulf %321, %320 : vector<8x64xf32>
    %323 = math.tanh %322 : vector<8x64xf32>
    %cst_224 = arith.constant 5.000000e-01 : f32
    %324 = vector.broadcast %cst_224 : f32 to vector<8x64xf32>
    %325 = arith.mulf %324, %323 : vector<8x64xf32>
    %cst_225 = arith.constant 5.000000e-01 : f32
    %326 = vector.broadcast %cst_225 : f32 to vector<8x64xf32>
    %327 = arith.addf %325, %326 : vector<8x64xf32>
    %c0_226 = arith.constant 0 : index
    %c0_227 = arith.constant 0 : index
    %328 = vector.load %arg5[%c0_226, %c0_227] : memref<8x64xf32, #tpu.memory_space<vmem>>, vector<8x64xf32>
    tpu.vector_store %arg5[%c0_226, %c0_227], %327 {strides = array<i32>} : memref<8x64xf32, #tpu.memory_space<vmem>>, vector<8x64xf32>,
    return
  }
}

</mosaic_0001>

<llo_original>
// kernel: tile.9
$region0: #{tile.9}
  %s0 = inlined_call_operand.vmem [shape: f32[16,4,16], index: 0, kind: input, shape index: {}]
  %s1 = inlined_call_operand.vmem [shape: f32[16,64], index: 1, kind: output, shape index: {}]
  $region1: #{tile.9} parent=0
    #allocation0 [shape = 'u8[65536]{0}', space=vmem, size = 0x10000, scoped, tag = 'scoped mem for input reshape']
    %s3 = sshll.u32 1, 4
    %s4 = ssub.s32 %s3, 1
    %s5 = smul.addr 4, 15
    %s6 = scalar_lea.vmem %s0, %s5
    %v7 = vld [vmem:[%s6] sm:%s4]
    %s8 = scalar_lea.vmem [#allocation0], 120
    %9 = vst [vmem:[%s8] sm:%s4] %v7
    %s10 = smul.addr 4, 14
    %s11 = scalar_lea.vmem %s0, %s10
    %v12 = vld [vmem:[%s11] sm:%s4]
    %s13 = scalar_lea.vmem [#allocation0], 112
    %14 = vst [vmem:[%s13] sm:%s4] %v12
    %s15 = smul.addr 4, 13
    %s16 = scalar_lea.vmem %s0, %s15
    %v17 = vld [vmem:[%s16] sm:%s4]
    %s18 = scalar_lea.vmem [#allocation0], 104
    %19 = vst [vmem:[%s18] sm:%s4] %v17
    %s20 = smul.addr 4, 12
    %s21 = scalar_lea.vmem %s0, %s20
    %v22 = vld [vmem:[%s21] sm:%s4]
    %s23 = scalar_lea.vmem [#allocation0], 96
    %24 = vst [vmem:[%s23] sm:%s4] %v22
    %s25 = smul.addr 4, 11
    %s26 = scalar_lea.vmem %s0, %s25
    %v27 = vld [vmem:[%s26] sm:%s4]
    %s28 = scalar_lea.vmem [#allocation0], 88
    %29 = vst [vmem:[%s28] sm:%s4] %v27
    %s30 = smul.addr 4, 10
    %s31 = scalar_lea.vmem %s0, %s30
    %v32 = vld [vmem:[%s31] sm:%s4]
    %s33 = scalar_lea.vmem [#allocation0], 80
    %34 = vst [vmem:[%s33] sm:%s4] %v32
    %s35 = smul.addr 4, 9
    %s36 = scalar_lea.vmem %s0, %s35
    %v37 = vld [vmem:[%s36] sm:%s4]
    %s38 = scalar_lea.vmem [#allocation0], 72
    %39 = vst [vmem:[%s38] sm:%s4] %v37
    %s40 = smul.addr 4, 8
    %s41 = scalar_lea.vmem %s0, %s40
    %v42 = vld [vmem:[%s41] sm:%s4]
    %s43 = scalar_lea.vmem [#allocation0], 64
    %44 = vst [vmem:[%s43] sm:%s4] %v42
    %s45 = smul.addr 4, 7
    %s46 = scalar_lea.vmem %s0, %s45
    %v47 = vld [vmem:[%s46] sm:%s4]
    %s48 = scalar_lea.vmem [#allocation0], 56
    %49 = vst [vmem:[%s48] sm:%s4] %v47
    %s50 = smul.addr 4, 6
    %s51 = scalar_lea.vmem %s0, %s50
    %v52 = vld [vmem:[%s51] sm:%s4]
    %s53 = scalar_lea.vmem [#allocation0], 48
    %54 = vst [vmem:[%s53] sm:%s4] %v52
    %s55 = smul.addr 4, 5
    %s56 = scalar_lea.vmem %s0, %s55
    %v57 = vld [vmem:[%s56] sm:%s4]
    %s58 = scalar_lea.vmem [#allocation0], 40
    %59 = vst [vmem:[%s58] sm:%s4] %v57
    %s60 = smul.addr 4, 4
    %s61 = scalar_lea.vmem %s0, %s60
    %v62 = vld [vmem:[%s61] sm:%s4]
    %s63 = scalar_lea.vmem [#allocation0], 32
    %64 = vst [vmem:[%s63] sm:%s4] %v62
    %s65 = smul.addr 4, 3
    %s66 = scalar_lea.vmem %s0, %s65
    %v67 = vld [vmem:[%s66] sm:%s4]
    %s68 = scalar_lea.vmem [#allocation0], 24
    %69 = vst [vmem:[%s68] sm:%s4] %v67
    %s70 = smul.addr 4, 2
    %s71 = scalar_lea.vmem %s0, %s70
    %v72 = vld [vmem:[%s71] sm:%s4]
    %s73 = scalar_lea.vmem [#allocation0], 16
    %74 = vst [vmem:[%s73] sm:%s4] %v72
    %s75 = scalar_lea.vmem %s0, 4
    %v76 = vld [vmem:[%s75] sm:%s4]
    %s77 = scalar_lea.vmem [#allocation0], 8
    %78 = vst [vmem:[%s77] sm:%s4] %v76
    %v79 = vld [vmem:[%s0] sm:%s4]
    %80 = vst [vmem:[#allocation0] sm:%s4] %v79
    %v81 = vld [vmem:[#allocation0] ss:$8 sm:$0xf]
    %v82 = vld [vmem:[#allocation0] ss:$8 sm:$0xf0]
    %vm83 = vcmask 1047556
    %v84 = vsel %vm83, %v82, %v81
    %vm85 = vcmask 130048
    %86 = vst.msk [vmem:[%s1] sm:$0xff] %vm85, %v84
    %s87 = scalar_lea.vmem [#allocation0], 64
    %v88 = vld [vmem:[%s87] ss:$8 sm:$0xf]
    %s89 = scalar_lea.vmem [#allocation0], 64
    %v90 = vld [vmem:[%s89] ss:$8 sm:$0xf0]
    %vm91 = vcmask 1047556
    %v92 = vsel %vm91, %v90, %v88
    %vm93 = vcmask 130048
    %s94 = scalar_lea.vmem %s1, 8
    %95 = vst.msk [vmem:[%s94] sm:$0xff] %vm93, %v92
    %s96 = scalar_lea.vmem [#allocation0], 3
    %v97 = vld [vmem:[%s96] ss:$8 sm:$0xf]
    %s98 = scalar_lea.vmem [#allocation0], 3
    %v99 = vld [vmem:[%s98] ss:$8 sm:$0xf0]
    %vm100 = vcmask 1047556
    %v101 = vsel %vm100, %v99, %v97
    %102 = vrot.lane.b32.xlu0 %v101, 48
    %v103 = vpop.permute.xlu0 %102
    %vm104 = vcmask 523648
    %105 = vst.msk [vmem:[%s1] sm:$0xff] %vm104, %v103
    %s106 = scalar_lea.vmem [#allocation0], 67
    %v107 = vld [vmem:[%s106] ss:$8 sm:$0xf]
    %s108 = scalar_lea.vmem [#allocation0], 67
    %v109 = vld [vmem:[%s108] ss:$8 sm:$0xf0]
    %vm110 = vcmask 1047556
    %v111 = vsel %vm110, %v109, %v107
    %112 = vrot.lane.b32.xlu0 %v111, 48
    %v113 = vpop.permute.xlu0 %112
    %vm114 = vcmask 523648
    %s115 = scalar_lea.vmem %s1, 8
    %116 = vst.msk [vmem:[%s115] sm:$0xff] %vm114, %v113
    %s117 = scalar_lea.vmem [#allocation0], 2
    %v118 = vld [vmem:[%s117] ss:$8 sm:$0xf]
    %s119 = scalar_lea.vmem [#allocation0], 2
    %v120 = vld [vmem:[%s119] ss:$8 sm:$0xf0]
    %vm121 = vcmask 1047556
    %v122 = vsel %vm121, %v120, %v118
    %123 = vrot.lane.b32.xlu0 %v122, 32
    %v124 = vpop.permute.xlu0 %123
    %vm125 = vcmask 392448
    %126 = vst.msk [vmem:[%s1] sm:$0xff] %vm125, %v124
    %s127 = scalar_lea.vmem [#allocation0], 66
    %v128 = vld [vmem:[%s127] ss:$8 sm:$0xf]
    %s129 = scalar_lea.vmem [#allocation0], 66
    %v130 = vld [vmem:[%s129] ss:$8 sm:$0xf0]
    %vm131 = vcmask 1047556
    %v132 = vsel %vm131, %v130, %v128
    %133 = vrot.lane.b32.xlu0 %v132, 32
    %v134 = vpop.permute.xlu0 %133
    %vm135 = vcmask 392448
    %s136 = scalar_lea.vmem %s1, 8
    %137 = vst.msk [vmem:[%s136] sm:$0xff] %vm135, %v134
    %s138 = scalar_lea.vmem [#allocation0], 1
    %v139 = vld [vmem:[%s138] ss:$8 sm:$0xf]
    %s140 = scalar_lea.vmem [#allocation0], 1
    %v141 = vld [vmem:[%s140] ss:$8 sm:$0xf0]
    %vm142 = vcmask 1047556
    %v143 = vsel %vm142, %v141, %v139
    %144 = vrot.lane.b32.xlu0 %v143, 16
    %v145 = vpop.permute.xlu0 %144
    %vm146 = vcmask 261248
    %147 = vst.msk [vmem:[%s1] sm:$0xff] %vm146, %v145
    %s148 = scalar_lea.vmem [#allocation0], 65
    %v149 = vld [vmem:[%s148] ss:$8 sm:$0xf]
    %s150 = scalar_lea.vmem [#allocation0], 65
    %v151 = vld [vmem:[%s150] ss:$8 sm:$0xf0]
    %vm152 = vcmask 1047556
    %v153 = vsel %vm152, %v151, %v149
    %154 = vrot.lane.b32.xlu0 %v153, 16
    %v155 = vpop.permute.xlu0 %154
    %vm156 = vcmask 261248
    %s157 = scalar_lea.vmem %s1, 8
    %158 = vst.msk [vmem:[%s157] sm:$0xff] %vm156, %v155

// kernel: multi_ranking_forward.1
$region0: #{multi_ranking_forward.1}
  #allocation0 [shape = 'u32[]', space=smem, size = 0x4, offset = 0x4, fixed_abs, tag = 'smem constant byte address 0x4 - core index']
  #allocation1 [shape = 'u32[144,128]{1,0:T(1,128)}', space=vmem, size = 0x12000, scoped, tag = 'internal scratch']
  %s0 = inlined_call_operand.vmem [shape: f32[16,64], index: 0, kind: input, shape index: {}]
  %s1 = inlined_call_operand.vmem [shape: f32[8,16], index: 1, kind: input, shape index: {}]
  %s2 = inlined_call_operand.vmem [shape: f32[8,16], index: 2, kind: input, shape index: {}]
  %s3 = inlined_call_operand.hbm [shape: f32[24,64,64], index: 3, kind: input, shape index: {}]
  %s4 = inlined_call_operand.vmem [shape: f32[24,8,64], index: 4, kind: input, shape index: {}]
  %s5 = inlined_call_operand.vmem [shape: f32[8,64], index: 5, kind: output, shape index: {}]
  %s6 = sld [smem:[#allocation0]]
  $region34: #{multi_ranking_forward.1} parent=0
    _
  %s8 = ssub.s32 1, %s6
  %s9 = scalar_select 0, %s8, %s6
  $region1: #{multi_ranking_forward.1} parent=0
    #allocation2 [shape = 'u8[786432]{0}', space=vmem, size = 0xc0000, scoped, tag = 'input window, operand 3, single buffered']
    #allocation3 [shape = 's32[1]{0}', space=sflag, size = 0x4, scoped, tag = 'scoped memory for multi_ranking_forward.1']
    %10 = vsyncpa [#allocation3], 0
    // Predicated region
    $region2: #{multi_ranking_forward.1} parent=1 // pred_check
      _
    $region3: #{multi_ranking_forward.1} parent=1 // pred_check_branch
      %12 = sbr.rel (0) target = $region5
    $region4: #{multi_ranking_forward.1} parent=1 // pred_region
      _
    $region5: #{multi_ranking_forward.1} parent=1 // pred_fallthru
      _
    // Predicated region
    $region6: #{multi_ranking_forward.1} parent=1 // pred_check
      _
    $region7: #{multi_ranking_forward.1} parent=1 // pred_check_branch
      %14 = sbr.rel (0) target = $region9
    $region8: #{multi_ranking_forward.1} parent=1 // pred_region
      _
    $region9: #{multi_ranking_forward.1} parent=1 // pred_fallthru
      _
    // Predicated region
    $region10: #{multi_ranking_forward.1} parent=1 // pred_check
      _
    $region11: #{multi_ranking_forward.1} parent=1 // pred_check_branch
      %16 = sbr.rel (0) target = $region13
    $region12: #{multi_ranking_forward.1} parent=1 // pred_region
      _
    $region13: #{multi_ranking_forward.1} parent=1 // pred_fallthru
      _
    // Predicated region
    $region14: #{multi_ranking_forward.1} parent=1 // pred_check
      _
    $region15: #{multi_ranking_forward.1} parent=1 // pred_check_branch
      %18 = sbr.rel (0) target = $region17
    $region16: #{multi_ranking_forward.1} parent=1 // pred_region
      %s20 = ssub.s32 24576, 24576
      %21 = vsyncadd [#allocation3], %s20
      %s22 = sshll.u32 [#allocation2], 4
      %s23 = int_to_ptr.vmem [resolvable:$true] %s22
      %28 = dma.hbm_to_vmem [thread:$0]  %s3, 24576, %s23, [#allocation3], 128, 128, 8
    $region17: #{multi_ranking_forward.1} parent=1 // pred_fallthru
      _
    // Predicated region
    $region18: #{multi_ranking_forward.1} parent=1 // pred_check
      _
    $region19: #{multi_ranking_forward.1} parent=1 // pred_check_branch
      %30 = sbr.rel (0) target = $region21
    $region20: #{multi_ranking_forward.1} parent=1 // pred_region
      _
    $region21: #{multi_ranking_forward.1} parent=1 // pred_fallthru
      _
    // Predicated region
    $region22: #{multi_ranking_forward.1} parent=1 // pred_check
      _
    $region23: #{multi_ranking_forward.1} parent=1 // pred_check_branch
      %32 = sbr.rel (0) target = $region25
    $region24: #{multi_ranking_forward.1} parent=1 // pred_region
      %33 = dma.done [#allocation3], 24576
    $region25: #{multi_ranking_forward.1} parent=1 // pred_fallthru
      _
    %v34 = vlaneseq
    %v35 = vand.u32 %v34, 127
    %vm36 = vcmp.lt.s32.totalorder %v35, 32
    %v37 = vld [vmem:[%s1] sm:$0xff]
    %v38 = vld [vmem:[%s2] sm:$0xff]
    %v39 = vld [vmem:[%s0] sm:$0xff]
    %v40 = vld [vmem:[%s0 + $0x8] sm:$0xff]
    %vm41 = vcmask 130048
    %v43 = vsel %vm41, %v37, 0
    %45 = vmatprep.subr.mxu0 0.0
    %46 = vmatpush1.msra.mxu0 0.0
    %47 = vmatprep.subr.mxu0 0.0
    %48 = vmatpush1.msra.mxu0 0.0
    %49 = vmatprep.subr.mxu0 0.0
    %50 = vmatpush1.msra.mxu0 0.0
    %51 = vmatprep.subr.mxu0 0.0
    %52 = vmatpush1.msra.mxu0 0.0
    %53 = vmatprep.subr.mxu0 0.0
    %54 = vmatpush1.msra.mxu0 0.0
    %55 = vmatprep.subr.mxu0 0.0
    %56 = vmatpush1.msra.mxu0 0.0
    %57 = vmatprep.subr.mxu0 0.0
    %58 = vmatpush1.msra.mxu0 0.0
    %59 = vmatprep.subr.mxu0 0.0
    %60 = vmatpush1.msra.mxu0 0.0
    %61 = vmatprep.subr.mxu0 0.0
    %62 = vmatpush1.msra.mxu0 0.0
    %63 = vmatprep.subr.mxu0 0.0
    %64 = vmatpush1.msra.mxu0 0.0
    %65 = vmatprep.subr.mxu0 0.0
    %66 = vmatpush1.msra.mxu0 0.0
    %67 = vmatprep.subr.mxu0 0.0
    %68 = vmatpush1.msra.mxu0 0.0
    %69 = vmatprep.subr.mxu0 0.0
    %70 = vmatpush1.msra.mxu0 0.0
    %71 = vmatprep.subr.mxu0 0.0
    %72 = vmatpush1.msra.mxu0 0.0
    %73 = vmatprep.subr.mxu0 0.0
    %74 = vmatpush1.msra.mxu0 %v40
    %75 = vmatprep.subr.mxu0 0.0
    %76 = vmatpush1.msra.mxu0 %v39
    %77 = vmatprep.subr.mxu0 0.0
    %78 = vmatpush2.msra.mxu0 0.0
    %79 = vmatprep.subr.mxu0 0.0
    %80 = vmatpush2.msra.mxu0 0.0
    %81 = vmatprep.subr.mxu0 0.0
    %82 = vmatpush2.msra.mxu0 0.0
    %83 = vmatprep.subr.mxu0 0.0
    %84 = vmatpush2.msra.mxu0 0.0
    %85 = vmatprep.subr.mxu0 0.0
    %86 = vmatpush2.msra.mxu0 0.0
    %87 = vmatprep.subr.mxu0 0.0
    %88 = vmatpush2.msra.mxu0 0.0
    %89 = vmatprep.subr.mxu0 0.0
    %90 = vmatpush2.msra.mxu0 0.0
    %91 = vmatprep.subr.mxu0 0.0
    %92 = vmatpush2.msra.mxu0 0.0
    %93 = vmatprep.subr.mxu0 0.0
    %94 = vmatpush2.msra.mxu0 0.0
    %95 = vmatprep.subr.mxu0 0.0
    %96 = vmatpush2.msra.mxu0 0.0
    %97 = vmatprep.subr.mxu0 0.0
    %98 = vmatpush2.msra.mxu0 0.0
    %99 = vmatprep.subr.mxu0 0.0
    %100 = vmatpush2.msra.mxu0 0.0
    %101 = vmatprep.subr.mxu0 0.0
    %102 = vmatpush2.msra.mxu0 0.0
    %103 = vmatprep.subr.mxu0 0.0
    %104 = vmatpush2.msra.mxu0 0.0
    %105 = vmatprep.subr.mxu0 0.0
    %106 = vmatpush2.msra.mxu0 0.0
    %107 = vmatprep.subr.mxu0 0.0
    %108 = vmatpush2.msra.mxu0 0.0
    %109 = vmatprep.mubr.f32.mxu0 0.0
    %110 = vmatmul.mubr.f32.gmra.mxu0 %v43
    %v111 = vpop.f32.mrf.mxu0
    %v112 = vadd.f32 0.0, %v111
    %v113 = vpop.f32.mrf.mxu0
    %114 = vdwg.mxu0
    %v116 = vsel %vm41, %v38, 0
    %118 = vmatprep.subr.mxu0 0.0
    %119 = vmatpush1.msra.mxu0 0.0
    %120 = vmatprep.subr.mxu0 0.0
    %121 = vmatpush1.msra.mxu0 0.0
    %122 = vmatprep.subr.mxu0 0.0
    %123 = vmatpush1.msra.mxu0 0.0
    %124 = vmatprep.subr.mxu0 0.0
    %125 = vmatpush1.msra.mxu0 0.0
    %126 = vmatprep.subr.mxu0 0.0
    %127 = vmatpush1.msra.mxu0 0.0
    %128 = vmatprep.subr.mxu0 0.0
    %129 = vmatpush1.msra.mxu0 0.0
    %130 = vmatprep.subr.mxu0 0.0
    %131 = vmatpush1.msra.mxu0 0.0
    %132 = vmatprep.subr.mxu0 0.0
    %133 = vmatpush1.msra.mxu0 0.0
    %134 = vmatprep.subr.mxu0 0.0
    %135 = vmatpush1.msra.mxu0 0.0
    %136 = vmatprep.subr.mxu0 0.0
    %137 = vmatpush1.msra.mxu0 0.0
    %138 = vmatprep.subr.mxu0 0.0
    %139 = vmatpush1.msra.mxu0 0.0
    %140 = vmatprep.subr.mxu0 0.0
    %141 = vmatpush1.msra.mxu0 0.0
    %142 = vmatprep.subr.mxu0 0.0
    %143 = vmatpush1.msra.mxu0 0.0
    %144 = vmatprep.subr.mxu0 0.0
    %145 = vmatpush1.msra.mxu0 0.0
    %146 = vmatprep.subr.mxu0 0.0
    %147 = vmatpush1.msra.mxu0 %v40
    %148 = vmatprep.subr.mxu0 0.0
    %149 = vmatpush1.msra.mxu0 %v39
    %150 = vmatprep.subr.mxu0 0.0
    %151 = vmatpush2.msra.mxu0 0.0
    %152 = vmatprep.subr.mxu0 0.0
    %153 = vmatpush2.msra.mxu0 0.0
    %154 = vmatprep.subr.mxu0 0.0
    %155 = vmatpush2.msra.mxu0 0.0
    %156 = vmatprep.subr.mxu0 0.0
    %157 = vmatpush2.msra.mxu0 0.0
    %158 = vmatprep.subr.mxu0 0.0
    %159 = vmatpush2.msra.mxu0 0.0
    %160 = vmatprep.subr.mxu0 0.0
    %161 = vmatpush2.msra.mxu0 0.0
    %162 = vmatprep.subr.mxu0 0.0
    %163 = vmatpush2.msra.mxu0 0.0
    %164 = vmatprep.subr.mxu0 0.0
    %165 = vmatpush2.msra.mxu0 0.0
    %166 = vmatprep.subr.mxu0 0.0
    %167 = vmatpush2.msra.mxu0 0.0
    %168 = vmatprep.subr.mxu0 0.0
    %169 = vmatpush2.msra.mxu0 0.0
    %170 = vmatprep.subr.mxu0 0.0
    %171 = vmatpush2.msra.mxu0 0.0
    %172 = vmatprep.subr.mxu0 0.0
    %173 = vmatpush2.msra.mxu0 0.0
    %174 = vmatprep.subr.mxu0 0.0
    %175 = vmatpush2.msra.mxu0 0.0
    %176 = vmatprep.subr.mxu0 0.0
    %177 = vmatpush2.msra.mxu0 0.0
    %178 = vmatprep.subr.mxu0 0.0
    %179 = vmatpush2.msra.mxu0 0.0
    %180 = vmatprep.subr.mxu0 0.0
    %181 = vmatpush2.msra.mxu0 0.0
    %182 = vmatprep.mubr.f32.mxu0 0.0
    %183 = vmatmul.mubr.f32.gmra.mxu0 %v116
    %v184 = vpop.f32.mrf.mxu0
    %v185 = vadd.f32 0.0, %v184
    %v186 = vpop.f32.mrf.mxu0
    %187 = vdwg.mxu0
    %v188 = vsel %vm36, %v112, %v185
    %v189 = vld [vmem:[#allocation2] sm:$0xff]
    %v190 = vld [vmem:[#allocation2 + $0x8] sm:$0xff]
    %v191 = vld [vmem:[#allocation2 + $0x10] sm:$0xff]
    %v192 = vld [vmem:[#allocation2 + $0x18] sm:$0xff]
    %v193 = vld [vmem:[#allocation2 + $0x20] sm:$0xff]
    %v194 = vld [vmem:[#allocation2 + $0x28] sm:$0xff]
    %v195 = vld [vmem:[#allocation2 + $0x30] sm:$0xff]
    %v196 = vld [vmem:[#allocation2 + $0x38] sm:$0xff]
    %v197 = vld [vmem:[%s4] sm:$0xff]
    %vm198 = vcmask 523264
    %v200 = vsel %vm198, %v188, 0
    %202 = vmatprep.subr.mxu0 0.0
    %203 = vmatpush1.msra.mxu0 0.0
    %204 = vmatprep.subr.mxu0 0.0
    %205 = vmatpush1.msra.mxu0 0.0
    %206 = vmatprep.subr.mxu0 0.0
    %207 = vmatpush1.msra.mxu0 0.0
    %208 = vmatprep.subr.mxu0 0.0
    %209 = vmatpush1.msra.mxu0 0.0
    %210 = vmatprep.subr.mxu0 0.0
    %211 = vmatpush1.msra.mxu0 0.0
    %212 = vmatprep.subr.mxu0 0.0
    %213 = vmatpush1.msra.mxu0 0.0
    %214 = vmatprep.subr.mxu0 0.0
    %215 = vmatpush1.msra.mxu0 0.0
    %216 = vmatprep.subr.mxu0 0.0
    %217 = vmatpush1.msra.mxu0 0.0
    %218 = vmatprep.subr.mxu0 0.0
    %219 = vmatpush1.msra.mxu0 %v196
    %220 = vmatprep.subr.mxu0 0.0
    %221 = vmatpush1.msra.mxu0 %v195
    %222 = vmatprep.subr.mxu0 0.0
    %223 = vmatpush1.msra.mxu0 %v194
    %224 = vmatprep.subr.mxu0 0.0
    %225 = vmatpush1.msra.mxu0 %v193
    %226 = vmatprep.subr.mxu0 0.0
    %227 = vmatpush1.msra.mxu0 %v192
    %228 = vmatprep.subr.mxu0 0.0
    %229 = vmatpush1.msra.mxu0 %v191
    %230 = vmatprep.subr.mxu0 0.0
    %231 = vmatpush1.msra.mxu0 %v190
    %232 = vmatprep.subr.mxu0 0.0
    %233 = vmatpush1.msra.mxu0 %v189
    %234 = vmatprep.subr.mxu0 0.0
    %235 = vmatpush2.msra.mxu0 0.0
    %236 = vmatprep.subr.mxu0 0.0
    %237 = vmatpush2.msra.mxu0 0.0
    %238 = vmatprep.subr.mxu0 0.0
    %239 = vmatpush2.msra.mxu0 0.0
    %240 = vmatprep.subr.mxu0 0.0
    %241 = vmatpush2.msra.mxu0 0.0
    %242 = vmatprep.subr.mxu0 0.0
    %243 = vmatpush2.msra.mxu0 0.0
    %244 = vmatprep.subr.mxu0 0.0
    %245 = vmatpush2.msra.mxu0 0.0
    %246 = vmatprep.subr.mxu0 0.0
    %247 = vmatpush2.msra.mxu0 0.0
    %248 = vmatprep.subr.mxu0 0.0
    %249 = vmatpush2.msra.mxu0 0.0
    %250 = vmatprep.subr.mxu0 0.0
    %251 = vmatpush2.msra.mxu0 0.0
    %252 = vmatprep.subr.mxu0 0.0
    %253 = vmatpush2.msra.mxu0 0.0
    %254 = vmatprep.subr.mxu0 0.0
    %255 = vmatpush2.msra.mxu0 0.0
    %256 = vmatprep.subr.mxu0 0.0
    %257 = vmatpush2.msra.mxu0 0.0
    %258 = vmatprep.subr.mxu0 0.0
    %259 = vmatpush2.msra.mxu0 0.0
    %260 = vmatprep.subr.mxu0 0.0
    %261 = vmatpush2.msra.mxu0 0.0
    %262 = vmatprep.subr.mxu0 0.0
    %263 = vmatpush2.msra.mxu0 0.0
    %264 = vmatprep.subr.mxu0 0.0
    %265 = vmatpush2.msra.mxu0 0.0
    %266 = vmatprep.mubr.f32.mxu0 0.0
    %267 = vmatmul.mubr.f32.gmra.mxu0 %v200
    %v268 = vpop.f32.mrf.mxu0
    %v269 = vadd.f32 %v197, %v268
    %v270 = vpop.f32.mrf.mxu0
    %271 = vdwg.mxu0
    %v272 = vmul.f32 %v269, 0.5
    %v273 = vtanh.pop %v272
    %v274 = vmul.f32 %v273, 0.5
    %v275 = vadd.f32 %v274, 0.5
    %s276 = scalar_lea.vmem [#allocation2], 64
    %v277 = vld [vmem:[%s276] sm:$0xff]
    %v278 = vld [vmem:[%s276 + $0x8] sm:$0xff]
    %v279 = vld [vmem:[%s276 + $0x10] sm:$0xff]
    %v280 = vld [vmem:[%s276 + $0x18] sm:$0xff]
    %v281 = vld [vmem:[%s276 + $0x20] sm:$0xff]
    %v282 = vld [vmem:[%s276 + $0x28] sm:$0xff]
    %v283 = vld [vmem:[%s276 + $0x30] sm:$0xff]
    %v284 = vld [vmem:[%s276 + $0x38] sm:$0xff]
    %s285 = scalar_lea.vmem %s4, 8
    %v286 = vld [vmem:[%s285] sm:$0xff]
    %v288 = vsel %vm198, %v275, 0
    %290 = vmatprep.subr.mxu0 0.0
    %291 = vmatpush1.msra.mxu0 0.0
    %292 = vmatprep.subr.mxu0 0.0
    %293 = vmatpush1.msra.mxu0 0.0
    %294 = vmatprep.subr.mxu0 0.0
    %295 = vmatpush1.msra.mxu0 0.0
    %296 = vmatprep.subr.mxu0 0.0
    %297 = vmatpush1.msra.mxu0 0.0
    %298 = vmatprep.subr.mxu0 0.0
    %299 = vmatpush1.msra.mxu0 0.0
    %300 = vmatprep.subr.mxu0 0.0
    %301 = vmatpush1.msra.mxu0 0.0
    %302 = vmatprep.subr.mxu0 0.0
    %303 = vmatpush1.msra.mxu0 0.0
    %304 = vmatprep.subr.mxu0 0.0
    %305 = vmatpush1.msra.mxu0 0.0
    %306 = vmatprep.subr.mxu0 0.0
    %307 = vmatpush1.msra.mxu0 %v284
    %308 = vmatprep.subr.mxu0 0.0
    %309 = vmatpush1.msra.mxu0 %v283
    %310 = vmatprep.subr.mxu0 0.0
    %311 = vmatpush1.msra.mxu0 %v282
    %312 = vmatprep.subr.mxu0 0.0
    %313 = vmatpush1.msra.mxu0 %v281
    %314 = vmatprep.subr.mxu0 0.0
    %315 = vmatpush1.msra.mxu0 %v280
    %316 = vmatprep.subr.mxu0 0.0
    %317 = vmatpush1.msra.mxu0 %v279
    %318 = vmatprep.subr.mxu0 0.0
    %319 = vmatpush1.msra.mxu0 %v278
    %320 = vmatprep.subr.mxu0 0.0
    %321 = vmatpush1.msra.mxu0 %v277
    %322 = vmatprep.subr.mxu0 0.0
    %323 = vmatpush2.msra.mxu0 0.0
    %324 = vmatprep.subr.mxu0 0.0
    %325 = vmatpush2.msra.mxu0 0.0
    %326 = vmatprep.subr.mxu0 0.0
    %327 = vmatpush2.msra.mxu0 0.0
    %328 = vmatprep.subr.mxu0 0.0
    %329 = vmatpush2.msra.mxu0 0.0
    %330 = vmatprep.subr.mxu0 0.0
    %331 = vmatpush2.msra.mxu0 0.0
    %332 = vmatprep.subr.mxu0 0.0
    %333 = vmatpush2.msra.mxu0 0.0
    %334 = vmatprep.subr.mxu0 0.0
    %335 = vmatpush2.msra.mxu0 0.0
    %336 = vmatprep.subr.mxu0 0.0
    %337 = vmatpush2.msra.mxu0 0.0
    %338 = vmatprep.subr.mxu0 0.0
    %339 = vmatpush2.msra.mxu0 0.0
    %340 = vmatprep.subr.mxu0 0.0
    %341 = vmatpush2.msra.mxu0 0.0
    %342 = vmatprep.subr.mxu0 0.0
    %343 = vmatpush2.msra.mxu0 0.0
    %344 = vmatprep.subr.mxu0 0.0
    %345 = vmatpush2.msra.mxu0 0.0
    %346 = vmatprep.subr.mxu0 0.0
    %347 = vmatpush2.msra.mxu0 0.0
    %348 = vmatprep.subr.mxu0 0.0
    %349 = vmatpush2.msra.mxu0 0.0
    %350 = vmatprep.subr.mxu0 0.0
    %351 = vmatpush2.msra.mxu0 0.0
    %352 = vmatprep.subr.mxu0 0.0
    %353 = vmatpush2.msra.mxu0 0.0
    %354 = vmatprep.mubr.f32.mxu0 0.0
    %355 = vmatmul.mubr.f32.gmra.mxu0 %v288
    %v356 = vpop.f32.mrf.mxu0
    %v357 = vadd.f32 %v286, %v356
    %v358 = vpop.f32.mrf.mxu0
    %359 = vdwg.mxu0
    %v360 = vmul.f32 %v357, 0.5
    %v361 = vtanh.pop %v360
    %v362 = vmul.f32 %v361, 0.5
    %v363 = vadd.f32 %v362, 0.5
    %s364 = scalar_lea.vmem [#allocation2], 128
    %v365 = vld [vmem:[%s364] sm:$0xff]
    %v366 = vld [vmem:[%s364 + $0x8] sm:$0xff]
    %v367 = vld [vmem:[%s364 + $0x10] sm:$0xff]
    %v368 = vld [vmem:[%s364 + $0x18] sm:$0xff]
    %v369 = vld [vmem:[%s364 + $0x20] sm:$0xff]
    %v370 = vld [vmem:[%s364 + $0x28] sm:$0xff]
    %v371 = vld [vmem:[%s364 + $0x30] sm:$0xff]
    %v372 = vld [vmem:[%s364 + $0x38] sm:$0xff]
    %s373 = scalar_lea.vmem %s4, 16
    %v374 = vld [vmem:[%s373] sm:$0xff]
    %v376 = vsel %vm198, %v363, 0
    %378 = vmatprep.subr.mxu0 0.0
    %379 = vmatpush1.msra.mxu0 0.0
    %380 = vmatprep.subr.mxu0 0.0
    %381 = vmatpush1.msra.mxu0 0.0
    %382 = vmatprep.subr.mxu0 0.0
    %383 = vmatpush1.msra.mxu0 0.0
    %384 = vmatprep.subr.mxu0 0.0
    %385 = vmatpush1.msra.mxu0 0.0
    %386 = vmatprep.subr.mxu0 0.0
    %387 = vmatpush1.msra.mxu0 0.0
    %388 = vmatprep.subr.mxu0 0.0
    %389 = vmatpush1.msra.mxu0 0.0
    %390 = vmatprep.subr.mxu0 0.0
    %391 = vmatpush1.msra.mxu0 0.0
    %392 = vmatprep.subr.mxu0 0.0
    %393 = vmatpush1.msra.mxu0 0.0
    %394 = vmatprep.subr.mxu0 0.0
    %395 = vmatpush1.msra.mxu0 %v372
    %396 = vmatprep.subr.mxu0 0.0
    %397 = vmatpush1.msra.mxu0 %v371
    %398 = vmatprep.subr.mxu0 0.0
    %399 = vmatpush1.msra.mxu0 %v370
    %400 = vmatprep.subr.mxu0 0.0
    %401 = vmatpush1.msra.mxu0 %v369
    %402 = vmatprep.subr.mxu0 0.0
    %403 = vmatpush1.msra.mxu0 %v368
    %404 = vmatprep.subr.mxu0 0.0
    %405 = vmatpush1.msra.mxu0 %v367
    %406 = vmatprep.subr.mxu0 0.0
    %407 = vmatpush1.msra.mxu0 %v366
    %408 = vmatprep.subr.mxu0 0.0
    %409 = vmatpush1.msra.mxu0 %v365
    %410 = vmatprep.subr.mxu0 0.0
    %411 = vmatpush2.msra.mxu0 0.0
    %412 = vmatprep.subr.mxu0 0.0
    %413 = vmatpush2.msra.mxu0 0.0
    %414 = vmatprep.subr.mxu0 0.0
    %415 = vmatpush2.msra.mxu0 0.0
    %416 = vmatprep.subr.mxu0 0.0
    %417 = vmatpush2.msra.mxu0 0.0
    %418 = vmatprep.subr.mxu0 0.0
    %419 = vmatpush2.msra.mxu0 0.0
    %420 = vmatprep.subr.mxu0 0.0
    %421 = vmatpush2.msra.mxu0 0.0
    %422 = vmatprep.subr.mxu0 0.0
    %423 = vmatpush2.msra.mxu0 0.0
    %424 = vmatprep.subr.mxu0 0.0
    %425 = vmatpush2.msra.mxu0 0.0
    %426 = vmatprep.subr.mxu0 0.0
    %427 = vmatpush2.msra.mxu0 0.0
    %428 = vmatprep.subr.mxu0 0.0
    %429 = vmatpush2.msra.mxu0 0.0
    %430 = vmatprep.subr.mxu0 0.0
    %431 = vmatpush2.msra.mxu0 0.0
    %432 = vmatprep.subr.mxu0 0.0
    %433 = vmatpush2.msra.mxu0 0.0
    %434 = vmatprep.subr.mxu0 0.0
    %435 = vmatpush2.msra.mxu0 0.0
    %436 = vmatprep.subr.mxu0 0.0
    %437 = vmatpush2.msra.mxu0 0.0
    %438 = vmatprep.subr.mxu0 0.0
    %439 = vmatpush2.msra.mxu0 0.0
    %440 = vmatprep.subr.mxu0 0.0
    %441 = vmatpush2.msra.mxu0 0.0
    %442 = vmatprep.mubr.f32.mxu0 0.0
    %443 = vmatmul.mubr.f32.gmra.mxu0 %v376
    %v444 = vpop.f32.mrf.mxu0
    %v445 = vadd.f32 %v374, %v444
    %v446 = vpop.f32.mrf.mxu0
    %447 = vdwg.mxu0
    %v448 = vmul.f32 %v445, 0.5
    %v449 = vtanh.pop %v448
    %v450 = vmul.f32 %v449, 0.5
    %v451 = vadd.f32 %v450, 0.5
    %s452 = scalar_lea.vmem [#allocation2], 192
    %v453 = vld [vmem:[%s452] sm:$0xff]
    %v454 = vld [vmem:[%s452 + $0x8] sm:$0xff]
    %v455 = vld [vmem:[%s452 + $0x10] sm:$0xff]
    %v456 = vld [vmem:[%s452 + $0x18] sm:$0xff]
    %v457 = vld [vmem:[%s452 + $0x20] sm:$0xff]
    %v458 = vld [vmem:[%s452 + $0x28] sm:$0xff]
    %v459 = vld [vmem:[%s452 + $0x30] sm:$0xff]
    %v460 = vld [vmem:[%s452 + $0x38] sm:$0xff]
    %s461 = scalar_lea.vmem %s4, 24
    %v462 = vld [vmem:[%s461] sm:$0xff]
    %v464 = vsel %vm198, %v451, 0
    %466 = vmatprep.subr.mxu0 0.0
    %467 = vmatpush1.msra.mxu0 0.0
    %468 = vmatprep.subr.mxu0 0.0
    %469 = vmatpush1.msra.mxu0 0.0
    %470 = vmatprep.subr.mxu0 0.0
    %471 = vmatpush1.msra.mxu0 0.0
    %472 = vmatprep.subr.mxu0 0.0
    %473 = vmatpush1.msra.mxu0 0.0
    %474 = vmatprep.subr.mxu0 0.0
    %475 = vmatpush1.msra.mxu0 0.0
    %476 = vmatprep.subr.mxu0 0.0
    %477 = vmatpush1.msra.mxu0 0.0
    %478 = vmatprep.subr.mxu0 0.0
    %479 = vmatpush1.msra.mxu0 0.0
    %480 = vmatprep.subr.mxu0 0.0
    %481 = vmatpush1.msra.mxu0 0.0
    %482 = vmatprep.subr.mxu0 0.0
    %483 = vmatpush1.msra.mxu0 %v460
    %484 = vmatprep.subr.mxu0 0.0
    %485 = vmatpush1.msra.mxu0 %v459
    %486 = vmatprep.subr.mxu0 0.0
    %487 = vmatpush1.msra.mxu0 %v458
    %488 = vmatprep.subr.mxu0 0.0
    %489 = vmatpush1.msra.mxu0 %v457
    %490 = vmatprep.subr.mxu0 0.0
    %491 = vmatpush1.msra.mxu0 %v456
    %492 = vmatprep.subr.mxu0 0.0
    %493 = vmatpush1.msra.mxu0 %v455
    %494 = vmatprep.subr.mxu0 0.0
    %495 = vmatpush1.msra.mxu0 %v454
    %496 = vmatprep.subr.mxu0 0.0
    %497 = vmatpush1.msra.mxu0 %v453
    %498 = vmatprep.subr.mxu0 0.0
    %499 = vmatpush2.msra.mxu0 0.0
    %500 = vmatprep.subr.mxu0 0.0
    %501 = vmatpush2.msra.mxu0 0.0
    %502 = vmatprep.subr.mxu0 0.0
    %503 = vmatpush2.msra.mxu0 0.0
    %504 = vmatprep.subr.mxu0 0.0
    %505 = vmatpush2.msra.mxu0 0.0
    %506 = vmatprep.subr.mxu0 0.0
    %507 = vmatpush2.msra.mxu0 0.0
    %508 = vmatprep.subr.mxu0 0.0
    %509 = vmatpush2.msra.mxu0 0.0
    %510 = vmatprep.subr.mxu0 0.0
    %511 = vmatpush2.msra.mxu0 0.0
    %512 = vmatprep.subr.mxu0 0.0
    %513 = vmatpush2.msra.mxu0 0.0
    %514 = vmatprep.subr.mxu0 0.0
    %515 = vmatpush2.msra.mxu0 0.0
    %516 = vmatprep.subr.mxu0 0.0
    %517 = vmatpush2.msra.mxu0 0.0
    %518 = vmatprep.subr.mxu0 0.0
    %519 = vmatpush2.msra.mxu0 0.0
    %520 = vmatprep.subr.mxu0 0.0
    %521 = vmatpush2.msra.mxu0 0.0
    %522 = vmatprep.subr.mxu0 0.0
    %523 = vmatpush2.msra.mxu0 0.0
    %524 = vmatprep.subr.mxu0 0.0
    %525 = vmatpush2.msra.mxu0 0.0
    %526 = vmatprep.subr.mxu0 0.0
    %527 = vmatpush2.msra.mxu0 0.0
    %528 = vmatprep.subr.mxu0 0.0
    %529 = vmatpush2.msra.mxu0 0.0
    %530 = vmatprep.mubr.f32.mxu0 0.0
    %531 = vmatmul.mubr.f32.gmra.mxu0 %v464
    %v532 = vpop.f32.mrf.mxu0
    %v533 = vadd.f32 %v462, %v532
    %v534 = vpop.f32.mrf.mxu0
    %535 = vdwg.mxu0
    %v536 = vmul.f32 %v533, 0.5
    %v537 = vtanh.pop %v536
    %v538 = vmul.f32 %v537, 0.5
    %v539 = vadd.f32 %v538, 0.5
    %s540 = scalar_lea.vmem [#allocation2], 256
    %v541 = vld [vmem:[%s540] sm:$0xff]
    %v542 = vld [vmem:[%s540 + $0x8] sm:$0xff]
    %v543 = vld [vmem:[%s540 + $0x10] sm:$0xff]
    %v544 = vld [vmem:[%s540 + $0x18] sm:$0xff]
    %v545 = vld [vmem:[%s540 + $0x20] sm:$0xff]
    %v546 = vld [vmem:[%s540 + $0x28] sm:$0xff]
    %v547 = vld [vmem:[%s540 + $0x30] sm:$0xff]
    %v548 = vld [vmem:[%s540 + $0x38] sm:$0xff]
    %s549 = scalar_lea.vmem %s4, 32
    %v550 = vld [vmem:[%s549] sm:$0xff]
    %v552 = vsel %vm198, %v539, 0
    %554 = vmatprep.subr.mxu0 0.0
    %555 = vmatpush1.msra.mxu0 0.0
    %556 = vmatprep.subr.mxu0 0.0
    %557 = vmatpush1.msra.mxu0 0.0
    %558 = vmatprep.subr.mxu0 0.0
    %559 = vmatpush1.msra.mxu0 0.0
    %560 = vmatprep.subr.mxu0 0.0
    %561 = vmatpush1.msra.mxu0 0.0
    %562 = vmatprep.subr.mxu0 0.0
    %563 = vmatpush1.msra.mxu0 0.0
    %564 = vmatprep.subr.mxu0 0.0
    %565 = vmatpush1.msra.mxu0 0.0
    %566 = vmatprep.subr.mxu0 0.0
    %567 = vmatpush1.msra.mxu0 0.0
    %568 = vmatprep.subr.mxu0 0.0
    %569 = vmatpush1.msra.mxu0 0.0
    %570 = vmatprep.subr.mxu0 0.0
    %571 = vmatpush1.msra.mxu0 %v548
    %572 = vmatprep.subr.mxu0 0.0
    %573 = vmatpush1.msra.mxu0 %v547
    %574 = vmatprep.subr.mxu0 0.0
    %575 = vmatpush1.msra.mxu0 %v546
    %576 = vmatprep.subr.mxu0 0.0
    %577 = vmatpush1.msra.mxu0 %v545
    %578 = vmatprep.subr.mxu0 0.0
    %579 = vmatpush1.msra.mxu0 %v544
    %580 = vmatprep.subr.mxu0 0.0
    %581 = vmatpush1.msra.mxu0 %v543
    %582 = vmatprep.subr.mxu0 0.0
    %583 = vmatpush1.msra.mxu0 %v542
    %584 = vmatprep.subr.mxu0 0.0
    %585 = vmatpush1.msra.mxu0 %v541
    %586 = vmatprep.subr.mxu0 0.0
    %587 = vmatpush2.msra.mxu0 0.0
    %588 = vmatprep.subr.mxu0 0.0
    %589 = vmatpush2.msra.mxu0 0.0
    %590 = vmatprep.subr.mxu0 0.0
    %591 = vmatpush2.msra.mxu0 0.0
    %592 = vmatprep.subr.mxu0 0.0
    %593 = vmatpush2.msra.mxu0 0.0
    %594 = vmatprep.subr.mxu0 0.0
    %595 = vmatpush2.msra.mxu0 0.0
    %596 = vmatprep.subr.mxu0 0.0
    %597 = vmatpush2.msra.mxu0 0.0
    %598 = vmatprep.subr.mxu0 0.0
    %599 = vmatpush2.msra.mxu0 0.0
    %600 = vmatprep.subr.mxu0 0.0
    %601 = vmatpush2.msra.mxu0 0.0
    %602 = vmatprep.subr.mxu0 0.0
    %603 = vmatpush2.msra.mxu0 0.0
    %604 = vmatprep.subr.mxu0 0.0
    %605 = vmatpush2.msra.mxu0 0.0
    %606 = vmatprep.subr.mxu0 0.0
    %607 = vmatpush2.msra.mxu0 0.0
    %608 = vmatprep.subr.mxu0 0.0
    %609 = vmatpush2.msra.mxu0 0.0
    %610 = vmatprep.subr.mxu0 0.0
    %611 = vmatpush2.msra.mxu0 0.0
    %612 = vmatprep.subr.mxu0 0.0
    %613 = vmatpush2.msra.mxu0 0.0
    %614 = vmatprep.subr.mxu0 0.0
    %615 = vmatpush2.msra.mxu0 0.0
    %616 = vmatprep.subr.mxu0 0.0
    %617 = vmatpush2.msra.mxu0 0.0
    %618 = vmatprep.mubr.f32.mxu0 0.0
    %619 = vmatmul.mubr.f32.gmra.mxu0 %v552
    %v620 = vpop.f32.mrf.mxu0
    %v621 = vadd.f32 %v550, %v620
    %v622 = vpop.f32.mrf.mxu0
    %623 = vdwg.mxu0
    %v624 = vmul.f32 %v621, 0.5
    %v625 = vtanh.pop %v624
    %v626 = vmul.f32 %v625, 0.5
    %v627 = vadd.f32 %v626, 0.5
    %s628 = scalar_lea.vmem [#allocation2], 320
    %v629 = vld [vmem:[%s628] sm:$0xff]
    %v630 = vld [vmem:[%s628 + $0x8] sm:$0xff]
    %v631 = vld [vmem:[%s628 + $0x10] sm:$0xff]
    %v632 = vld [vmem:[%s628 + $0x18] sm:$0xff]
    %v633 = vld [vmem:[%s628 + $0x20] sm:$0xff]
    %v634 = vld [vmem:[%s628 + $0x28] sm:$0xff]
    %v635 = vld [vmem:[%s628 + $0x30] sm:$0xff]
    %v636 = vld [vmem:[%s628 + $0x38] sm:$0xff]
    %s637 = scalar_lea.vmem %s4, 40
    %v638 = vld [vmem:[%s637] sm:$0xff]
    %v640 = vsel %vm198, %v627, 0
    %642 = vmatprep.subr.mxu0 0.0
    %643 = vmatpush1.msra.mxu0 0.0
    %644 = vmatprep.subr.mxu0 0.0
    %645 = vmatpush1.msra.mxu0 0.0
    %646 = vmatprep.subr.mxu0 0.0
    %647 = vmatpush1.msra.mxu0 0.0
    %648 = vmatprep.subr.mxu0 0.0
    %649 = vmatpush1.msra.mxu0 0.0
    %650 = vmatprep.subr.mxu0 0.0
    %651 = vmatpush1.msra.mxu0 0.0
    %652 = vmatprep.subr.mxu0 0.0
    %653 = vmatpush1.msra.mxu0 0.0
    %654 = vmatprep.subr.mxu0 0.0
    %655 = vmatpush1.msra.mxu0 0.0
    %656 = vmatprep.subr.mxu0 0.0
    %657 = vmatpush1.msra.mxu0 0.0
    %658 = vmatprep.subr.mxu0 0.0
    %659 = vmatpush1.msra.mxu0 %v636
    %660 = vmatprep.subr.mxu0 0.0
    %661 = vmatpush1.msra.mxu0 %v635
    %662 = vmatprep.subr.mxu0 0.0
    %663 = vmatpush1.msra.mxu0 %v634
    %664 = vmatprep.subr.mxu0 0.0
    %665 = vmatpush1.msra.mxu0 %v633
    %666 = vmatprep.subr.mxu0 0.0
    %667 = vmatpush1.msra.mxu0 %v632
    %668 = vmatprep.subr.mxu0 0.0
    %669 = vmatpush1.msra.mxu0 %v631
    %670 = vmatprep.subr.mxu0 0.0
    %671 = vmatpush1.msra.mxu0 %v630
    %672 = vmatprep.subr.mxu0 0.0
    %673 = vmatpush1.msra.mxu0 %v629
    %674 = vmatprep.subr.mxu0 0.0
    %675 = vmatpush2.msra.mxu0 0.0
    %676 = vmatprep.subr.mxu0 0.0
    %677 = vmatpush2.msra.mxu0 0.0
    %678 = vmatprep.subr.mxu0 0.0
    %679 = vmatpush2.msra.mxu0 0.0
    %680 = vmatprep.subr.mxu0 0.0
    %681 = vmatpush2.msra.mxu0 0.0
    %682 = vmatprep.subr.mxu0 0.0
    %683 = vmatpush2.msra.mxu0 0.0
    %684 = vmatprep.subr.mxu0 0.0
    %685 = vmatpush2.msra.mxu0 0.0
    %686 = vmatprep.subr.mxu0 0.0
    %687 = vmatpush2.msra.mxu0 0.0
    %688 = vmatprep.subr.mxu0 0.0
    %689 = vmatpush2.msra.mxu0 0.0
    %690 = vmatprep.subr.mxu0 0.0
    %691 = vmatpush2.msra.mxu0 0.0
    %692 = vmatprep.subr.mxu0 0.0
    %693 = vmatpush2.msra.mxu0 0.0
    %694 = vmatprep.subr.mxu0 0.0
    %695 = vmatpush2.msra.mxu0 0.0
    %696 = vmatprep.subr.mxu0 0.0
    %697 = vmatpush2.msra.mxu0 0.0
    %698 = vmatprep.subr.mxu0 0.0
    %699 = vmatpush2.msra.mxu0 0.0
    %700 = vmatprep.subr.mxu0 0.0
    %701 = vmatpush2.msra.mxu0 0.0
    %702 = vmatprep.subr.mxu0 0.0
    %703 = vmatpush2.msra.mxu0 0.0
    %704 = vmatprep.subr.mxu0 0.0
    %705 = vmatpush2.msra.mxu0 0.0
    %706 = vmatprep.mubr.f32.mxu0 0.0
    %707 = vmatmul.mubr.f32.gmra.mxu0 %v640
    %v708 = vpop.f32.mrf.mxu0
    %v709 = vadd.f32 %v638, %v708
    %v710 = vpop.f32.mrf.mxu0
    %711 = vdwg.mxu0
    %v712 = vmul.f32 %v709, 0.5
    %v713 = vtanh.pop %v712
    %v714 = vmul.f32 %v713, 0.5
    %v715 = vadd.f32 %v714, 0.5
    %s716 = scalar_lea.vmem [#allocation2], 384
    %v717 = vld [vmem:[%s716] sm:$0xff]
    %v718 = vld [vmem:[%s716 + $0x8] sm:$0xff]
    %v719 = vld [vmem:[%s716 + $0x10] sm:$0xff]
    %v720 = vld [vmem:[%s716 + $0x18] sm:$0xff]
    %v721 = vld [vmem:[%s716 + $0x20] sm:$0xff]
    %v722 = vld [vmem:[%s716 + $0x28] sm:$0xff]
    %v723 = vld [vmem:[%s716 + $0x30] sm:$0xff]
    %v724 = vld [vmem:[%s716 + $0x38] sm:$0xff]
    %s725 = scalar_lea.vmem %s4, 48
    %v726 = vld [vmem:[%s725] sm:$0xff]
    %v728 = vsel %vm198, %v715, 0
    %730 = vmatprep.subr.mxu0 0.0
    %731 = vmatpush1.msra.mxu0 0.0
    %732 = vmatprep.subr.mxu0 0.0
    %733 = vmatpush1.msra.mxu0 0.0
    %734 = vmatprep.subr.mxu0 0.0
    %735 = vmatpush1.msra.mxu0 0.0
    %736 = vmatprep.subr.mxu0 0.0
    %737 = vmatpush1.msra.mxu0 0.0
    %738 = vmatprep.subr.mxu0 0.0
    %739 = vmatpush1.msra.mxu0 0.0
    %740 = vmatprep.subr.mxu0 0.0
    %741 = vmatpush1.msra.mxu0 0.0
    %742 = vmatprep.subr.mxu0 0.0
    %743 = vmatpush1.msra.mxu0 0.0
    %744 = vmatprep.subr.mxu0 0.0
    %745 = vmatpush1.msra.mxu0 0.0
    %746 = vmatprep.subr.mxu0 0.0
    %747 = vmatpush1.msra.mxu0 %v724
    %748 = vmatprep.subr.mxu0 0.0
    %749 = vmatpush1.msra.mxu0 %v723
    %750 = vmatprep.subr.mxu0 0.0
    %751 = vmatpush1.msra.mxu0 %v722
    %752 = vmatprep.subr.mxu0 0.0
    %753 = vmatpush1.msra.mxu0 %v721
    %754 = vmatprep.subr.mxu0 0.0
    %755 = vmatpush1.msra.mxu0 %v720
    %756 = vmatprep.subr.mxu0 0.0
    %757 = vmatpush1.msra.mxu0 %v719
    %758 = vmatprep.subr.mxu0 0.0
    %759 = vmatpush1.msra.mxu0 %v718
    %760 = vmatprep.subr.mxu0 0.0
    %761 = vmatpush1.msra.mxu0 %v717
    %762 = vmatprep.subr.mxu0 0.0
    %763 = vmatpush2.msra.mxu0 0.0
    %764 = vmatprep.subr.mxu0 0.0
    %765 = vmatpush2.msra.mxu0 0.0
    %766 = vmatprep.subr.mxu0 0.0
    %767 = vmatpush2.msra.mxu0 0.0
    %768 = vmatprep.subr.mxu0 0.0
    %769 = vmatpush2.msra.mxu0 0.0
    %770 = vmatprep.subr.mxu0 0.0
    %771 = vmatpush2.msra.mxu0 0.0
    %772 = vmatprep.subr.mxu0 0.0
    %773 = vmatpush2.msra.mxu0 0.0
    %774 = vmatprep.subr.mxu0 0.0
    %775 = vmatpush2.msra.mxu0 0.0
    %776 = vmatprep.subr.mxu0 0.0
    %777 = vmatpush2.msra.mxu0 0.0
    %778 = vmatprep.subr.mxu0 0.0
    %779 = vmatpush2.msra.mxu0 0.0
    %780 = vmatprep.subr.mxu0 0.0
    %781 = vmatpush2.msra.mxu0 0.0
    %782 = vmatprep.subr.mxu0 0.0
    %783 = vmatpush2.msra.mxu0 0.0
    %784 = vmatprep.subr.mxu0 0.0
    %785 = vmatpush2.msra.mxu0 0.0
    %786 = vmatprep.subr.mxu0 0.0
    %787 = vmatpush2.msra.mxu0 0.0
    %788 = vmatprep.subr.mxu0 0.0
    %789 = vmatpush2.msra.mxu0 0.0
    %790 = vmatprep.subr.mxu0 0.0
    %791 = vmatpush2.msra.mxu0 0.0
    %792 = vmatprep.subr.mxu0 0.0
    %793 = vmatpush2.msra.mxu0 0.0
    %794 = vmatprep.mubr.f32.mxu0 0.0
    %795 = vmatmul.mubr.f32.gmra.mxu0 %v728
    %v796 = vpop.f32.mrf.mxu0
    %v797 = vadd.f32 %v726, %v796
    %v798 = vpop.f32.mrf.mxu0
    %799 = vdwg.mxu0
    %v800 = vmul.f32 %v797, 0.5
    %v801 = vtanh.pop %v800
    %v802 = vmul.f32 %v801, 0.5
    %v803 = vadd.f32 %v802, 0.5
    %s804 = scalar_lea.vmem [#allocation2], 448
    %v805 = vld [vmem:[%s804] sm:$0xff]
    %v806 = vld [vmem:[%s804 + $0x8] sm:$0xff]
    %v807 = vld [vmem:[%s804 + $0x10] sm:$0xff]
    %v808 = vld [vmem:[%s804 + $0x18] sm:$0xff]
    %v809 = vld [vmem:[%s804 + $0x20] sm:$0xff]
    %v810 = vld [vmem:[%s804 + $0x28] sm:$0xff]
    %v811 = vld [vmem:[%s804 + $0x30] sm:$0xff]
    %v812 = vld [vmem:[%s804 + $0x38] sm:$0xff]
    %s813 = scalar_lea.vmem %s4, 56
    %v814 = vld [vmem:[%s813] sm:$0xff]
    %v816 = vsel %vm198, %v803, 0
    %818 = vmatprep.subr.mxu0 0.0
    %819 = vmatpush1.msra.mxu0 0.0
    %820 = vmatprep.subr.mxu0 0.0
    %821 = vmatpush1.msra.mxu0 0.0
    %822 = vmatprep.subr.mxu0 0.0
    %823 = vmatpush1.msra.mxu0 0.0
    %824 = vmatprep.subr.mxu0 0.0
    %825 = vmatpush1.msra.mxu0 0.0
    %826 = vmatprep.subr.mxu0 0.0
    %827 = vmatpush1.msra.mxu0 0.0
    %828 = vmatprep.subr.mxu0 0.0
    %829 = vmatpush1.msra.mxu0 0.0
    %830 = vmatprep.subr.mxu0 0.0
    %831 = vmatpush1.msra.mxu0 0.0
    %832 = vmatprep.subr.mxu0 0.0
    %833 = vmatpush1.msra.mxu0 0.0
    %834 = vmatprep.subr.mxu0 0.0
    %835 = vmatpush1.msra.mxu0 %v812
    %836 = vmatprep.subr.mxu0 0.0
    %837 = vmatpush1.msra.mxu0 %v811
    %838 = vmatprep.subr.mxu0 0.0
    %839 = vmatpush1.msra.mxu0 %v810
    %840 = vmatprep.subr.mxu0 0.0
    %841 = vmatpush1.msra.mxu0 %v809
    %842 = vmatprep.subr.mxu0 0.0
    %843 = vmatpush1.msra.mxu0 %v808
    %844 = vmatprep.subr.mxu0 0.0
    %845 = vmatpush1.msra.mxu0 %v807
    %846 = vmatprep.subr.mxu0 0.0
    %847 = vmatpush1.msra.mxu0 %v806
    %848 = vmatprep.subr.mxu0 0.0
    %849 = vmatpush1.msra.mxu0 %v805
    %850 = vmatprep.subr.mxu0 0.0
    %851 = vmatpush2.msra.mxu0 0.0
    %852 = vmatprep.subr.mxu0 0.0
    %853 = vmatpush2.msra.mxu0 0.0
    %854 = vmatprep.subr.mxu0 0.0
    %855 = vmatpush2.msra.mxu0 0.0
    %856 = vmatprep.subr.mxu0 0.0
    %857 = vmatpush2.msra.mxu0 0.0
    %858 = vmatprep.subr.mxu0 0.0
    %859 = vmatpush2.msra.mxu0 0.0
    %860 = vmatprep.subr.mxu0 0.0
    %861 = vmatpush2.msra.mxu0 0.0
    %862 = vmatprep.subr.mxu0 0.0
    %863 = vmatpush2.msra.mxu0 0.0
    %864 = vmatprep.subr.mxu0 0.0
    %865 = vmatpush2.msra.mxu0 0.0
    %866 = vmatprep.subr.mxu0 0.0
    %867 = vmatpush2.msra.mxu0 0.0
    %868 = vmatprep.subr.mxu0 0.0
    %869 = vmatpush2.msra.mxu0 0.0
    %870 = vmatprep.subr.mxu0 0.0
    %871 = vmatpush2.msra.mxu0 0.0
    %872 = vmatprep.subr.mxu0 0.0
    %873 = vmatpush2.msra.mxu0 0.0
    %874 = vmatprep.subr.mxu0 0.0
    %875 = vmatpush2.msra.mxu0 0.0
    %876 = vmatprep.subr.mxu0 0.0
    %877 = vmatpush2.msra.mxu0 0.0
    %878 = vmatprep.subr.mxu0 0.0
    %879 = vmatpush2.msra.mxu0 0.0
    %880 = vmatprep.subr.mxu0 0.0
    %881 = vmatpush2.msra.mxu0 0.0
    %882 = vmatprep.mubr.f32.mxu0 0.0
    %883 = vmatmul.mubr.f32.gmra.mxu0 %v816
    %v884 = vpop.f32.mrf.mxu0
    %v885 = vadd.f32 %v814, %v884
    %v886 = vpop.f32.mrf.mxu0
    %887 = vdwg.mxu0
    %v888 = vmul.f32 %v885, 0.5
    %v889 = vtanh.pop %v888
    %v890 = vmul.f32 %v889, 0.5
    %v891 = vadd.f32 %v890, 0.5
    %s892 = scalar_lea.vmem [#allocation2], 512
    %v893 = vld [vmem:[%s892] sm:$0xff]
    %v894 = vld [vmem:[%s892 + $0x8] sm:$0xff]
    %v895 = vld [vmem:[%s892 + $0x10] sm:$0xff]
    %v896 = vld [vmem:[%s892 + $0x18] sm:$0xff]
    %v897 = vld [vmem:[%s892 + $0x20] sm:$0xff]
    %v898 = vld [vmem:[%s892 + $0x28] sm:$0xff]
    %v899 = vld [vmem:[%s892 + $0x30] sm:$0xff]
    %v900 = vld [vmem:[%s892 + $0x38] sm:$0xff]
    %s901 = scalar_lea.vmem %s4, 64
    %v902 = vld [vmem:[%s901] sm:$0xff]
    %v904 = vsel %vm198, %v891, 0
    %906 = vmatprep.subr.mxu0 0.0
    %907 = vmatpush1.msra.mxu0 0.0
    %908 = vmatprep.subr.mxu0 0.0
    %909 = vmatpush1.msra.mxu0 0.0
    %910 = vmatprep.subr.mxu0 0.0
    %911 = vmatpush1.msra.mxu0 0.0
    %912 = vmatprep.subr.mxu0 0.0
    %913 = vmatpush1.msra.mxu0 0.0
    %914 = vmatprep.subr.mxu0 0.0
    %915 = vmatpush1.msra.mxu0 0.0
    %916 = vmatprep.subr.mxu0 0.0
    %917 = vmatpush1.msra.mxu0 0.0
    %918 = vmatprep.subr.mxu0 0.0
    %919 = vmatpush1.msra.mxu0 0.0
    %920 = vmatprep.subr.mxu0 0.0
    %921 = vmatpush1.msra.mxu0 0.0
    %922 = vmatprep.subr.mxu0 0.0
    %923 = vmatpush1.msra.mxu0 %v900
    %924 = vmatprep.subr.mxu0 0.0
    %925 = vmatpush1.msra.mxu0 %v899
    %926 = vmatprep.subr.mxu0 0.0
    %927 = vmatpush1.msra.mxu0 %v898
    %928 = vmatprep.subr.mxu0 0.0
    %929 = vmatpush1.msra.mxu0 %v897
    %930 = vmatprep.subr.mxu0 0.0
    %931 = vmatpush1.msra.mxu0 %v896
    %932 = vmatprep.subr.mxu0 0.0
    %933 = vmatpush1.msra.mxu0 %v895
    %934 = vmatprep.subr.mxu0 0.0
    %935 = vmatpush1.msra.mxu0 %v894
    %936 = vmatprep.subr.mxu0 0.0
    %937 = vmatpush1.msra.mxu0 %v893
    %938 = vmatprep.subr.mxu0 0.0
    %939 = vmatpush2.msra.mxu0 0.0
    %940 = vmatprep.subr.mxu0 0.0
    %941 = vmatpush2.msra.mxu0 0.0
    %942 = vmatprep.subr.mxu0 0.0
    %943 = vmatpush2.msra.mxu0 0.0
    %944 = vmatprep.subr.mxu0 0.0
    %945 = vmatpush2.msra.mxu0 0.0
    %946 = vmatprep.subr.mxu0 0.0
    %947 = vmatpush2.msra.mxu0 0.0
    %948 = vmatprep.subr.mxu0 0.0
    %949 = vmatpush2.msra.mxu0 0.0
    %950 = vmatprep.subr.mxu0 0.0
    %951 = vmatpush2.msra.mxu0 0.0
    %952 = vmatprep.subr.mxu0 0.0
    %953 = vmatpush2.msra.mxu0 0.0
    %954 = vmatprep.subr.mxu0 0.0
    %955 = vmatpush2.msra.mxu0 0.0
    %956 = vmatprep.subr.mxu0 0.0
    %957 = vmatpush2.msra.mxu0 0.0
    %958 = vmatprep.subr.mxu0 0.0
    %959 = vmatpush2.msra.mxu0 0.0
    %960 = vmatprep.subr.mxu0 0.0
    %961 = vmatpush2.msra.mxu0 0.0
    %962 = vmatprep.subr.mxu0 0.0
    %963 = vmatpush2.msra.mxu0 0.0
    %964 = vmatprep.subr.mxu0 0.0
    %965 = vmatpush2.msra.mxu0 0.0
    %966 = vmatprep.subr.mxu0 0.0
    %967 = vmatpush2.msra.mxu0 0.0
    %968 = vmatprep.subr.mxu0 0.0
    %969 = vmatpush2.msra.mxu0 0.0
    %970 = vmatprep.mubr.f32.mxu0 0.0
    %971 = vmatmul.mubr.f32.gmra.mxu0 %v904
    %v972 = vpop.f32.mrf.mxu0
    %v973 = vadd.f32 %v902, %v972
    %v974 = vpop.f32.mrf.mxu0
    %975 = vdwg.mxu0
    %v976 = vmul.f32 %v973, 0.5
    %v977 = vtanh.pop %v976
    %v978 = vmul.f32 %v977, 0.5
    %v979 = vadd.f32 %v978, 0.5
    %s980 = scalar_lea.vmem [#allocation2], 576
    %v981 = vld [vmem:[%s980] sm:$0xff]
    %v982 = vld [vmem:[%s980 + $0x8] sm:$0xff]
    %v983 = vld [vmem:[%s980 + $0x10] sm:$0xff]
    %v984 = vld [vmem:[%s980 + $0x18] sm:$0xff]
    %v985 = vld [vmem:[%s980 + $0x20] sm:$0xff]
    %v986 = vld [vmem:[%s980 + $0x28] sm:$0xff]
    %v987 = vld [vmem:[%s980 + $0x30] sm:$0xff]
    %v988 = vld [vmem:[%s980 + $0x38] sm:$0xff]
    %s989 = scalar_lea.vmem %s4, 72
    %v990 = vld [vmem:[%s989] sm:$0xff]
    %v992 = vsel %vm198, %v979, 0
    %994 = vmatprep.subr.mxu0 0.0
    %995 = vmatpush1.msra.mxu0 0.0
    %996 = vmatprep.subr.mxu0 0.0
    %997 = vmatpush1.msra.mxu0 0.0
    %998 = vmatprep.subr.mxu0 0.0
    %999 = vmatpush1.msra.mxu0 0.0
    %1000 = vmatprep.subr.mxu0 0.0
    %1001 = vmatpush1.msra.mxu0 0.0
    %1002 = vmatprep.subr.mxu0 0.0
    %1003 = vmatpush1.msra.mxu0 0.0
    %1004 = vmatprep.subr.mxu0 0.0
    %1005 = vmatpush1.msra.mxu0 0.0
    %1006 = vmatprep.subr.mxu0 0.0
    %1007 = vmatpush1.msra.mxu0 0.0
    %1008 = vmatprep.subr.mxu0 0.0
    %1009 = vmatpush1.msra.mxu0 0.0
    %1010 = vmatprep.subr.mxu0 0.0
    %1011 = vmatpush1.msra.mxu0 %v988
    %1012 = vmatprep.subr.mxu0 0.0
    %1013 = vmatpush1.msra.mxu0 %v987
    %1014 = vmatprep.subr.mxu0 0.0
    %1015 = vmatpush1.msra.mxu0 %v986
    %1016 = vmatprep.subr.mxu0 0.0
    %1017 = vmatpush1.msra.mxu0 %v985
    %1018 = vmatprep.subr.mxu0 0.0
    %1019 = vmatpush1.msra.mxu0 %v984
    %1020 = vmatprep.subr.mxu0 0.0
    %1021 = vmatpush1.msra.mxu0 %v983
    %1022 = vmatprep.subr.mxu0 0.0
    %1023 = vmatpush1.msra.mxu0 %v982
    %1024 = vmatprep.subr.mxu0 0.0
    %1025 = vmatpush1.msra.mxu0 %v981
    %1026 = vmatprep.subr.mxu0 0.0
    %1027 = vmatpush2.msra.mxu0 0.0
    %1028 = vmatprep.subr.mxu0 0.0
    %1029 = vmatpush2.msra.mxu0 0.0
    %1030 = vmatprep.subr.mxu0 0.0
    %1031 = vmatpush2.msra.mxu0 0.0
    %1032 = vmatprep.subr.mxu0 0.0
    %1033 = vmatpush2.msra.mxu0 0.0
    %1034 = vmatprep.subr.mxu0 0.0
    %1035 = vmatpush2.msra.mxu0 0.0
    %1036 = vmatprep.subr.mxu0 0.0
    %1037 = vmatpush2.msra.mxu0 0.0
    %1038 = vmatprep.subr.mxu0 0.0
    %1039 = vmatpush2.msra.mxu0 0.0
    %1040 = vmatprep.subr.mxu0 0.0
    %1041 = vmatpush2.msra.mxu0 0.0
    %1042 = vmatprep.subr.mxu0 0.0
    %1043 = vmatpush2.msra.mxu0 0.0
    %1044 = vmatprep.subr.mxu0 0.0
    %1045 = vmatpush2.msra.mxu0 0.0
    %1046 = vmatprep.subr.mxu0 0.0
    %1047 = vmatpush2.msra.mxu0 0.0
    %1048 = vmatprep.subr.mxu0 0.0
    %1049 = vmatpush2.msra.mxu0 0.0
    %1050 = vmatprep.subr.mxu0 0.0
    %1051 = vmatpush2.msra.mxu0 0.0
    %1052 = vmatprep.subr.mxu0 0.0
    %1053 = vmatpush2.msra.mxu0 0.0
    %1054 = vmatprep.subr.mxu0 0.0
    %1055 = vmatpush2.msra.mxu0 0.0
    %1056 = vmatprep.subr.mxu0 0.0
    %1057 = vmatpush2.msra.mxu0 0.0
    %1058 = vmatprep.mubr.f32.mxu0 0.0
    %1059 = vmatmul.mubr.f32.gmra.mxu0 %v992
    %v1060 = vpop.f32.mrf.mxu0
    %v1061 = vadd.f32 %v990, %v1060
    %v1062 = vpop.f32.mrf.mxu0
    %1063 = vdwg.mxu0
    %v1064 = vmul.f32 %v1061, 0.5
    %v1065 = vtanh.pop %v1064
    %v1066 = vmul.f32 %v1065, 0.5
    %v1067 = vadd.f32 %v1066, 0.5
    %s1068 = scalar_lea.vmem [#allocation2], 640
    %v1069 = vld [vmem:[%s1068] sm:$0xff]
    %v1070 = vld [vmem:[%s1068 + $0x8] sm:$0xff]
    %v1071 = vld [vmem:[%s1068 + $0x10] sm:$0xff]
    %v1072 = vld [vmem:[%s1068 + $0x18] sm:$0xff]
    %v1073 = vld [vmem:[%s1068 + $0x20] sm:$0xff]
    %v1074 = vld [vmem:[%s1068 + $0x28] sm:$0xff]
    %v1075 = vld [vmem:[%s1068 + $0x30] sm:$0xff]
    %v1076 = vld [vmem:[%s1068 + $0x38] sm:$0xff]
    %s1077 = scalar_lea.vmem %s4, 80
    %v1078 = vld [vmem:[%s1077] sm:$0xff]
    %v1080 = vsel %vm198, %v1067, 0
    %1082 = vmatprep.subr.mxu0 0.0
    %1083 = vmatpush1.msra.mxu0 0.0
    %1084 = vmatprep.subr.mxu0 0.0
    %1085 = vmatpush1.msra.mxu0 0.0
    %1086 = vmatprep.subr.mxu0 0.0
    %1087 = vmatpush1.msra.mxu0 0.0
    %1088 = vmatprep.subr.mxu0 0.0
    %1089 = vmatpush1.msra.mxu0 0.0
    %1090 = vmatprep.subr.mxu0 0.0
    %1091 = vmatpush1.msra.mxu0 0.0
    %1092 = vmatprep.subr.mxu0 0.0
    %1093 = vmatpush1.msra.mxu0 0.0
    %1094 = vmatprep.subr.mxu0 0.0
    %1095 = vmatpush1.msra.mxu0 0.0
    %1096 = vmatprep.subr.mxu0 0.0
    %1097 = vmatpush1.msra.mxu0 0.0
    %1098 = vmatprep.subr.mxu0 0.0
    %1099 = vmatpush1.msra.mxu0 %v1076
    %1100 = vmatprep.subr.mxu0 0.0
    %1101 = vmatpush1.msra.mxu0 %v1075
    %1102 = vmatprep.subr.mxu0 0.0
    %1103 = vmatpush1.msra.mxu0 %v1074
    %1104 = vmatprep.subr.mxu0 0.0
    %1105 = vmatpush1.msra.mxu0 %v1073
    %1106 = vmatprep.subr.mxu0 0.0
    %1107 = vmatpush1.msra.mxu0 %v1072
    %1108 = vmatprep.subr.mxu0 0.0
    %1109 = vmatpush1.msra.mxu0 %v1071
    %1110 = vmatprep.subr.mxu0 0.0
    %1111 = vmatpush1.msra.mxu0 %v1070
    %1112 = vmatprep.subr.mxu0 0.0
    %1113 = vmatpush1.msra.mxu0 %v1069
    %1114 = vmatprep.subr.mxu0 0.0
    %1115 = vmatpush2.msra.mxu0 0.0
    %1116 = vmatprep.subr.mxu0 0.0
    %1117 = vmatpush2.msra.mxu0 0.0
    %1118 = vmatprep.subr.mxu0 0.0
    %1119 = vmatpush2.msra.mxu0 0.0
    %1120 = vmatprep.subr.mxu0 0.0
    %1121 = vmatpush2.msra.mxu0 0.0
    %1122 = vmatprep.subr.mxu0 0.0
    %1123 = vmatpush2.msra.mxu0 0.0
    %1124 = vmatprep.subr.mxu0 0.0
    %1125 = vmatpush2.msra.mxu0 0.0
    %1126 = vmatprep.subr.mxu0 0.0
    %1127 = vmatpush2.msra.mxu0 0.0
    %1128 = vmatprep.subr.mxu0 0.0
    %1129 = vmatpush2.msra.mxu0 0.0
    %1130 = vmatprep.subr.mxu0 0.0
    %1131 = vmatpush2.msra.mxu0 0.0
    %1132 = vmatprep.subr.mxu0 0.0
    %1133 = vmatpush2.msra.mxu0 0.0
    %1134 = vmatprep.subr.mxu0 0.0
    %1135 = vmatpush2.msra.mxu0 0.0
    %1136 = vmatprep.subr.mxu0 0.0
    %1137 = vmatpush2.msra.mxu0 0.0
    %1138 = vmatprep.subr.mxu0 0.0
    %1139 = vmatpush2.msra.mxu0 0.0
    %1140 = vmatprep.subr.mxu0 0.0
    %1141 = vmatpush2.msra.mxu0 0.0
    %1142 = vmatprep.subr.mxu0 0.0
    %1143 = vmatpush2.msra.mxu0 0.0
    %1144 = vmatprep.subr.mxu0 0.0
    %1145 = vmatpush2.msra.mxu0 0.0
    %1146 = vmatprep.mubr.f32.mxu0 0.0
    %1147 = vmatmul.mubr.f32.gmra.mxu0 %v1080
    %v1148 = vpop.f32.mrf.mxu0
    %v1149 = vadd.f32 %v1078, %v1148
    %v1150 = vpop.f32.mrf.mxu0
    %1151 = vdwg.mxu0
    %v1152 = vmul.f32 %v1149, 0.5
    %v1153 = vtanh.pop %v1152
    %v1154 = vmul.f32 %v1153, 0.5
    %v1155 = vadd.f32 %v1154, 0.5
    %s1156 = scalar_lea.vmem [#allocation2], 704
    %v1157 = vld [vmem:[%s1156] sm:$0xff]
    %v1158 = vld [vmem:[%s1156 + $0x8] sm:$0xff]
    %v1159 = vld [vmem:[%s1156 + $0x10] sm:$0xff]
    %v1160 = vld [vmem:[%s1156 + $0x18] sm:$0xff]
    %v1161 = vld [vmem:[%s1156 + $0x20] sm:$0xff]
    %v1162 = vld [vmem:[%s1156 + $0x28] sm:$0xff]
    %v1163 = vld [vmem:[%s1156 + $0x30] sm:$0xff]
    %v1164 = vld [vmem:[%s1156 + $0x38] sm:$0xff]
    %s1165 = scalar_lea.vmem %s4, 88
    %v1166 = vld [vmem:[%s1165] sm:$0xff]
    %v1168 = vsel %vm198, %v1155, 0
    %1170 = vmatprep.subr.mxu0 0.0
    %1171 = vmatpush1.msra.mxu0 0.0
    %1172 = vmatprep.subr.mxu0 0.0
    %1173 = vmatpush1.msra.mxu0 0.0
    %1174 = vmatprep.subr.mxu0 0.0
    %1175 = vmatpush1.msra.mxu0 0.0
    %1176 = vmatprep.subr.mxu0 0.0
    %1177 = vmatpush1.msra.mxu0 0.0
    %1178 = vmatprep.subr.mxu0 0.0
    %1179 = vmatpush1.msra.mxu0 0.0
    %1180 = vmatprep.subr.mxu0 0.0
    %1181 = vmatpush1.msra.mxu0 0.0
    %1182 = vmatprep.subr.mxu0 0.0
    %1183 = vmatpush1.msra.mxu0 0.0
    %1184 = vmatprep.subr.mxu0 0.0
    %1185 = vmatpush1.msra.mxu0 0.0
    %1186 = vmatprep.subr.mxu0 0.0
    %1187 = vmatpush1.msra.mxu0 %v1164
    %1188 = vmatprep.subr.mxu0 0.0
    %1189 = vmatpush1.msra.mxu0 %v1163
    %1190 = vmatprep.subr.mxu0 0.0
    %1191 = vmatpush1.msra.mxu0 %v1162
    %1192 = vmatprep.subr.mxu0 0.0
    %1193 = vmatpush1.msra.mxu0 %v1161
    %1194 = vmatprep.subr.mxu0 0.0
    %1195 = vmatpush1.msra.mxu0 %v1160
    %1196 = vmatprep.subr.mxu0 0.0
    %1197 = vmatpush1.msra.mxu0 %v1159
    %1198 = vmatprep.subr.mxu0 0.0
    %1199 = vmatpush1.msra.mxu0 %v1158
    %1200 = vmatprep.subr.mxu0 0.0
    %1201 = vmatpush1.msra.mxu0 %v1157
    %1202 = vmatprep.subr.mxu0 0.0
    %1203 = vmatpush2.msra.mxu0 0.0
    %1204 = vmatprep.subr.mxu0 0.0
    %1205 = vmatpush2.msra.mxu0 0.0
    %1206 = vmatprep.subr.mxu0 0.0
    %1207 = vmatpush2.msra.mxu0 0.0
    %1208 = vmatprep.subr.mxu0 0.0
    %1209 = vmatpush2.msra.mxu0 0.0
    %1210 = vmatprep.subr.mxu0 0.0
    %1211 = vmatpush2.msra.mxu0 0.0
    %1212 = vmatprep.subr.mxu0 0.0
    %1213 = vmatpush2.msra.mxu0 0.0
    %1214 = vmatprep.subr.mxu0 0.0
    %1215 = vmatpush2.msra.mxu0 0.0
    %1216 = vmatprep.subr.mxu0 0.0
    %1217 = vmatpush2.msra.mxu0 0.0
    %1218 = vmatprep.subr.mxu0 0.0
    %1219 = vmatpush2.msra.mxu0 0.0
    %1220 = vmatprep.subr.mxu0 0.0
    %1221 = vmatpush2.msra.mxu0 0.0
    %1222 = vmatprep.subr.mxu0 0.0
    %1223 = vmatpush2.msra.mxu0 0.0
    %1224 = vmatprep.subr.mxu0 0.0
    %1225 = vmatpush2.msra.mxu0 0.0
    %1226 = vmatprep.subr.mxu0 0.0
    %1227 = vmatpush2.msra.mxu0 0.0
    %1228 = vmatprep.subr.mxu0 0.0
    %1229 = vmatpush2.msra.mxu0 0.0
    %1230 = vmatprep.subr.mxu0 0.0
    %1231 = vmatpush2.msra.mxu0 0.0
    %1232 = vmatprep.subr.mxu0 0.0
    %1233 = vmatpush2.msra.mxu0 0.0
    %1234 = vmatprep.mubr.f32.mxu0 0.0
    %1235 = vmatmul.mubr.f32.gmra.mxu0 %v1168
    %v1236 = vpop.f32.mrf.mxu0
    %v1237 = vadd.f32 %v1166, %v1236
    %v1238 = vpop.f32.mrf.mxu0
    %1239 = vdwg.mxu0
    %v1240 = vmul.f32 %v1237, 0.5
    %v1241 = vtanh.pop %v1240
    %v1242 = vmul.f32 %v1241, 0.5
    %v1243 = vadd.f32 %v1242, 0.5
    %vm1244 = vcmask 1048064
    %1245 = vrot.lane.b32.xlu0 %v1243, 64
    %v1246 = vpop.permute.xlu0 %1245
    %v1247 = vsel %vm1244, %v1246, %v1243
    %1248 = vrot.lane.b32.xlu0 %v1247, 64
    %v1249 = vpop.permute.xlu0 %1248
    %v1250 = vsel %vm1244, %v1249, %v1243
    %1252 = vrot.lane.b32.xlu0 %v1250, 96
    %v1253 = vpop.permute.xlu0 %1252
    %v1255 = vsel %vm36, %v1243, %v1253
    %v1256 = vsel %vm36, %v1253, %v1243
    %1257 = vmatprep.subr.mxu0 0.0
    %1258 = vmatpush1.msra.mxu0 0.0
    %1259 = vmatprep.subr.mxu0 0.0
    %1260 = vmatpush1.msra.mxu0 0.0
    %1261 = vmatprep.subr.mxu0 0.0
    %1262 = vmatpush1.msra.mxu0 0.0
    %1263 = vmatprep.subr.mxu0 0.0
    %1264 = vmatpush1.msra.mxu0 0.0
    %1265 = vmatprep.subr.mxu0 0.0
    %1266 = vmatpush1.msra.mxu0 0.0
    %1267 = vmatprep.subr.mxu0 0.0
    %1268 = vmatpush1.msra.mxu0 0.0
    %1269 = vmatprep.subr.mxu0 0.0
    %1270 = vmatpush1.msra.mxu0 0.0
    %1271 = vmatprep.subr.mxu0 0.0
    %1272 = vmatpush1.msra.mxu0 0.0
    %1273 = vmatprep.subr.mxu0 0.0
    %1274 = vmatpush1.msra.mxu0 0.0
    %1275 = vmatprep.subr.mxu0 0.0
    %1276 = vmatpush1.msra.mxu0 0.0
    %1277 = vmatprep.subr.mxu0 0.0
    %1278 = vmatpush1.msra.mxu0 0.0
    %1279 = vmatprep.subr.mxu0 0.0
    %1280 = vmatpush1.msra.mxu0 0.0
    %1281 = vmatprep.subr.mxu0 0.0
    %1282 = vmatpush1.msra.mxu0 0.0
    %1283 = vmatprep.subr.mxu0 0.0
    %1284 = vmatpush1.msra.mxu0 0.0
    %1285 = vmatprep.subr.mxu0 0.0
    %1286 = vmatpush1.msra.mxu0 %v1256
    %1287 = vmatprep.subr.mxu0 0.0
    %1288 = vmatpush1.msra.mxu0 %v1255
    %1289 = vmatprep.subr.mxu0 0.0
    %1290 = vmatpush2.msra.mxu0 0.0
    %1291 = vmatprep.subr.mxu0 0.0
    %1292 = vmatpush2.msra.mxu0 0.0
    %1293 = vmatprep.subr.mxu0 0.0
    %1294 = vmatpush2.msra.mxu0 0.0
    %1295 = vmatprep.subr.mxu0 0.0
    %1296 = vmatpush2.msra.mxu0 0.0
    %1297 = vmatprep.subr.mxu0 0.0
    %1298 = vmatpush2.msra.mxu0 0.0
    %1299 = vmatprep.subr.mxu0 0.0
    %1300 = vmatpush2.msra.mxu0 0.0
    %1301 = vmatprep.subr.mxu0 0.0
    %1302 = vmatpush2.msra.mxu0 0.0
    %1303 = vmatprep.subr.mxu0 0.0
    %1304 = vmatpush2.msra.mxu0 0.0
    %1305 = vmatprep.subr.mxu0 0.0
    %1306 = vmatpush2.msra.mxu0 0.0
    %1307 = vmatprep.subr.mxu0 0.0
    %1308 = vmatpush2.msra.mxu0 0.0
    %1309 = vmatprep.subr.mxu0 0.0
    %1310 = vmatpush2.msra.mxu0 0.0
    %1311 = vmatprep.subr.mxu0 0.0
    %1312 = vmatpush2.msra.mxu0 0.0
    %1313 = vmatprep.subr.mxu0 0.0
    %1314 = vmatpush2.msra.mxu0 0.0
    %1315 = vmatprep.subr.mxu0 0.0
    %1316 = vmatpush2.msra.mxu0 0.0
    %1317 = vmatprep.subr.mxu0 0.0
    %1318 = vmatpush2.msra.mxu0 0.0
    %1319 = vmatprep.subr.mxu0 0.0
    %1320 = vmatpush2.msra.mxu0 0.0
    %1321 = vmatprep.mubr.f32.mxu0 0.0
    %1322 = vmatmul.mubr.f32.gmra.mxu0 %v43
    %v1323 = vpop.f32.mrf.mxu0
    %v1324 = vadd.f32 0.0, %v1323
    %v1325 = vpop.f32.mrf.mxu0
    %1326 = vdwg.mxu0
    %1327 = vmatprep.subr.mxu0 0.0
    %1328 = vmatpush1.msra.mxu0 0.0
    %1329 = vmatprep.subr.mxu0 0.0
    %1330 = vmatpush1.msra.mxu0 0.0
    %1331 = vmatprep.subr.mxu0 0.0
    %1332 = vmatpush1.msra.mxu0 0.0
    %1333 = vmatprep.subr.mxu0 0.0
    %1334 = vmatpush1.msra.mxu0 0.0
    %1335 = vmatprep.subr.mxu0 0.0
    %1336 = vmatpush1.msra.mxu0 0.0
    %1337 = vmatprep.subr.mxu0 0.0
    %1338 = vmatpush1.msra.mxu0 0.0
    %1339 = vmatprep.subr.mxu0 0.0
    %1340 = vmatpush1.msra.mxu0 0.0
    %1341 = vmatprep.subr.mxu0 0.0
    %1342 = vmatpush1.msra.mxu0 0.0
    %1343 = vmatprep.subr.mxu0 0.0
    %1344 = vmatpush1.msra.mxu0 0.0
    %1345 = vmatprep.subr.mxu0 0.0
    %1346 = vmatpush1.msra.mxu0 0.0
    %1347 = vmatprep.subr.mxu0 0.0
    %1348 = vmatpush1.msra.mxu0 0.0
    %1349 = vmatprep.subr.mxu0 0.0
    %1350 = vmatpush1.msra.mxu0 0.0
    %1351 = vmatprep.subr.mxu0 0.0
    %1352 = vmatpush1.msra.mxu0 0.0
    %1353 = vmatprep.subr.mxu0 0.0
    %1354 = vmatpush1.msra.mxu0 0.0
    %1355 = vmatprep.subr.mxu0 0.0
    %1356 = vmatpush1.msra.mxu0 %v1256
    %1357 = vmatprep.subr.mxu0 0.0
    %1358 = vmatpush1.msra.mxu0 %v1255
    %1359 = vmatprep.subr.mxu0 0.0
    %1360 = vmatpush2.msra.mxu0 0.0
    %1361 = vmatprep.subr.mxu0 0.0
    %1362 = vmatpush2.msra.mxu0 0.0
    %1363 = vmatprep.subr.mxu0 0.0
    %1364 = vmatpush2.msra.mxu0 0.0
    %1365 = vmatprep.subr.mxu0 0.0
    %1366 = vmatpush2.msra.mxu0 0.0
    %1367 = vmatprep.subr.mxu0 0.0
    %1368 = vmatpush2.msra.mxu0 0.0
    %1369 = vmatprep.subr.mxu0 0.0
    %1370 = vmatpush2.msra.mxu0 0.0
    %1371 = vmatprep.subr.mxu0 0.0
    %1372 = vmatpush2.msra.mxu0 0.0
    %1373 = vmatprep.subr.mxu0 0.0
    %1374 = vmatpush2.msra.mxu0 0.0
    %1375 = vmatprep.subr.mxu0 0.0
    %1376 = vmatpush2.msra.mxu0 0.0
    %1377 = vmatprep.subr.mxu0 0.0
    %1378 = vmatpush2.msra.mxu0 0.0
    %1379 = vmatprep.subr.mxu0 0.0
    %1380 = vmatpush2.msra.mxu0 0.0
    %1381 = vmatprep.subr.mxu0 0.0
    %1382 = vmatpush2.msra.mxu0 0.0
    %1383 = vmatprep.subr.mxu0 0.0
    %1384 = vmatpush2.msra.mxu0 0.0
    %1385 = vmatprep.subr.mxu0 0.0
    %1386 = vmatpush2.msra.mxu0 0.0
    %1387 = vmatprep.subr.mxu0 0.0
    %1388 = vmatpush2.msra.mxu0 0.0
    %1389 = vmatprep.subr.mxu0 0.0
    %1390 = vmatpush2.msra.mxu0 0.0
    %1391 = vmatprep.mubr.f32.mxu0 0.0
    %1392 = vmatmul.mubr.f32.gmra.mxu0 %v116
    %v1393 = vpop.f32.mrf.mxu0
    %v1394 = vadd.f32 0.0, %v1393
    %v1395 = vpop.f32.mrf.mxu0
    %1396 = vdwg.mxu0
    %v1397 = vsel %vm36, %v1324, %v1394
    %s1398 = scalar_lea.vmem [#allocation2], 768
    %v1399 = vld [vmem:[%s1398] sm:$0xff]
    %v1400 = vld [vmem:[%s1398 + $0x8] sm:$0xff]
    %v1401 = vld [vmem:[%s1398 + $0x10] sm:$0xff]
    %v1402 = vld [vmem:[%s1398 + $0x18] sm:$0xff]
    %v1403 = vld [vmem:[%s1398 + $0x20] sm:$0xff]
    %v1404 = vld [vmem:[%s1398 + $0x28] sm:$0xff]
    %v1405 = vld [vmem:[%s1398 + $0x30] sm:$0xff]
    %v1406 = vld [vmem:[%s1398 + $0x38] sm:$0xff]
    %s1407 = scalar_lea.vmem %s4, 96
    %v1408 = vld [vmem:[%s1407] sm:$0xff]
    %v1410 = vsel %vm198, %v1397, 0
    %1412 = vmatprep.subr.mxu0 0.0
    %1413 = vmatpush1.msra.mxu0 0.0
    %1414 = vmatprep.subr.mxu0 0.0
    %1415 = vmatpush1.msra.mxu0 0.0
    %1416 = vmatprep.subr.mxu0 0.0
    %1417 = vmatpush1.msra.mxu0 0.0
    %1418 = vmatprep.subr.mxu0 0.0
    %1419 = vmatpush1.msra.mxu0 0.0
    %1420 = vmatprep.subr.mxu0 0.0
    %1421 = vmatpush1.msra.mxu0 0.0
    %1422 = vmatprep.subr.mxu0 0.0
    %1423 = vmatpush1.msra.mxu0 0.0
    %1424 = vmatprep.subr.mxu0 0.0
    %1425 = vmatpush1.msra.mxu0 0.0
    %1426 = vmatprep.subr.mxu0 0.0
    %1427 = vmatpush1.msra.mxu0 0.0
    %1428 = vmatprep.subr.mxu0 0.0
    %1429 = vmatpush1.msra.mxu0 %v1406
    %1430 = vmatprep.subr.mxu0 0.0
    %1431 = vmatpush1.msra.mxu0 %v1405
    %1432 = vmatprep.subr.mxu0 0.0
    %1433 = vmatpush1.msra.mxu0 %v1404
    %1434 = vmatprep.subr.mxu0 0.0
    %1435 = vmatpush1.msra.mxu0 %v1403
    %1436 = vmatprep.subr.mxu0 0.0
    %1437 = vmatpush1.msra.mxu0 %v1402
    %1438 = vmatprep.subr.mxu0 0.0
    %1439 = vmatpush1.msra.mxu0 %v1401
    %1440 = vmatprep.subr.mxu0 0.0
    %1441 = vmatpush1.msra.mxu0 %v1400
    %1442 = vmatprep.subr.mxu0 0.0
    %1443 = vmatpush1.msra.mxu0 %v1399
    %1444 = vmatprep.subr.mxu0 0.0
    %1445 = vmatpush2.msra.mxu0 0.0
    %1446 = vmatprep.subr.mxu0 0.0
    %1447 = vmatpush2.msra.mxu0 0.0
    %1448 = vmatprep.subr.mxu0 0.0
    %1449 = vmatpush2.msra.mxu0 0.0
    %1450 = vmatprep.subr.mxu0 0.0
    %1451 = vmatpush2.msra.mxu0 0.0
    %1452 = vmatprep.subr.mxu0 0.0
    %1453 = vmatpush2.msra.mxu0 0.0
    %1454 = vmatprep.subr.mxu0 0.0
    %1455 = vmatpush2.msra.mxu0 0.0
    %1456 = vmatprep.subr.mxu0 0.0
    %1457 = vmatpush2.msra.mxu0 0.0
    %1458 = vmatprep.subr.mxu0 0.0
    %1459 = vmatpush2.msra.mxu0 0.0
    %1460 = vmatprep.subr.mxu0 0.0
    %1461 = vmatpush2.msra.mxu0 0.0
    %1462 = vmatprep.subr.mxu0 0.0
    %1463 = vmatpush2.msra.mxu0 0.0
    %1464 = vmatprep.subr.mxu0 0.0
    %1465 = vmatpush2.msra.mxu0 0.0
    %1466 = vmatprep.subr.mxu0 0.0
    %1467 = vmatpush2.msra.mxu0 0.0
    %1468 = vmatprep.subr.mxu0 0.0
    %1469 = vmatpush2.msra.mxu0 0.0
    %1470 = vmatprep.subr.mxu0 0.0
    %1471 = vmatpush2.msra.mxu0 0.0
    %1472 = vmatprep.subr.mxu0 0.0
    %1473 = vmatpush2.msra.mxu0 0.0
    %1474 = vmatprep.subr.mxu0 0.0
    %1475 = vmatpush2.msra.mxu0 0.0
    %1476 = vmatprep.mubr.f32.mxu0 0.0
    %1477 = vmatmul.mubr.f32.gmra.mxu0 %v1410
    %v1478 = vpop.f32.mrf.mxu0
    %v1479 = vadd.f32 %v1408, %v1478
    %v1480 = vpop.f32.mrf.mxu0
    %1481 = vdwg.mxu0
    %v1482 = vmul.f32 %v1479, 0.5
    %v1483 = vtanh.pop %v1482
    %v1484 = vmul.f32 %v1483, 0.5
    %v1485 = vadd.f32 %v1484, 0.5
    %s1486 = scalar_lea.vmem [#allocation2], 832
    %v1487 = vld [vmem:[%s1486] sm:$0xff]
    %v1488 = vld [vmem:[%s1486 + $0x8] sm:$0xff]
    %v1489 = vld [vmem:[%s1486 + $0x10] sm:$0xff]
    %v1490 = vld [vmem:[%s1486 + $0x18] sm:$0xff]
    %v1491 = vld [vmem:[%s1486 + $0x20] sm:$0xff]
    %v1492 = vld [vmem:[%s1486 + $0x28] sm:$0xff]
    %v1493 = vld [vmem:[%s1486 + $0x30] sm:$0xff]
    %v1494 = vld [vmem:[%s1486 + $0x38] sm:$0xff]
    %s1495 = scalar_lea.vmem %s4, 104
    %v1496 = vld [vmem:[%s1495] sm:$0xff]
    %v1498 = vsel %vm198, %v1485, 0
    %1500 = vmatprep.subr.mxu0 0.0
    %1501 = vmatpush1.msra.mxu0 0.0
    %1502 = vmatprep.subr.mxu0 0.0
    %1503 = vmatpush1.msra.mxu0 0.0
    %1504 = vmatprep.subr.mxu0 0.0
    %1505 = vmatpush1.msra.mxu0 0.0
    %1506 = vmatprep.subr.mxu0 0.0
    %1507 = vmatpush1.msra.mxu0 0.0
    %1508 = vmatprep.subr.mxu0 0.0
    %1509 = vmatpush1.msra.mxu0 0.0
    %1510 = vmatprep.subr.mxu0 0.0
    %1511 = vmatpush1.msra.mxu0 0.0
    %1512 = vmatprep.subr.mxu0 0.0
    %1513 = vmatpush1.msra.mxu0 0.0
    %1514 = vmatprep.subr.mxu0 0.0
    %1515 = vmatpush1.msra.mxu0 0.0
    %1516 = vmatprep.subr.mxu0 0.0
    %1517 = vmatpush1.msra.mxu0 %v1494
    %1518 = vmatprep.subr.mxu0 0.0
    %1519 = vmatpush1.msra.mxu0 %v1493
    %1520 = vmatprep.subr.mxu0 0.0
    %1521 = vmatpush1.msra.mxu0 %v1492
    %1522 = vmatprep.subr.mxu0 0.0
    %1523 = vmatpush1.msra.mxu0 %v1491
    %1524 = vmatprep.subr.mxu0 0.0
    %1525 = vmatpush1.msra.mxu0 %v1490
    %1526 = vmatprep.subr.mxu0 0.0
    %1527 = vmatpush1.msra.mxu0 %v1489
    %1528 = vmatprep.subr.mxu0 0.0
    %1529 = vmatpush1.msra.mxu0 %v1488
    %1530 = vmatprep.subr.mxu0 0.0
    %1531 = vmatpush1.msra.mxu0 %v1487
    %1532 = vmatprep.subr.mxu0 0.0
    %1533 = vmatpush2.msra.mxu0 0.0
    %1534 = vmatprep.subr.mxu0 0.0
    %1535 = vmatpush2.msra.mxu0 0.0
    %1536 = vmatprep.subr.mxu0 0.0
    %1537 = vmatpush2.msra.mxu0 0.0
    %1538 = vmatprep.subr.mxu0 0.0
    %1539 = vmatpush2.msra.mxu0 0.0
    %1540 = vmatprep.subr.mxu0 0.0
    %1541 = vmatpush2.msra.mxu0 0.0
    %1542 = vmatprep.subr.mxu0 0.0
    %1543 = vmatpush2.msra.mxu0 0.0
    %1544 = vmatprep.subr.mxu0 0.0
    %1545 = vmatpush2.msra.mxu0 0.0
    %1546 = vmatprep.subr.mxu0 0.0
    %1547 = vmatpush2.msra.mxu0 0.0
    %1548 = vmatprep.subr.mxu0 0.0
    %1549 = vmatpush2.msra.mxu0 0.0
    %1550 = vmatprep.subr.mxu0 0.0
    %1551 = vmatpush2.msra.mxu0 0.0
    %1552 = vmatprep.subr.mxu0 0.0
    %1553 = vmatpush2.msra.mxu0 0.0
    %1554 = vmatprep.subr.mxu0 0.0
    %1555 = vmatpush2.msra.mxu0 0.0
    %1556 = vmatprep.subr.mxu0 0.0
    %1557 = vmatpush2.msra.mxu0 0.0
    %1558 = vmatprep.subr.mxu0 0.0
    %1559 = vmatpush2.msra.mxu0 0.0
    %1560 = vmatprep.subr.mxu0 0.0
    %1561 = vmatpush2.msra.mxu0 0.0
    %1562 = vmatprep.subr.mxu0 0.0
    %1563 = vmatpush2.msra.mxu0 0.0
    %1564 = vmatprep.mubr.f32.mxu0 0.0
    %1565 = vmatmul.mubr.f32.gmra.mxu0 %v1498
    %v1566 = vpop.f32.mrf.mxu0
    %v1567 = vadd.f32 %v1496, %v1566
    %v1568 = vpop.f32.mrf.mxu0
    %1569 = vdwg.mxu0
    %v1570 = vmul.f32 %v1567, 0.5
    %v1571 = vtanh.pop %v1570
    %v1572 = vmul.f32 %v1571, 0.5
    %v1573 = vadd.f32 %v1572, 0.5
    %s1574 = scalar_lea.vmem [#allocation2], 896
    %v1575 = vld [vmem:[%s1574] sm:$0xff]
    %v1576 = vld [vmem:[%s1574 + $0x8] sm:$0xff]
    %v1577 = vld [vmem:[%s1574 + $0x10] sm:$0xff]
    %v1578 = vld [vmem:[%s1574 + $0x18] sm:$0xff]
    %v1579 = vld [vmem:[%s1574 + $0x20] sm:$0xff]
    %v1580 = vld [vmem:[%s1574 + $0x28] sm:$0xff]
    %v1581 = vld [vmem:[%s1574 + $0x30] sm:$0xff]
    %v1582 = vld [vmem:[%s1574 + $0x38] sm:$0xff]
    %s1583 = scalar_lea.vmem %s4, 112
    %v1584 = vld [vmem:[%s1583] sm:$0xff]
    %v1586 = vsel %vm198, %v1573, 0
    %1588 = vmatprep.subr.mxu0 0.0
    %1589 = vmatpush1.msra.mxu0 0.0
    %1590 = vmatprep.subr.mxu0 0.0
    %1591 = vmatpush1.msra.mxu0 0.0
    %1592 = vmatprep.subr.mxu0 0.0
    %1593 = vmatpush1.msra.mxu0 0.0
    %1594 = vmatprep.subr.mxu0 0.0
    %1595 = vmatpush1.msra.mxu0 0.0
    %1596 = vmatprep.subr.mxu0 0.0
    %1597 = vmatpush1.msra.mxu0 0.0
    %1598 = vmatprep.subr.mxu0 0.0
    %1599 = vmatpush1.msra.mxu0 0.0
    %1600 = vmatprep.subr.mxu0 0.0
    %1601 = vmatpush1.msra.mxu0 0.0
    %1602 = vmatprep.subr.mxu0 0.0
    %1603 = vmatpush1.msra.mxu0 0.0
    %1604 = vmatprep.subr.mxu0 0.0
    %1605 = vmatpush1.msra.mxu0 %v1582
    %1606 = vmatprep.subr.mxu0 0.0
    %1607 = vmatpush1.msra.mxu0 %v1581
    %1608 = vmatprep.subr.mxu0 0.0
    %1609 = vmatpush1.msra.mxu0 %v1580
    %1610 = vmatprep.subr.mxu0 0.0
    %1611 = vmatpush1.msra.mxu0 %v1579
    %1612 = vmatprep.subr.mxu0 0.0
    %1613 = vmatpush1.msra.mxu0 %v1578
    %1614 = vmatprep.subr.mxu0 0.0
    %1615 = vmatpush1.msra.mxu0 %v1577
    %1616 = vmatprep.subr.mxu0 0.0
    %1617 = vmatpush1.msra.mxu0 %v1576
    %1618 = vmatprep.subr.mxu0 0.0
    %1619 = vmatpush1.msra.mxu0 %v1575
    %1620 = vmatprep.subr.mxu0 0.0
    %1621 = vmatpush2.msra.mxu0 0.0
    %1622 = vmatprep.subr.mxu0 0.0
    %1623 = vmatpush2.msra.mxu0 0.0
    %1624 = vmatprep.subr.mxu0 0.0
    %1625 = vmatpush2.msra.mxu0 0.0
    %1626 = vmatprep.subr.mxu0 0.0
    %1627 = vmatpush2.msra.mxu0 0.0
    %1628 = vmatprep.subr.mxu0 0.0
    %1629 = vmatpush2.msra.mxu0 0.0
    %1630 = vmatprep.subr.mxu0 0.0
    %1631 = vmatpush2.msra.mxu0 0.0
    %1632 = vmatprep.subr.mxu0 0.0
    %1633 = vmatpush2.msra.mxu0 0.0
    %1634 = vmatprep.subr.mxu0 0.0
    %1635 = vmatpush2.msra.mxu0 0.0
    %1636 = vmatprep.subr.mxu0 0.0
    %1637 = vmatpush2.msra.mxu0 0.0
    %1638 = vmatprep.subr.mxu0 0.0
    %1639 = vmatpush2.msra.mxu0 0.0
    %1640 = vmatprep.subr.mxu0 0.0
    %1641 = vmatpush2.msra.mxu0 0.0
    %1642 = vmatprep.subr.mxu0 0.0
    %1643 = vmatpush2.msra.mxu0 0.0
    %1644 = vmatprep.subr.mxu0 0.0
    %1645 = vmatpush2.msra.mxu0 0.0
    %1646 = vmatprep.subr.mxu0 0.0
    %1647 = vmatpush2.msra.mxu0 0.0
    %1648 = vmatprep.subr.mxu0 0.0
    %1649 = vmatpush2.msra.mxu0 0.0
    %1650 = vmatprep.subr.mxu0 0.0
    %1651 = vmatpush2.msra.mxu0 0.0
    %1652 = vmatprep.mubr.f32.mxu0 0.0
    %1653 = vmatmul.mubr.f32.gmra.mxu0 %v1586
    %v1654 = vpop.f32.mrf.mxu0
    %v1655 = vadd.f32 %v1584, %v1654
    %v1656 = vpop.f32.mrf.mxu0
    %1657 = vdwg.mxu0
    %v1658 = vmul.f32 %v1655, 0.5
    %v1659 = vtanh.pop %v1658
    %v1660 = vmul.f32 %v1659, 0.5
    %v1661 = vadd.f32 %v1660, 0.5
    %s1662 = scalar_lea.vmem [#allocation2], 960
    %v1663 = vld [vmem:[%s1662] sm:$0xff]
    %v1664 = vld [vmem:[%s1662 + $0x8] sm:$0xff]
    %v1665 = vld [vmem:[%s1662 + $0x10] sm:$0xff]
    %v1666 = vld [vmem:[%s1662 + $0x18] sm:$0xff]
    %v1667 = vld [vmem:[%s1662 + $0x20] sm:$0xff]
    %v1668 = vld [vmem:[%s1662 + $0x28] sm:$0xff]
    %v1669 = vld [vmem:[%s1662 + $0x30] sm:$0xff]
    %v1670 = vld [vmem:[%s1662 + $0x38] sm:$0xff]
    %s1671 = scalar_lea.vmem %s4, 120
    %v1672 = vld [vmem:[%s1671] sm:$0xff]
    %v1674 = vsel %vm198, %v1661, 0
    %1676 = vmatprep.subr.mxu0 0.0
    %1677 = vmatpush1.msra.mxu0 0.0
    %1678 = vmatprep.subr.mxu0 0.0
    %1679 = vmatpush1.msra.mxu0 0.0
    %1680 = vmatprep.subr.mxu0 0.0
    %1681 = vmatpush1.msra.mxu0 0.0
    %1682 = vmatprep.subr.mxu0 0.0
    %1683 = vmatpush1.msra.mxu0 0.0
    %1684 = vmatprep.subr.mxu0 0.0
    %1685 = vmatpush1.msra.mxu0 0.0
    %1686 = vmatprep.subr.mxu0 0.0
    %1687 = vmatpush1.msra.mxu0 0.0
    %1688 = vmatprep.subr.mxu0 0.0
    %1689 = vmatpush1.msra.mxu0 0.0
    %1690 = vmatprep.subr.mxu0 0.0
    %1691 = vmatpush1.msra.mxu0 0.0
    %1692 = vmatprep.subr.mxu0 0.0
    %1693 = vmatpush1.msra.mxu0 %v1670
    %1694 = vmatprep.subr.mxu0 0.0
    %1695 = vmatpush1.msra.mxu0 %v1669
    %1696 = vmatprep.subr.mxu0 0.0
    %1697 = vmatpush1.msra.mxu0 %v1668
    %1698 = vmatprep.subr.mxu0 0.0
    %1699 = vmatpush1.msra.mxu0 %v1667
    %1700 = vmatprep.subr.mxu0 0.0
    %1701 = vmatpush1.msra.mxu0 %v1666
    %1702 = vmatprep.subr.mxu0 0.0
    %1703 = vmatpush1.msra.mxu0 %v1665
    %1704 = vmatprep.subr.mxu0 0.0
    %1705 = vmatpush1.msra.mxu0 %v1664
    %1706 = vmatprep.subr.mxu0 0.0
    %1707 = vmatpush1.msra.mxu0 %v1663
    %1708 = vmatprep.subr.mxu0 0.0
    %1709 = vmatpush2.msra.mxu0 0.0
    %1710 = vmatprep.subr.mxu0 0.0
    %1711 = vmatpush2.msra.mxu0 0.0
    %1712 = vmatprep.subr.mxu0 0.0
    %1713 = vmatpush2.msra.mxu0 0.0
    %1714 = vmatprep.subr.mxu0 0.0
    %1715 = vmatpush2.msra.mxu0 0.0
    %1716 = vmatprep.subr.mxu0 0.0
    %1717 = vmatpush2.msra.mxu0 0.0
    %1718 = vmatprep.subr.mxu0 0.0
    %1719 = vmatpush2.msra.mxu0 0.0
    %1720 = vmatprep.subr.mxu0 0.0
    %1721 = vmatpush2.msra.mxu0 0.0
    %1722 = vmatprep.subr.mxu0 0.0
    %1723 = vmatpush2.msra.mxu0 0.0
    %1724 = vmatprep.subr.mxu0 0.0
    %1725 = vmatpush2.msra.mxu0 0.0
    %1726 = vmatprep.subr.mxu0 0.0
    %1727 = vmatpush2.msra.mxu0 0.0
    %1728 = vmatprep.subr.mxu0 0.0
    %1729 = vmatpush2.msra.mxu0 0.0
    %1730 = vmatprep.subr.mxu0 0.0
    %1731 = vmatpush2.msra.mxu0 0.0
    %1732 = vmatprep.subr.mxu0 0.0
    %1733 = vmatpush2.msra.mxu0 0.0
    %1734 = vmatprep.subr.mxu0 0.0
    %1735 = vmatpush2.msra.mxu0 0.0
    %1736 = vmatprep.subr.mxu0 0.0
    %1737 = vmatpush2.msra.mxu0 0.0
    %1738 = vmatprep.subr.mxu0 0.0
    %1739 = vmatpush2.msra.mxu0 0.0
    %1740 = vmatprep.mubr.f32.mxu0 0.0
    %1741 = vmatmul.mubr.f32.gmra.mxu0 %v1674
    %v1742 = vpop.f32.mrf.mxu0
    %v1743 = vadd.f32 %v1672, %v1742
    %v1744 = vpop.f32.mrf.mxu0
    %1745 = vdwg.mxu0
    %v1746 = vmul.f32 %v1743, 0.5
    %v1747 = vtanh.pop %v1746
    %v1748 = vmul.f32 %v1747, 0.5
    %v1749 = vadd.f32 %v1748, 0.5
    %s1750 = scalar_lea.vmem [#allocation2], 1024
    %v1751 = vld [vmem:[%s1750] sm:$0xff]
    %v1752 = vld [vmem:[%s1750 + $0x8] sm:$0xff]
    %v1753 = vld [vmem:[%s1750 + $0x10] sm:$0xff]
    %v1754 = vld [vmem:[%s1750 + $0x18] sm:$0xff]
    %v1755 = vld [vmem:[%s1750 + $0x20] sm:$0xff]
    %v1756 = vld [vmem:[%s1750 + $0x28] sm:$0xff]
    %v1757 = vld [vmem:[%s1750 + $0x30] sm:$0xff]
    %v1758 = vld [vmem:[%s1750 + $0x38] sm:$0xff]
    %s1759 = scalar_lea.vmem %s4, 128
    %v1760 = vld [vmem:[%s1759] sm:$0xff]
    %v1762 = vsel %vm198, %v1749, 0
    %1764 = vmatprep.subr.mxu0 0.0
    %1765 = vmatpush1.msra.mxu0 0.0
    %1766 = vmatprep.subr.mxu0 0.0
    %1767 = vmatpush1.msra.mxu0 0.0
    %1768 = vmatprep.subr.mxu0 0.0
    %1769 = vmatpush1.msra.mxu0 0.0
    %1770 = vmatprep.subr.mxu0 0.0
    %1771 = vmatpush1.msra.mxu0 0.0
    %1772 = vmatprep.subr.mxu0 0.0
    %1773 = vmatpush1.msra.mxu0 0.0
    %1774 = vmatprep.subr.mxu0 0.0
    %1775 = vmatpush1.msra.mxu0 0.0
    %1776 = vmatprep.subr.mxu0 0.0
    %1777 = vmatpush1.msra.mxu0 0.0
    %1778 = vmatprep.subr.mxu0 0.0
    %1779 = vmatpush1.msra.mxu0 0.0
    %1780 = vmatprep.subr.mxu0 0.0
    %1781 = vmatpush1.msra.mxu0 %v1758
    %1782 = vmatprep.subr.mxu0 0.0
    %1783 = vmatpush1.msra.mxu0 %v1757
    %1784 = vmatprep.subr.mxu0 0.0
    %1785 = vmatpush1.msra.mxu0 %v1756
    %1786 = vmatprep.subr.mxu0 0.0
    %1787 = vmatpush1.msra.mxu0 %v1755
    %1788 = vmatprep.subr.mxu0 0.0
    %1789 = vmatpush1.msra.mxu0 %v1754
    %1790 = vmatprep.subr.mxu0 0.0
    %1791 = vmatpush1.msra.mxu0 %v1753
    %1792 = vmatprep.subr.mxu0 0.0
    %1793 = vmatpush1.msra.mxu0 %v1752
    %1794 = vmatprep.subr.mxu0 0.0
    %1795 = vmatpush1.msra.mxu0 %v1751
    %1796 = vmatprep.subr.mxu0 0.0
    %1797 = vmatpush2.msra.mxu0 0.0
    %1798 = vmatprep.subr.mxu0 0.0
    %1799 = vmatpush2.msra.mxu0 0.0
    %1800 = vmatprep.subr.mxu0 0.0
    %1801 = vmatpush2.msra.mxu0 0.0
    %1802 = vmatprep.subr.mxu0 0.0
    %1803 = vmatpush2.msra.mxu0 0.0
    %1804 = vmatprep.subr.mxu0 0.0
    %1805 = vmatpush2.msra.mxu0 0.0
    %1806 = vmatprep.subr.mxu0 0.0
    %1807 = vmatpush2.msra.mxu0 0.0
    %1808 = vmatprep.subr.mxu0 0.0
    %1809 = vmatpush2.msra.mxu0 0.0
    %1810 = vmatprep.subr.mxu0 0.0
    %1811 = vmatpush2.msra.mxu0 0.0
    %1812 = vmatprep.subr.mxu0 0.0
    %1813 = vmatpush2.msra.mxu0 0.0
    %1814 = vmatprep.subr.mxu0 0.0
    %1815 = vmatpush2.msra.mxu0 0.0
    %1816 = vmatprep.subr.mxu0 0.0
    %1817 = vmatpush2.msra.mxu0 0.0
    %1818 = vmatprep.subr.mxu0 0.0
    %1819 = vmatpush2.msra.mxu0 0.0
    %1820 = vmatprep.subr.mxu0 0.0
    %1821 = vmatpush2.msra.mxu0 0.0
    %1822 = vmatprep.subr.mxu0 0.0
    %1823 = vmatpush2.msra.mxu0 0.0
    %1824 = vmatprep.subr.mxu0 0.0
    %1825 = vmatpush2.msra.mxu0 0.0
    %1826 = vmatprep.subr.mxu0 0.0
    %1827 = vmatpush2.msra.mxu0 0.0
    %1828 = vmatprep.mubr.f32.mxu0 0.0
    %1829 = vmatmul.mubr.f32.gmra.mxu0 %v1762
    %v1830 = vpop.f32.mrf.mxu0
    %v1831 = vadd.f32 %v1760, %v1830
    %v1832 = vpop.f32.mrf.mxu0
    %1833 = vdwg.mxu0
    %v1834 = vmul.f32 %v1831, 0.5
    %v1835 = vtanh.pop %v1834
    %v1836 = vmul.f32 %v1835, 0.5
    %v1837 = vadd.f32 %v1836, 0.5
    %s1838 = scalar_lea.vmem [#allocation2], 1088
    %v1839 = vld [vmem:[%s1838] sm:$0xff]
    %v1840 = vld [vmem:[%s1838 + $0x8] sm:$0xff]
    %v1841 = vld [vmem:[%s1838 + $0x10] sm:$0xff]
    %v1842 = vld [vmem:[%s1838 + $0x18] sm:$0xff]
    %v1843 = vld [vmem:[%s1838 + $0x20] sm:$0xff]
    %v1844 = vld [vmem:[%s1838 + $0x28] sm:$0xff]
    %v1845 = vld [vmem:[%s1838 + $0x30] sm:$0xff]
    %v1846 = vld [vmem:[%s1838 + $0x38] sm:$0xff]
    %s1847 = scalar_lea.vmem %s4, 136
    %v1848 = vld [vmem:[%s1847] sm:$0xff]
    %v1850 = vsel %vm198, %v1837, 0
    %1852 = vmatprep.subr.mxu0 0.0
    %1853 = vmatpush1.msra.mxu0 0.0
    %1854 = vmatprep.subr.mxu0 0.0
    %1855 = vmatpush1.msra.mxu0 0.0
    %1856 = vmatprep.subr.mxu0 0.0
    %1857 = vmatpush1.msra.mxu0 0.0
    %1858 = vmatprep.subr.mxu0 0.0
    %1859 = vmatpush1.msra.mxu0 0.0
    %1860 = vmatprep.subr.mxu0 0.0
    %1861 = vmatpush1.msra.mxu0 0.0
    %1862 = vmatprep.subr.mxu0 0.0
    %1863 = vmatpush1.msra.mxu0 0.0
    %1864 = vmatprep.subr.mxu0 0.0
    %1865 = vmatpush1.msra.mxu0 0.0
    %1866 = vmatprep.subr.mxu0 0.0
    %1867 = vmatpush1.msra.mxu0 0.0
    %1868 = vmatprep.subr.mxu0 0.0
    %1869 = vmatpush1.msra.mxu0 %v1846
    %1870 = vmatprep.subr.mxu0 0.0
    %1871 = vmatpush1.msra.mxu0 %v1845
    %1872 = vmatprep.subr.mxu0 0.0
    %1873 = vmatpush1.msra.mxu0 %v1844
    %1874 = vmatprep.subr.mxu0 0.0
    %1875 = vmatpush1.msra.mxu0 %v1843
    %1876 = vmatprep.subr.mxu0 0.0
    %1877 = vmatpush1.msra.mxu0 %v1842
    %1878 = vmatprep.subr.mxu0 0.0
    %1879 = vmatpush1.msra.mxu0 %v1841
    %1880 = vmatprep.subr.mxu0 0.0
    %1881 = vmatpush1.msra.mxu0 %v1840
    %1882 = vmatprep.subr.mxu0 0.0
    %1883 = vmatpush1.msra.mxu0 %v1839
    %1884 = vmatprep.subr.mxu0 0.0
    %1885 = vmatpush2.msra.mxu0 0.0
    %1886 = vmatprep.subr.mxu0 0.0
    %1887 = vmatpush2.msra.mxu0 0.0
    %1888 = vmatprep.subr.mxu0 0.0
    %1889 = vmatpush2.msra.mxu0 0.0
    %1890 = vmatprep.subr.mxu0 0.0
    %1891 = vmatpush2.msra.mxu0 0.0
    %1892 = vmatprep.subr.mxu0 0.0
    %1893 = vmatpush2.msra.mxu0 0.0
    %1894 = vmatprep.subr.mxu0 0.0
    %1895 = vmatpush2.msra.mxu0 0.0
    %1896 = vmatprep.subr.mxu0 0.0
    %1897 = vmatpush2.msra.mxu0 0.0
    %1898 = vmatprep.subr.mxu0 0.0
    %1899 = vmatpush2.msra.mxu0 0.0
    %1900 = vmatprep.subr.mxu0 0.0
    %1901 = vmatpush2.msra.mxu0 0.0
    %1902 = vmatprep.subr.mxu0 0.0
    %1903 = vmatpush2.msra.mxu0 0.0
    %1904 = vmatprep.subr.mxu0 0.0
    %1905 = vmatpush2.msra.mxu0 0.0
    %1906 = vmatprep.subr.mxu0 0.0
    %1907 = vmatpush2.msra.mxu0 0.0
    %1908 = vmatprep.subr.mxu0 0.0
    %1909 = vmatpush2.msra.mxu0 0.0
    %1910 = vmatprep.subr.mxu0 0.0
    %1911 = vmatpush2.msra.mxu0 0.0
    %1912 = vmatprep.subr.mxu0 0.0
    %1913 = vmatpush2.msra.mxu0 0.0
    %1914 = vmatprep.subr.mxu0 0.0
    %1915 = vmatpush2.msra.mxu0 0.0
    %1916 = vmatprep.mubr.f32.mxu0 0.0
    %1917 = vmatmul.mubr.f32.gmra.mxu0 %v1850
    %v1918 = vpop.f32.mrf.mxu0
    %v1919 = vadd.f32 %v1848, %v1918
    %v1920 = vpop.f32.mrf.mxu0
    %1921 = vdwg.mxu0
    %v1922 = vmul.f32 %v1919, 0.5
    %v1923 = vtanh.pop %v1922
    %v1924 = vmul.f32 %v1923, 0.5
    %v1925 = vadd.f32 %v1924, 0.5
    %s1926 = scalar_lea.vmem [#allocation2], 1152
    %v1927 = vld [vmem:[%s1926] sm:$0xff]
    %v1928 = vld [vmem:[%s1926 + $0x8] sm:$0xff]
    %v1929 = vld [vmem:[%s1926 + $0x10] sm:$0xff]
    %v1930 = vld [vmem:[%s1926 + $0x18] sm:$0xff]
    %v1931 = vld [vmem:[%s1926 + $0x20] sm:$0xff]
    %v1932 = vld [vmem:[%s1926 + $0x28] sm:$0xff]
    %v1933 = vld [vmem:[%s1926 + $0x30] sm:$0xff]
    %v1934 = vld [vmem:[%s1926 + $0x38] sm:$0xff]
    %s1935 = scalar_lea.vmem %s4, 144
    %v1936 = vld [vmem:[%s1935] sm:$0xff]
    %v1938 = vsel %vm198, %v1925, 0
    %1940 = vmatprep.subr.mxu0 0.0
    %1941 = vmatpush1.msra.mxu0 0.0
    %1942 = vmatprep.subr.mxu0 0.0
    %1943 = vmatpush1.msra.mxu0 0.0
    %1944 = vmatprep.subr.mxu0 0.0
    %1945 = vmatpush1.msra.mxu0 0.0
    %1946 = vmatprep.subr.mxu0 0.0
    %1947 = vmatpush1.msra.mxu0 0.0
    %1948 = vmatprep.subr.mxu0 0.0
    %1949 = vmatpush1.msra.mxu0 0.0
    %1950 = vmatprep.subr.mxu0 0.0
    %1951 = vmatpush1.msra.mxu0 0.0
    %1952 = vmatprep.subr.mxu0 0.0
    %1953 = vmatpush1.msra.mxu0 0.0
    %1954 = vmatprep.subr.mxu0 0.0
    %1955 = vmatpush1.msra.mxu0 0.0
    %1956 = vmatprep.subr.mxu0 0.0
    %1957 = vmatpush1.msra.mxu0 %v1934
    %1958 = vmatprep.subr.mxu0 0.0
    %1959 = vmatpush1.msra.mxu0 %v1933
    %1960 = vmatprep.subr.mxu0 0.0
    %1961 = vmatpush1.msra.mxu0 %v1932
    %1962 = vmatprep.subr.mxu0 0.0
    %1963 = vmatpush1.msra.mxu0 %v1931
    %1964 = vmatprep.subr.mxu0 0.0
    %1965 = vmatpush1.msra.mxu0 %v1930
    %1966 = vmatprep.subr.mxu0 0.0
    %1967 = vmatpush1.msra.mxu0 %v1929
    %1968 = vmatprep.subr.mxu0 0.0
    %1969 = vmatpush1.msra.mxu0 %v1928
    %1970 = vmatprep.subr.mxu0 0.0
    %1971 = vmatpush1.msra.mxu0 %v1927
    %1972 = vmatprep.subr.mxu0 0.0
    %1973 = vmatpush2.msra.mxu0 0.0
    %1974 = vmatprep.subr.mxu0 0.0
    %1975 = vmatpush2.msra.mxu0 0.0
    %1976 = vmatprep.subr.mxu0 0.0
    %1977 = vmatpush2.msra.mxu0 0.0
    %1978 = vmatprep.subr.mxu0 0.0
    %1979 = vmatpush2.msra.mxu0 0.0
    %1980 = vmatprep.subr.mxu0 0.0
    %1981 = vmatpush2.msra.mxu0 0.0
    %1982 = vmatprep.subr.mxu0 0.0
    %1983 = vmatpush2.msra.mxu0 0.0
    %1984 = vmatprep.subr.mxu0 0.0
    %1985 = vmatpush2.msra.mxu0 0.0
    %1986 = vmatprep.subr.mxu0 0.0
    %1987 = vmatpush2.msra.mxu0 0.0
    %1988 = vmatprep.subr.mxu0 0.0
    %1989 = vmatpush2.msra.mxu0 0.0
    %1990 = vmatprep.subr.mxu0 0.0
    %1991 = vmatpush2.msra.mxu0 0.0
    %1992 = vmatprep.subr.mxu0 0.0
    %1993 = vmatpush2.msra.mxu0 0.0
    %1994 = vmatprep.subr.mxu0 0.0
    %1995 = vmatpush2.msra.mxu0 0.0
    %1996 = vmatprep.subr.mxu0 0.0
    %1997 = vmatpush2.msra.mxu0 0.0
    %1998 = vmatprep.subr.mxu0 0.0
    %1999 = vmatpush2.msra.mxu0 0.0
    %2000 = vmatprep.subr.mxu0 0.0
    %2001 = vmatpush2.msra.mxu0 0.0
    %2002 = vmatprep.subr.mxu0 0.0
    %2003 = vmatpush2.msra.mxu0 0.0
    %2004 = vmatprep.mubr.f32.mxu0 0.0
    %2005 = vmatmul.mubr.f32.gmra.mxu0 %v1938
    %v2006 = vpop.f32.mrf.mxu0
    %v2007 = vadd.f32 %v1936, %v2006
    %v2008 = vpop.f32.mrf.mxu0
    %2009 = vdwg.mxu0
    %v2010 = vmul.f32 %v2007, 0.5
    %v2011 = vtanh.pop %v2010
    %v2012 = vmul.f32 %v2011, 0.5
    %v2013 = vadd.f32 %v2012, 0.5
    %s2014 = scalar_lea.vmem [#allocation2], 1216
    %v2015 = vld [vmem:[%s2014] sm:$0xff]
    %v2016 = vld [vmem:[%s2014 + $0x8] sm:$0xff]
    %v2017 = vld [vmem:[%s2014 + $0x10] sm:$0xff]
    %v2018 = vld [vmem:[%s2014 + $0x18] sm:$0xff]
    %v2019 = vld [vmem:[%s2014 + $0x20] sm:$0xff]
    %v2020 = vld [vmem:[%s2014 + $0x28] sm:$0xff]
    %v2021 = vld [vmem:[%s2014 + $0x30] sm:$0xff]
    %v2022 = vld [vmem:[%s2014 + $0x38] sm:$0xff]
    %s2023 = scalar_lea.vmem %s4, 152
    %v2024 = vld [vmem:[%s2023] sm:$0xff]
    %v2026 = vsel %vm198, %v2013, 0
    %2028 = vmatprep.subr.mxu0 0.0
    %2029 = vmatpush1.msra.mxu0 0.0
    %2030 = vmatprep.subr.mxu0 0.0
    %2031 = vmatpush1.msra.mxu0 0.0
    %2032 = vmatprep.subr.mxu0 0.0
    %2033 = vmatpush1.msra.mxu0 0.0
    %2034 = vmatprep.subr.mxu0 0.0
    %2035 = vmatpush1.msra.mxu0 0.0
    %2036 = vmatprep.subr.mxu0 0.0
    %2037 = vmatpush1.msra.mxu0 0.0
    %2038 = vmatprep.subr.mxu0 0.0
    %2039 = vmatpush1.msra.mxu0 0.0
    %2040 = vmatprep.subr.mxu0 0.0
    %2041 = vmatpush1.msra.mxu0 0.0
    %2042 = vmatprep.subr.mxu0 0.0
    %2043 = vmatpush1.msra.mxu0 0.0
    %2044 = vmatprep.subr.mxu0 0.0
    %2045 = vmatpush1.msra.mxu0 %v2022
    %2046 = vmatprep.subr.mxu0 0.0
    %2047 = vmatpush1.msra.mxu0 %v2021
    %2048 = vmatprep.subr.mxu0 0.0
    %2049 = vmatpush1.msra.mxu0 %v2020
    %2050 = vmatprep.subr.mxu0 0.0
    %2051 = vmatpush1.msra.mxu0 %v2019
    %2052 = vmatprep.subr.mxu0 0.0
    %2053 = vmatpush1.msra.mxu0 %v2018
    %2054 = vmatprep.subr.mxu0 0.0
    %2055 = vmatpush1.msra.mxu0 %v2017
    %2056 = vmatprep.subr.mxu0 0.0
    %2057 = vmatpush1.msra.mxu0 %v2016
    %2058 = vmatprep.subr.mxu0 0.0
    %2059 = vmatpush1.msra.mxu0 %v2015
    %2060 = vmatprep.subr.mxu0 0.0
    %2061 = vmatpush2.msra.mxu0 0.0
    %2062 = vmatprep.subr.mxu0 0.0
    %2063 = vmatpush2.msra.mxu0 0.0
    %2064 = vmatprep.subr.mxu0 0.0
    %2065 = vmatpush2.msra.mxu0 0.0
    %2066 = vmatprep.subr.mxu0 0.0
    %2067 = vmatpush2.msra.mxu0 0.0
    %2068 = vmatprep.subr.mxu0 0.0
    %2069 = vmatpush2.msra.mxu0 0.0
    %2070 = vmatprep.subr.mxu0 0.0
    %2071 = vmatpush2.msra.mxu0 0.0
    %2072 = vmatprep.subr.mxu0 0.0
    %2073 = vmatpush2.msra.mxu0 0.0
    %2074 = vmatprep.subr.mxu0 0.0
    %2075 = vmatpush2.msra.mxu0 0.0
    %2076 = vmatprep.subr.mxu0 0.0
    %2077 = vmatpush2.msra.mxu0 0.0
    %2078 = vmatprep.subr.mxu0 0.0
    %2079 = vmatpush2.msra.mxu0 0.0
    %2080 = vmatprep.subr.mxu0 0.0
    %2081 = vmatpush2.msra.mxu0 0.0
    %2082 = vmatprep.subr.mxu0 0.0
    %2083 = vmatpush2.msra.mxu0 0.0
    %2084 = vmatprep.subr.mxu0 0.0
    %2085 = vmatpush2.msra.mxu0 0.0
    %2086 = vmatprep.subr.mxu0 0.0
    %2087 = vmatpush2.msra.mxu0 0.0
    %2088 = vmatprep.subr.mxu0 0.0
    %2089 = vmatpush2.msra.mxu0 0.0
    %2090 = vmatprep.subr.mxu0 0.0
    %2091 = vmatpush2.msra.mxu0 0.0
    %2092 = vmatprep.mubr.f32.mxu0 0.0
    %2093 = vmatmul.mubr.f32.gmra.mxu0 %v2026
    %v2094 = vpop.f32.mrf.mxu0
    %v2095 = vadd.f32 %v2024, %v2094
    %v2096 = vpop.f32.mrf.mxu0
    %2097 = vdwg.mxu0
    %v2098 = vmul.f32 %v2095, 0.5
    %v2099 = vtanh.pop %v2098
    %v2100 = vmul.f32 %v2099, 0.5
    %v2101 = vadd.f32 %v2100, 0.5
    %s2102 = scalar_lea.vmem [#allocation2], 1280
    %v2103 = vld [vmem:[%s2102] sm:$0xff]
    %v2104 = vld [vmem:[%s2102 + $0x8] sm:$0xff]
    %v2105 = vld [vmem:[%s2102 + $0x10] sm:$0xff]
    %v2106 = vld [vmem:[%s2102 + $0x18] sm:$0xff]
    %v2107 = vld [vmem:[%s2102 + $0x20] sm:$0xff]
    %v2108 = vld [vmem:[%s2102 + $0x28] sm:$0xff]
    %v2109 = vld [vmem:[%s2102 + $0x30] sm:$0xff]
    %v2110 = vld [vmem:[%s2102 + $0x38] sm:$0xff]
    %s2111 = scalar_lea.vmem %s4, 160
    %v2112 = vld [vmem:[%s2111] sm:$0xff]
    %v2114 = vsel %vm198, %v2101, 0
    %2116 = vmatprep.subr.mxu0 0.0
    %2117 = vmatpush1.msra.mxu0 0.0
    %2118 = vmatprep.subr.mxu0 0.0
    %2119 = vmatpush1.msra.mxu0 0.0
    %2120 = vmatprep.subr.mxu0 0.0
    %2121 = vmatpush1.msra.mxu0 0.0
    %2122 = vmatprep.subr.mxu0 0.0
    %2123 = vmatpush1.msra.mxu0 0.0
    %2124 = vmatprep.subr.mxu0 0.0
    %2125 = vmatpush1.msra.mxu0 0.0
    %2126 = vmatprep.subr.mxu0 0.0
    %2127 = vmatpush1.msra.mxu0 0.0
    %2128 = vmatprep.subr.mxu0 0.0
    %2129 = vmatpush1.msra.mxu0 0.0
    %2130 = vmatprep.subr.mxu0 0.0
    %2131 = vmatpush1.msra.mxu0 0.0
    %2132 = vmatprep.subr.mxu0 0.0
    %2133 = vmatpush1.msra.mxu0 %v2110
    %2134 = vmatprep.subr.mxu0 0.0
    %2135 = vmatpush1.msra.mxu0 %v2109
    %2136 = vmatprep.subr.mxu0 0.0
    %2137 = vmatpush1.msra.mxu0 %v2108
    %2138 = vmatprep.subr.mxu0 0.0
    %2139 = vmatpush1.msra.mxu0 %v2107
    %2140 = vmatprep.subr.mxu0 0.0
    %2141 = vmatpush1.msra.mxu0 %v2106
    %2142 = vmatprep.subr.mxu0 0.0
    %2143 = vmatpush1.msra.mxu0 %v2105
    %2144 = vmatprep.subr.mxu0 0.0
    %2145 = vmatpush1.msra.mxu0 %v2104
    %2146 = vmatprep.subr.mxu0 0.0
    %2147 = vmatpush1.msra.mxu0 %v2103
    %2148 = vmatprep.subr.mxu0 0.0
    %2149 = vmatpush2.msra.mxu0 0.0
    %2150 = vmatprep.subr.mxu0 0.0
    %2151 = vmatpush2.msra.mxu0 0.0
    %2152 = vmatprep.subr.mxu0 0.0
    %2153 = vmatpush2.msra.mxu0 0.0
    %2154 = vmatprep.subr.mxu0 0.0
    %2155 = vmatpush2.msra.mxu0 0.0
    %2156 = vmatprep.subr.mxu0 0.0
    %2157 = vmatpush2.msra.mxu0 0.0
    %2158 = vmatprep.subr.mxu0 0.0
    %2159 = vmatpush2.msra.mxu0 0.0
    %2160 = vmatprep.subr.mxu0 0.0
    %2161 = vmatpush2.msra.mxu0 0.0
    %2162 = vmatprep.subr.mxu0 0.0
    %2163 = vmatpush2.msra.mxu0 0.0
    %2164 = vmatprep.subr.mxu0 0.0
    %2165 = vmatpush2.msra.mxu0 0.0
    %2166 = vmatprep.subr.mxu0 0.0
    %2167 = vmatpush2.msra.mxu0 0.0
    %2168 = vmatprep.subr.mxu0 0.0
    %2169 = vmatpush2.msra.mxu0 0.0
    %2170 = vmatprep.subr.mxu0 0.0
    %2171 = vmatpush2.msra.mxu0 0.0
    %2172 = vmatprep.subr.mxu0 0.0
    %2173 = vmatpush2.msra.mxu0 0.0
    %2174 = vmatprep.subr.mxu0 0.0
    %2175 = vmatpush2.msra.mxu0 0.0
    %2176 = vmatprep.subr.mxu0 0.0
    %2177 = vmatpush2.msra.mxu0 0.0
    %2178 = vmatprep.subr.mxu0 0.0
    %2179 = vmatpush2.msra.mxu0 0.0
    %2180 = vmatprep.mubr.f32.mxu0 0.0
    %2181 = vmatmul.mubr.f32.gmra.mxu0 %v2114
    %v2182 = vpop.f32.mrf.mxu0
    %v2183 = vadd.f32 %v2112, %v2182
    %v2184 = vpop.f32.mrf.mxu0
    %2185 = vdwg.mxu0
    %v2186 = vmul.f32 %v2183, 0.5
    %v2187 = vtanh.pop %v2186
    %v2188 = vmul.f32 %v2187, 0.5
    %v2189 = vadd.f32 %v2188, 0.5
    %s2190 = scalar_lea.vmem [#allocation2], 1344
    %v2191 = vld [vmem:[%s2190] sm:$0xff]
    %v2192 = vld [vmem:[%s2190 + $0x8] sm:$0xff]
    %v2193 = vld [vmem:[%s2190 + $0x10] sm:$0xff]
    %v2194 = vld [vmem:[%s2190 + $0x18] sm:$0xff]
    %v2195 = vld [vmem:[%s2190 + $0x20] sm:$0xff]
    %v2196 = vld [vmem:[%s2190 + $0x28] sm:$0xff]
    %v2197 = vld [vmem:[%s2190 + $0x30] sm:$0xff]
    %v2198 = vld [vmem:[%s2190 + $0x38] sm:$0xff]
    %s2199 = scalar_lea.vmem %s4, 168
    %v2200 = vld [vmem:[%s2199] sm:$0xff]
    %v2202 = vsel %vm198, %v2189, 0
    %2204 = vmatprep.subr.mxu0 0.0
    %2205 = vmatpush1.msra.mxu0 0.0
    %2206 = vmatprep.subr.mxu0 0.0
    %2207 = vmatpush1.msra.mxu0 0.0
    %2208 = vmatprep.subr.mxu0 0.0
    %2209 = vmatpush1.msra.mxu0 0.0
    %2210 = vmatprep.subr.mxu0 0.0
    %2211 = vmatpush1.msra.mxu0 0.0
    %2212 = vmatprep.subr.mxu0 0.0
    %2213 = vmatpush1.msra.mxu0 0.0
    %2214 = vmatprep.subr.mxu0 0.0
    %2215 = vmatpush1.msra.mxu0 0.0
    %2216 = vmatprep.subr.mxu0 0.0
    %2217 = vmatpush1.msra.mxu0 0.0
    %2218 = vmatprep.subr.mxu0 0.0
    %2219 = vmatpush1.msra.mxu0 0.0
    %2220 = vmatprep.subr.mxu0 0.0
    %2221 = vmatpush1.msra.mxu0 %v2198
    %2222 = vmatprep.subr.mxu0 0.0
    %2223 = vmatpush1.msra.mxu0 %v2197
    %2224 = vmatprep.subr.mxu0 0.0
    %2225 = vmatpush1.msra.mxu0 %v2196
    %2226 = vmatprep.subr.mxu0 0.0
    %2227 = vmatpush1.msra.mxu0 %v2195
    %2228 = vmatprep.subr.mxu0 0.0
    %2229 = vmatpush1.msra.mxu0 %v2194
    %2230 = vmatprep.subr.mxu0 0.0
    %2231 = vmatpush1.msra.mxu0 %v2193
    %2232 = vmatprep.subr.mxu0 0.0
    %2233 = vmatpush1.msra.mxu0 %v2192
    %2234 = vmatprep.subr.mxu0 0.0
    %2235 = vmatpush1.msra.mxu0 %v2191
    %2236 = vmatprep.subr.mxu0 0.0
    %2237 = vmatpush2.msra.mxu0 0.0
    %2238 = vmatprep.subr.mxu0 0.0
    %2239 = vmatpush2.msra.mxu0 0.0
    %2240 = vmatprep.subr.mxu0 0.0
    %2241 = vmatpush2.msra.mxu0 0.0
    %2242 = vmatprep.subr.mxu0 0.0
    %2243 = vmatpush2.msra.mxu0 0.0
    %2244 = vmatprep.subr.mxu0 0.0
    %2245 = vmatpush2.msra.mxu0 0.0
    %2246 = vmatprep.subr.mxu0 0.0
    %2247 = vmatpush2.msra.mxu0 0.0
    %2248 = vmatprep.subr.mxu0 0.0
    %2249 = vmatpush2.msra.mxu0 0.0
    %2250 = vmatprep.subr.mxu0 0.0
    %2251 = vmatpush2.msra.mxu0 0.0
    %2252 = vmatprep.subr.mxu0 0.0
    %2253 = vmatpush2.msra.mxu0 0.0
    %2254 = vmatprep.subr.mxu0 0.0
    %2255 = vmatpush2.msra.mxu0 0.0
    %2256 = vmatprep.subr.mxu0 0.0
    %2257 = vmatpush2.msra.mxu0 0.0
    %2258 = vmatprep.subr.mxu0 0.0
    %2259 = vmatpush2.msra.mxu0 0.0
    %2260 = vmatprep.subr.mxu0 0.0
    %2261 = vmatpush2.msra.mxu0 0.0
    %2262 = vmatprep.subr.mxu0 0.0
    %2263 = vmatpush2.msra.mxu0 0.0
    %2264 = vmatprep.subr.mxu0 0.0
    %2265 = vmatpush2.msra.mxu0 0.0
    %2266 = vmatprep.subr.mxu0 0.0
    %2267 = vmatpush2.msra.mxu0 0.0
    %2268 = vmatprep.mubr.f32.mxu0 0.0
    %2269 = vmatmul.mubr.f32.gmra.mxu0 %v2202
    %v2270 = vpop.f32.mrf.mxu0
    %v2271 = vadd.f32 %v2200, %v2270
    %v2272 = vpop.f32.mrf.mxu0
    %2273 = vdwg.mxu0
    %v2274 = vmul.f32 %v2271, 0.5
    %v2275 = vtanh.pop %v2274
    %v2276 = vmul.f32 %v2275, 0.5
    %v2277 = vadd.f32 %v2276, 0.5
    %s2278 = scalar_lea.vmem [#allocation2], 1408
    %v2279 = vld [vmem:[%s2278] sm:$0xff]
    %v2280 = vld [vmem:[%s2278 + $0x8] sm:$0xff]
    %v2281 = vld [vmem:[%s2278 + $0x10] sm:$0xff]
    %v2282 = vld [vmem:[%s2278 + $0x18] sm:$0xff]
    %v2283 = vld [vmem:[%s2278 + $0x20] sm:$0xff]
    %v2284 = vld [vmem:[%s2278 + $0x28] sm:$0xff]
    %v2285 = vld [vmem:[%s2278 + $0x30] sm:$0xff]
    %v2286 = vld [vmem:[%s2278 + $0x38] sm:$0xff]
    %s2287 = scalar_lea.vmem %s4, 176
    %v2288 = vld [vmem:[%s2287] sm:$0xff]
    %v2290 = vsel %vm198, %v2277, 0
    %2292 = vmatprep.subr.mxu0 0.0
    %2293 = vmatpush1.msra.mxu0 0.0
    %2294 = vmatprep.subr.mxu0 0.0
    %2295 = vmatpush1.msra.mxu0 0.0
    %2296 = vmatprep.subr.mxu0 0.0
    %2297 = vmatpush1.msra.mxu0 0.0
    %2298 = vmatprep.subr.mxu0 0.0
    %2299 = vmatpush1.msra.mxu0 0.0
    %2300 = vmatprep.subr.mxu0 0.0
    %2301 = vmatpush1.msra.mxu0 0.0
    %2302 = vmatprep.subr.mxu0 0.0
    %2303 = vmatpush1.msra.mxu0 0.0
    %2304 = vmatprep.subr.mxu0 0.0
    %2305 = vmatpush1.msra.mxu0 0.0
    %2306 = vmatprep.subr.mxu0 0.0
    %2307 = vmatpush1.msra.mxu0 0.0
    %2308 = vmatprep.subr.mxu0 0.0
    %2309 = vmatpush1.msra.mxu0 %v2286
    %2310 = vmatprep.subr.mxu0 0.0
    %2311 = vmatpush1.msra.mxu0 %v2285
    %2312 = vmatprep.subr.mxu0 0.0
    %2313 = vmatpush1.msra.mxu0 %v2284
    %2314 = vmatprep.subr.mxu0 0.0
    %2315 = vmatpush1.msra.mxu0 %v2283
    %2316 = vmatprep.subr.mxu0 0.0
    %2317 = vmatpush1.msra.mxu0 %v2282
    %2318 = vmatprep.subr.mxu0 0.0
    %2319 = vmatpush1.msra.mxu0 %v2281
    %2320 = vmatprep.subr.mxu0 0.0
    %2321 = vmatpush1.msra.mxu0 %v2280
    %2322 = vmatprep.subr.mxu0 0.0
    %2323 = vmatpush1.msra.mxu0 %v2279
    %2324 = vmatprep.subr.mxu0 0.0
    %2325 = vmatpush2.msra.mxu0 0.0
    %2326 = vmatprep.subr.mxu0 0.0
    %2327 = vmatpush2.msra.mxu0 0.0
    %2328 = vmatprep.subr.mxu0 0.0
    %2329 = vmatpush2.msra.mxu0 0.0
    %2330 = vmatprep.subr.mxu0 0.0
    %2331 = vmatpush2.msra.mxu0 0.0
    %2332 = vmatprep.subr.mxu0 0.0
    %2333 = vmatpush2.msra.mxu0 0.0
    %2334 = vmatprep.subr.mxu0 0.0
    %2335 = vmatpush2.msra.mxu0 0.0
    %2336 = vmatprep.subr.mxu0 0.0
    %2337 = vmatpush2.msra.mxu0 0.0
    %2338 = vmatprep.subr.mxu0 0.0
    %2339 = vmatpush2.msra.mxu0 0.0
    %2340 = vmatprep.subr.mxu0 0.0
    %2341 = vmatpush2.msra.mxu0 0.0
    %2342 = vmatprep.subr.mxu0 0.0
    %2343 = vmatpush2.msra.mxu0 0.0
    %2344 = vmatprep.subr.mxu0 0.0
    %2345 = vmatpush2.msra.mxu0 0.0
    %2346 = vmatprep.subr.mxu0 0.0
    %2347 = vmatpush2.msra.mxu0 0.0
    %2348 = vmatprep.subr.mxu0 0.0
    %2349 = vmatpush2.msra.mxu0 0.0
    %2350 = vmatprep.subr.mxu0 0.0
    %2351 = vmatpush2.msra.mxu0 0.0
    %2352 = vmatprep.subr.mxu0 0.0
    %2353 = vmatpush2.msra.mxu0 0.0
    %2354 = vmatprep.subr.mxu0 0.0
    %2355 = vmatpush2.msra.mxu0 0.0
    %2356 = vmatprep.mubr.f32.mxu0 0.0
    %2357 = vmatmul.mubr.f32.gmra.mxu0 %v2290
    %v2358 = vpop.f32.mrf.mxu0
    %v2359 = vadd.f32 %v2288, %v2358
    %v2360 = vpop.f32.mrf.mxu0
    %2361 = vdwg.mxu0
    %v2362 = vmul.f32 %v2359, 0.5
    %v2363 = vtanh.pop %v2362
    %v2364 = vmul.f32 %v2363, 0.5
    %v2365 = vadd.f32 %v2364, 0.5
    %s2366 = scalar_lea.vmem [#allocation2], 1472
    %v2367 = vld [vmem:[%s2366] sm:$0xff]
    %v2368 = vld [vmem:[%s2366 + $0x8] sm:$0xff]
    %v2369 = vld [vmem:[%s2366 + $0x10] sm:$0xff]
    %v2370 = vld [vmem:[%s2366 + $0x18] sm:$0xff]
    %v2371 = vld [vmem:[%s2366 + $0x20] sm:$0xff]
    %v2372 = vld [vmem:[%s2366 + $0x28] sm:$0xff]
    %v2373 = vld [vmem:[%s2366 + $0x30] sm:$0xff]
    %v2374 = vld [vmem:[%s2366 + $0x38] sm:$0xff]
    %s2375 = scalar_lea.vmem %s4, 184
    %v2376 = vld [vmem:[%s2375] sm:$0xff]
    %v2378 = vsel %vm198, %v2365, 0
    %2380 = vmatprep.subr.mxu0 0.0
    %2381 = vmatpush1.msra.mxu0 0.0
    %2382 = vmatprep.subr.mxu0 0.0
    %2383 = vmatpush1.msra.mxu0 0.0
    %2384 = vmatprep.subr.mxu0 0.0
    %2385 = vmatpush1.msra.mxu0 0.0
    %2386 = vmatprep.subr.mxu0 0.0
    %2387 = vmatpush1.msra.mxu0 0.0
    %2388 = vmatprep.subr.mxu0 0.0
    %2389 = vmatpush1.msra.mxu0 0.0
    %2390 = vmatprep.subr.mxu0 0.0
    %2391 = vmatpush1.msra.mxu0 0.0
    %2392 = vmatprep.subr.mxu0 0.0
    %2393 = vmatpush1.msra.mxu0 0.0
    %2394 = vmatprep.subr.mxu0 0.0
    %2395 = vmatpush1.msra.mxu0 0.0
    %2396 = vmatprep.subr.mxu0 0.0
    %2397 = vmatpush1.msra.mxu0 %v2374
    %2398 = vmatprep.subr.mxu0 0.0
    %2399 = vmatpush1.msra.mxu0 %v2373
    %2400 = vmatprep.subr.mxu0 0.0
    %2401 = vmatpush1.msra.mxu0 %v2372
    %2402 = vmatprep.subr.mxu0 0.0
    %2403 = vmatpush1.msra.mxu0 %v2371
    %2404 = vmatprep.subr.mxu0 0.0
    %2405 = vmatpush1.msra.mxu0 %v2370
    %2406 = vmatprep.subr.mxu0 0.0
    %2407 = vmatpush1.msra.mxu0 %v2369
    %2408 = vmatprep.subr.mxu0 0.0
    %2409 = vmatpush1.msra.mxu0 %v2368
    %2410 = vmatprep.subr.mxu0 0.0
    %2411 = vmatpush1.msra.mxu0 %v2367
    %2412 = vmatprep.subr.mxu0 0.0
    %2413 = vmatpush2.msra.mxu0 0.0
    %2414 = vmatprep.subr.mxu0 0.0
    %2415 = vmatpush2.msra.mxu0 0.0
    %2416 = vmatprep.subr.mxu0 0.0
    %2417 = vmatpush2.msra.mxu0 0.0
    %2418 = vmatprep.subr.mxu0 0.0
    %2419 = vmatpush2.msra.mxu0 0.0
    %2420 = vmatprep.subr.mxu0 0.0
    %2421 = vmatpush2.msra.mxu0 0.0
    %2422 = vmatprep.subr.mxu0 0.0
    %2423 = vmatpush2.msra.mxu0 0.0
    %2424 = vmatprep.subr.mxu0 0.0
    %2425 = vmatpush2.msra.mxu0 0.0
    %2426 = vmatprep.subr.mxu0 0.0
    %2427 = vmatpush2.msra.mxu0 0.0
    %2428 = vmatprep.subr.mxu0 0.0
    %2429 = vmatpush2.msra.mxu0 0.0
    %2430 = vmatprep.subr.mxu0 0.0
    %2431 = vmatpush2.msra.mxu0 0.0
    %2432 = vmatprep.subr.mxu0 0.0
    %2433 = vmatpush2.msra.mxu0 0.0
    %2434 = vmatprep.subr.mxu0 0.0
    %2435 = vmatpush2.msra.mxu0 0.0
    %2436 = vmatprep.subr.mxu0 0.0
    %2437 = vmatpush2.msra.mxu0 0.0
    %2438 = vmatprep.subr.mxu0 0.0
    %2439 = vmatpush2.msra.mxu0 0.0
    %2440 = vmatprep.subr.mxu0 0.0
    %2441 = vmatpush2.msra.mxu0 0.0
    %2442 = vmatprep.subr.mxu0 0.0
    %2443 = vmatpush2.msra.mxu0 0.0
    %2444 = vmatprep.mubr.f32.mxu0 0.0
    %2445 = vmatmul.mubr.f32.gmra.mxu0 %v2378
    %v2446 = vpop.f32.mrf.mxu0
    %v2447 = vadd.f32 %v2376, %v2446
    %v2448 = vpop.f32.mrf.mxu0
    %2449 = vdwg.mxu0
    %v2450 = vmul.f32 %v2447, 0.5
    %v2451 = vtanh.pop %v2450
    %v2452 = vmul.f32 %v2451, 0.5
    %v2453 = vadd.f32 %v2452, 0.5
    %2454 = vst.msk [vmem:[%s5] sm:$0xff] %vm198, %v2453
    // Predicated region
    $region26: #{multi_ranking_forward.1} parent=1 // pred_check
      _
    $region27: #{multi_ranking_forward.1} parent=1 // pred_check_branch
      %2456 = sbr.rel (0) target = $region29
    $region28: #{multi_ranking_forward.1} parent=1 // pred_region
      _
    $region29: #{multi_ranking_forward.1} parent=1 // pred_fallthru
      _
    // Predicated region
    $region30: #{multi_ranking_forward.1} parent=1 // pred_check
      _
    $region31: #{multi_ranking_forward.1} parent=1 // pred_check_branch
      %2458 = sbr.rel (0) target = $region33
    $region32: #{multi_ranking_forward.1} parent=1 // pred_region
      _
    $region33: #{multi_ranking_forward.1} parent=1 // pred_fallthru
      _
    %2459 = vsyncpa [#allocation3], 1

</llo_original>
